<compile_context>
chip_gen: v7x
topology: tpu7x:2x2x1
jax: 0.10.0
libtpu: 0.0.40
codegen_flags: <defaults>
</compile_context>

<pallas_src>
import jax
import jax.numpy as jnp
from jax import lax
from jax.experimental import pallas as pl
from jax.experimental.pallas import tpu as pltpu


_SUBLANE_PACK = 16   # bf16 sublane-tile granule; keeps weight row-slices aligned


def _round_up(x, m):
    return ((x + m - 1) // m) * m


# ------------------------- Pallas kernels -------------------------

def _conv_relu_kernel(cw_ref, pt_ref, cb_ref, o_ref):
    # cw_ref: (OC, K) f32, pt_ref: (K, NB*P_pad) f32 im2col patches,
    # cb_ref: (OC, 1) f32.  Output: lane-dense bf16 activation (OC, NB*P_pad).
    acc = jnp.dot(cw_ref[...], pt_ref[...], preferred_element_type=jnp.float32)
    acc = jnp.maximum(acc + cb_ref[...], 0.0)
    o_ref[...] = acc.astype(o_ref.dtype)


def _linear_sigmoid_kernel(act_ref, w_ref, b_ref, o_ref):
    # act_ref: (OC, NB, P_pad) bf16, resident across all D_OUT tiles.
    # w_ref:   (OC*P_pad, TN) bf16 tile of the K-major prepared weight.
    # b_ref:   (1, TN) f32.   o_ref: (NB, TN) f32.
    #
    # y[n, d] = sum_oc sum_p act[oc, n, p] * w[oc*P_pad + p, d]
    # The per-channel block matmuls ARE the NCHW flatten: no in-kernel
    # reshape/relayout of the activation, and every weight row-slice starts on
    # a 16-row bf16 tile boundary (P_pad % 16 == 0) -> pure address offset.
    n_ch, _, p_pad = act_ref.shape
    acc = jnp.zeros(o_ref.shape, jnp.float32)
    for ch in range(n_ch):
        acc = acc + jnp.dot(
            act_ref[ch],
            w_ref[pl.ds(ch * p_pad, p_pad), :],
            preferred_element_type=jnp.float32,
        )
    o_ref[...] = jax.nn.sigmoid(acc + b_ref[...]).astype(o_ref.dtype)


# ------------------------- wrappers -------------------------

def _im2col(x, kh, kw):
    # x: (N, C, H, W) -> (N, C*KH*KW, OH*OW); k-order = (C, KH, KW), p = i*OW + j.
    n, c, h, w = x.shape
    oh, ow = h - kh + 1, w - kw + 1
    cols = jnp.stack(
        [x[:, :, u:u + oh, v:v + ow] for u in range(kh) for v in range(kw)],
        axis=2,
    )                                              # (N, C, KH*KW, OH, OW)
    return cols.reshape(n, c * kh * kw, oh * ow), (oh, ow)


def _pick_tn(dout, target=512):
    # Largest divisor of dout <= target: keeps >=2 grid steps per core on v7x
    # and a small double-buffered weight tile on every generation.
    if dout % target == 0:
        return target
    for t in range(min(target, dout), 0, -1):
        if dout % t == 0:
            return t
    return dout


def prepare_params(conv_w, conv_b, lin_w, lin_b):
    """One-time parameter prep (call OUTSIDE the jit'd forward).

    lin_w (D_OUT, featureDim) with featureDim ordered (oc, oh, ow) is
    transposed to K-major, regrouped to (OC, P, D_OUT), zero-padded to
    P_pad = round_up(P, 16) rows per channel, flattened to (OC*P_pad, D_OUT)
    and cast to bf16.  The zero pad rows guarantee padded activation columns
    contribute exactly 0.
    """
    oc = conv_w.shape[0]
    dout, fd = lin_w.shape
    assert fd % oc == 0, "featureDim must equal OC*OH*OW"
    p = fd // oc
    p_pad = _round_up(p, _SUBLANE_PACK)

    wt = lin_w.T.reshape(oc, p, dout)                      # (OC, P, D_OUT)
    wt = jnp.pad(wt, ((0, 0), (0, p_pad - p), (0, 0)))     # zero pad rows
    w_prep = wt.reshape(oc * p_pad, dout).astype(jnp.bfloat16)
    b2d = lin_b.reshape(1, dout).astype(jnp.float32)
    return (conv_w, conv_b, w_prep, b2d)


def siamese_forward(x, x2, prepped):
    conv_w, conv_b, w_prep, b2d = prepped
    oc, c, kh, kw = conv_w.shape
    dout = w_prep.shape[1]
    p_pad = w_prep.shape[0] // oc

    n = x.shape[0]
    batch2 = 2 * n
    nb = max(_round_up(batch2, 8), 8)              # fill whole 8-sublane vregs

    # Shared weights -> both branches in one pass so the big linear weight is
    # streamed from HBM exactly once per forward.
    xall = jnp.concatenate([x, x2], axis=0)                      # (2N, C, H, W)
    patches, (oh, ow) = _im2col(xall, kh, kw)                    # (2N, K, P)
    k = c * kh * kw
    p = oh * ow
    patches = jnp.pad(patches, ((0, nb - batch2), (0, 0), (0, p_pad - p)))
    patches_t = patches.transpose(1, 0, 2).reshape(k, nb * p_pad)   # (K, NB*P_pad)

    cw2d = conv_w.reshape(oc, k).astype(jnp.float32)
    cb2d = conv_b.reshape(oc, 1).astype(jnp.float32)

    # --- conv + ReLU: one small matmul, lane-dense bf16 activation ---
    act = pl.pallas_call(
        _conv_relu_kernel,
        out_shape=jax.ShapeDtypeStruct((oc, nb * p_pad), jnp.bfloat16),
        grid=(1,),
        in_specs=[
            pl.BlockSpec((oc, k), lambda i: (0, 0)),
            pl.BlockSpec((k, nb * p_pad), lambda i: (0, 0)),
            pl.BlockSpec((oc, 1), lambda i: (0, 0)),
        ],
        out_specs=pl.BlockSpec((oc, nb * p_pad), lambda i: (0, 0)),
        compiler_params=pltpu.CompilerParams(
            dimension_semantics=("arbitrary",)),
    )(cw2d, patches_t, cb2d)
    act3 = act.reshape(oc, nb, p_pad)    # free row-major reshape (no transpose)

    # --- linear + sigmoid: D_OUT-tiled bf16 weight streaming ---
    tn = _pick_tn(dout, 512)
    y = pl.pallas_call(
        _linear_sigmoid_kernel,
        out_shape=jax.ShapeDtypeStruct((nb, dout), jnp.float32),
        grid=(dout // tn,),
        in_specs=[
            pl.BlockSpec((oc, nb, p_pad), lambda j: (0, 0, 0)),   # resident
            pl.BlockSpec((oc * p_pad, tn), lambda j: (0, j)),     # K-major bf16 tile
            pl.BlockSpec((1, tn), lambda j: (0, j)),
        ],
        out_specs=pl.BlockSpec((nb, tn), lambda j: (0, j)),
        compiler_params=pltpu.CompilerParams(
            dimension_semantics=("parallel",)),
    )(act3, w_prep, b2d)

    return y[:n], y[n:batch2]


# ------------------------- reference (pure JAX) -------------------------

def _reference(x, x2, params):
    conv_w, conv_b, lin_w, lin_b = params

    def branch(inp):
        h = lax.conv_general_dilated(
            inp, conv_w, window_strides=(1, 1), padding="VALID",
            dimension_numbers=("NCHW", "OIHW", "NCHW"),
            precision=lax.Precision.HIGHEST)
        h = jnp.maximum(h + conv_b[None, :, None, None], 0.0)
        h = h.reshape(h.shape[0], -1)
        return jax.nn.sigmoid(
            jnp.dot(h, lin_w.T, precision=lax.Precision.HIGHEST) + lin_b)

    return branch(x), branch(x2)


# ------------------------- main -------------------------

if __name__ == "__main__":
    # Small, module-consistent shapes.
    N, C, H, W = 2, 4, 16, 16
    OC, KS = 8, 3
    OH, OW = H - KS + 1, W - KS + 1
    FEATURE_DIM = OC * OH * OW                     # 8 * 14 * 14 = 1568
    D_OUT = 2048

    key = jax.random.PRNGKey(0)
    kx, kx2, kcw, kcb, klw, klb = jax.random.split(key, 6)

    x = jax.random.normal(kx, (N, C, H, W), dtype=jnp.float32)
    x2 = jax.random.normal(kx2, (N, C, H, W), dtype=jnp.float32)

    conv_w = 0.1 * jax.random.normal(kcw, (OC, C, KS, KS), dtype=jnp.float32)
    conv_b = 0.1 * jax.random.normal(kcb, (OC,), dtype=jnp.float32)
    lin_w = 0.02 * jax.random.normal(klw, (D_OUT, FEATURE_DIM), dtype=jnp.float32)
    lin_b = 0.02 * jax.random.normal(klb, (D_OUT,), dtype=jnp.float32)

    # One-time parameter prep (outside the jit'd forward): K-major, channel-
    # regrouped, 16-row-padded, bf16 linear weight.
    prepped = prepare_params(conv_w, conv_b, lin_w, lin_b)

    out1, out2 = jax.jit(siamese_forward)(x, x2, prepped)
    jax.block_until_ready((out1, out2))

    ref1, ref2 = _reference(x, x2, (conv_w, conv_b, lin_w, lin_b))
    assert out1.shape == (N, D_OUT) and out2.shape == (N, D_OUT)
    # bf16 weight/activation streaming -> looser tolerance than pure f32
    # (sigmoid outputs agree to ~1e-3; 1e-2 leaves margin).
    assert jnp.allclose(out1, ref1, atol=1e-2, rtol=1e-2)
    assert jnp.allclose(out2, ref2, atol=1e-2, rtol=1e-2)

    print("KERNEL_OK")
</pallas_src>

<mosaic_0001>
module attributes {stable_mosaic.version = 11 : i64} {
  func.func @_conv_relu_kernel(%arg0: i32, %arg1: memref<8x36xf32, #tpu.memory_space<vmem>>, %arg2: memref<36x1664xf32, #tpu.memory_space<vmem>>, %arg3: memref<8x1xf32, #tpu.memory_space<vmem>>, %arg4: memref<8x1664xbf16, #tpu.memory_space<vmem>>) attributes {dimension_semantics = [#tpu.dimension_semantics<arbitrary>], iteration_bounds = array<i64: 1>, scalar_prefetch = 0 : i64, scratch_operands = 0 : i64, tpu.core_type = #tpu.core_type<tc>, window_params = [{pipeline_mode = #tpu.pipeline_mode<synchronous>, transform_indices = @transform_0, window_bounds = array<i64: 8, 36>}, {pipeline_mode = #tpu.pipeline_mode<synchronous>, transform_indices = @transform_1, window_bounds = array<i64: 36, 1664>}, {pipeline_mode = #tpu.pipeline_mode<synchronous>, transform_indices = @transform_2, window_bounds = array<i64: 8, 1>}, {pipeline_mode = #tpu.pipeline_mode<synchronous>, transform_indices = @transform_3, window_bounds = array<i64: 8, 1664>}]} {
    %c0 = arith.constant 0 : index
    %c0_0 = arith.constant 0 : index
    %0 = vector.load %arg1[%c0, %c0_0] : memref<8x36xf32, #tpu.memory_space<vmem>>, vector<8x36xf32>
    %c0_1 = arith.constant 0 : index
    %c0_2 = arith.constant 0 : index
    %1 = vector.load %arg2[%c0_1, %c0_2] : memref<36x1664xf32, #tpu.memory_space<vmem>>, vector<36x1664xf32>
    %cst = arith.constant dense<0.000000e+00> : vector<8x1664xf32>
    %2 = tpu.matmul %0, %1, %cst {dimension_numbers = #tpu.dot_dimension_numbers<[1], [0], [0], [1], [0, 0, 1, 1], [], []>} : vector<8x36xf32>, vector<36x1664xf32>, vector<8x1664xf32> -> vector<8x1664xf32>
    %c0_3 = arith.constant 0 : index
    %c0_4 = arith.constant 0 : index
    %3 = vector.load %arg3[%c0_3, %c0_4] : memref<8x1xf32, #tpu.memory_space<vmem>>, vector<8x1xf32>
    %4 = vector.broadcast %3 : vector<8x1xf32> to vector<8x1664xf32>
    %5 = arith.addf %2, %4 : vector<8x1664xf32>
    %cst_5 = arith.constant 0.000000e+00 : f32
    %6 = vector.broadcast %cst_5 : f32 to vector<8x1664xf32>
    %7 = arith.maximumf %5, %6 : vector<8x1664xf32>
    %8 = arith.truncf %7 : vector<8x1664xf32> to vector<8x1664xbf16>
    %c0_6 = arith.constant 0 : index
    %c0_7 = arith.constant 0 : index
    %9 = vector.load %arg4[%c0_6, %c0_7] : memref<8x1664xbf16, #tpu.memory_space<vmem>>, vector<8x1664xbf16>
    tpu.vector_store %arg4[%c0_6, %c0_7], %8 {strides = array<i32>} : memref<8x1664xbf16, #tpu.memory_space<vmem>>, vector<8x1664xbf16>,
    return
  }
  func.func @transform_0(%arg0: i32) -> (i32, i32) {
    %c0_i32 = arith.constant 0 : i32
    %c0_i32_0 = arith.constant 0 : i32
    %c0_i32_1 = arith.constant 0 : i32
    return %c0_i32, %c0_i32_0 : i32, i32
  }
  func.func @transform_1(%arg0: i32) -> (i32, i32) {
    %c0_i32 = arith.constant 0 : i32
    %c0_i32_0 = arith.constant 0 : i32
    %c0_i32_1 = arith.constant 0 : i32
    return %c0_i32, %c0_i32_0 : i32, i32
  }
  func.func @transform_2(%arg0: i32) -> (i32, i32) {
    %c0_i32 = arith.constant 0 : i32
    %c0_i32_0 = arith.constant 0 : i32
    %c0_i32_1 = arith.constant 0 : i32
    return %c0_i32, %c0_i32_0 : i32, i32
  }
  func.func @transform_3(%arg0: i32) -> (i32, i32) {
    %c0_i32 = arith.constant 0 : i32
    %c0_i32_0 = arith.constant 0 : i32
    %c0_i32_1 = arith.constant 0 : i32
    return %c0_i32, %c0_i32_0 : i32, i32
  }
}

module attributes {stable_mosaic.version = 11 : i64} {
  func.func @_linear_sigmoid_kernel(%arg0: i32, %arg1: memref<8x8x208xbf16, #tpu.memory_space<vmem>>, %arg2: memref<1664x512xbf16, #tpu.memory_space<vmem>>, %arg3: memref<1x512xf32, #tpu.memory_space<vmem>>, %arg4: memref<8x512xf32, #tpu.memory_space<vmem>>) attributes {dimension_semantics = [#tpu.dimension_semantics<parallel>], iteration_bounds = array<i64: 4>, scalar_prefetch = 0 : i64, scratch_operands = 0 : i64, tpu.core_type = #tpu.core_type<tc>, window_params = [{pipeline_mode = #tpu.pipeline_mode<synchronous>, transform_indices = @transform_0, window_bounds = array<i64: 8, 8, 208>}, {transform_indices = @transform_1, window_bounds = array<i64: 1664, 512>}, {transform_indices = @transform_2, window_bounds = array<i64: 1, 512>}, {transform_indices = @transform_3, window_bounds = array<i64: 8, 512>}]} {
    %cst = arith.constant 0.000000e+00 : f32
    %0 = vector.broadcast %cst : f32 to vector<8x512xf32>
    %c0 = arith.constant 0 : index
    %c0_0 = arith.constant 0 : index
    %c0_1 = arith.constant 0 : index
    %1 = vector.load %arg1[%c0, %c0_0, %c0_1] : memref<8x8x208xbf16, #tpu.memory_space<vmem>>, vector<1x8x208xbf16>
    %2 = vector.shape_cast %1 : vector<1x8x208xbf16> to vector<8x208xbf16>
    %c0_2 = arith.constant 0 : index
    %c0_3 = arith.constant 0 : index
    %3 = vector.load %arg2[%c0_2, %c0_3] : memref<1664x512xbf16, #tpu.memory_space<vmem>>, vector<208x512xbf16>
    %cst_4 = arith.constant dense<0.000000e+00> : vector<8x512xf32>
    %4 = tpu.matmul %2, %3, %cst_4 {dimension_numbers = #tpu.dot_dimension_numbers<[1], [0], [0], [1], [0, 0, 1, 1], [], []>} : vector<8x208xbf16>, vector<208x512xbf16>, vector<8x512xf32> -> vector<8x512xf32>
    %5 = arith.addf %0, %4 : vector<8x512xf32>
    %c1 = arith.constant 1 : index
    %c0_5 = arith.constant 0 : index
    %c0_6 = arith.constant 0 : index
    %6 = vector.load %arg1[%c1, %c0_5, %c0_6] : memref<8x8x208xbf16, #tpu.memory_space<vmem>>, vector<1x8x208xbf16>
    %7 = vector.shape_cast %6 : vector<1x8x208xbf16> to vector<8x208xbf16>
    %c208 = arith.constant 208 : index
    %c0_7 = arith.constant 0 : index
    %8 = vector.load %arg2[%c208, %c0_7] : memref<1664x512xbf16, #tpu.memory_space<vmem>>, vector<208x512xbf16>
    %cst_8 = arith.constant dense<0.000000e+00> : vector<8x512xf32>
    %9 = tpu.matmul %7, %8, %cst_8 {dimension_numbers = #tpu.dot_dimension_numbers<[1], [0], [0], [1], [0, 0, 1, 1], [], []>} : vector<8x208xbf16>, vector<208x512xbf16>, vector<8x512xf32> -> vector<8x512xf32>
    %10 = arith.addf %5, %9 : vector<8x512xf32>
    %c2 = arith.constant 2 : index
    %c0_9 = arith.constant 0 : index
    %c0_10 = arith.constant 0 : index
    %11 = vector.load %arg1[%c2, %c0_9, %c0_10] : memref<8x8x208xbf16, #tpu.memory_space<vmem>>, vector<1x8x208xbf16>
    %12 = vector.shape_cast %11 : vector<1x8x208xbf16> to vector<8x208xbf16>
    %c416 = arith.constant 416 : index
    %c0_11 = arith.constant 0 : index
    %13 = vector.load %arg2[%c416, %c0_11] : memref<1664x512xbf16, #tpu.memory_space<vmem>>, vector<208x512xbf16>
    %cst_12 = arith.constant dense<0.000000e+00> : vector<8x512xf32>
    %14 = tpu.matmul %12, %13, %cst_12 {dimension_numbers = #tpu.dot_dimension_numbers<[1], [0], [0], [1], [0, 0, 1, 1], [], []>} : vector<8x208xbf16>, vector<208x512xbf16>, vector<8x512xf32> -> vector<8x512xf32>
    %15 = arith.addf %10, %14 : vector<8x512xf32>
    %c3 = arith.constant 3 : index
    %c0_13 = arith.constant 0 : index
    %c0_14 = arith.constant 0 : index
    %16 = vector.load %arg1[%c3, %c0_13, %c0_14] : memref<8x8x208xbf16, #tpu.memory_space<vmem>>, vector<1x8x208xbf16>
    %17 = vector.shape_cast %16 : vector<1x8x208xbf16> to vector<8x208xbf16>
    %c624 = arith.constant 624 : index
    %c0_15 = arith.constant 0 : index
    %18 = vector.load %arg2[%c624, %c0_15] : memref<1664x512xbf16, #tpu.memory_space<vmem>>, vector<208x512xbf16>
    %cst_16 = arith.constant dense<0.000000e+00> : vector<8x512xf32>
    %19 = tpu.matmul %17, %18, %cst_16 {dimension_numbers = #tpu.dot_dimension_numbers<[1], [0], [0], [1], [0, 0, 1, 1], [], []>} : vector<8x208xbf16>, vector<208x512xbf16>, vector<8x512xf32> -> vector<8x512xf32>
    %20 = arith.addf %15, %19 : vector<8x512xf32>
    %c4 = arith.constant 4 : index
    %c0_17 = arith.constant 0 : index
    %c0_18 = arith.constant 0 : index
    %21 = vector.load %arg1[%c4, %c0_17, %c0_18] : memref<8x8x208xbf16, #tpu.memory_space<vmem>>, vector<1x8x208xbf16>
    %22 = vector.shape_cast %21 : vector<1x8x208xbf16> to vector<8x208xbf16>
    %c832 = arith.constant 832 : index
    %c0_19 = arith.constant 0 : index
    %23 = vector.load %arg2[%c832, %c0_19] : memref<1664x512xbf16, #tpu.memory_space<vmem>>, vector<208x512xbf16>
    %cst_20 = arith.constant dense<0.000000e+00> : vector<8x512xf32>
    %24 = tpu.matmul %22, %23, %cst_20 {dimension_numbers = #tpu.dot_dimension_numbers<[1], [0], [0], [1], [0, 0, 1, 1], [], []>} : vector<8x208xbf16>, vector<208x512xbf16>, vector<8x512xf32> -> vector<8x512xf32>
    %25 = arith.addf %20, %24 : vector<8x512xf32>
    %c5 = arith.constant 5 : index
    %c0_21 = arith.constant 0 : index
    %c0_22 = arith.constant 0 : index
    %26 = vector.load %arg1[%c5, %c0_21, %c0_22] : memref<8x8x208xbf16, #tpu.memory_space<vmem>>, vector<1x8x208xbf16>
    %27 = vector.shape_cast %26 : vector<1x8x208xbf16> to vector<8x208xbf16>
    %c1040 = arith.constant 1040 : index
    %c0_23 = arith.constant 0 : index
    %28 = vector.load %arg2[%c1040, %c0_23] : memref<1664x512xbf16, #tpu.memory_space<vmem>>, vector<208x512xbf16>
    %cst_24 = arith.constant dense<0.000000e+00> : vector<8x512xf32>
    %29 = tpu.matmul %27, %28, %cst_24 {dimension_numbers = #tpu.dot_dimension_numbers<[1], [0], [0], [1], [0, 0, 1, 1], [], []>} : vector<8x208xbf16>, vector<208x512xbf16>, vector<8x512xf32> -> vector<8x512xf32>
    %30 = arith.addf %25, %29 : vector<8x512xf32>
    %c6 = arith.constant 6 : index
    %c0_25 = arith.constant 0 : index
    %c0_26 = arith.constant 0 : index
    %31 = vector.load %arg1[%c6, %c0_25, %c0_26] : memref<8x8x208xbf16, #tpu.memory_space<vmem>>, vector<1x8x208xbf16>
    %32 = vector.shape_cast %31 : vector<1x8x208xbf16> to vector<8x208xbf16>
    %c1248 = arith.constant 1248 : index
    %c0_27 = arith.constant 0 : index
    %33 = vector.load %arg2[%c1248, %c0_27] : memref<1664x512xbf16, #tpu.memory_space<vmem>>, vector<208x512xbf16>
    %cst_28 = arith.constant dense<0.000000e+00> : vector<8x512xf32>
    %34 = tpu.matmul %32, %33, %cst_28 {dimension_numbers = #tpu.dot_dimension_numbers<[1], [0], [0], [1], [0, 0, 1, 1], [], []>} : vector<8x208xbf16>, vector<208x512xbf16>, vector<8x512xf32> -> vector<8x512xf32>
    %35 = arith.addf %30, %34 : vector<8x512xf32>
    %c7 = arith.constant 7 : index
    %c0_29 = arith.constant 0 : index
    %c0_30 = arith.constant 0 : index
    %36 = vector.load %arg1[%c7, %c0_29, %c0_30] : memref<8x8x208xbf16, #tpu.memory_space<vmem>>, vector<1x8x208xbf16>
    %37 = vector.shape_cast %36 : vector<1x8x208xbf16> to vector<8x208xbf16>
    %c1456 = arith.constant 1456 : index
    %c0_31 = arith.constant 0 : index
    %38 = vector.load %arg2[%c1456, %c0_31] : memref<1664x512xbf16, #tpu.memory_space<vmem>>, vector<208x512xbf16>
    %cst_32 = arith.constant dense<0.000000e+00> : vector<8x512xf32>
    %39 = tpu.matmul %37, %38, %cst_32 {dimension_numbers = #tpu.dot_dimension_numbers<[1], [0], [0], [1], [0, 0, 1, 1], [], []>} : vector<8x208xbf16>, vector<208x512xbf16>, vector<8x512xf32> -> vector<8x512xf32>
    %40 = arith.addf %35, %39 : vector<8x512xf32>
    %c0_33 = arith.constant 0 : index
    %c0_34 = arith.constant 0 : index
    %41 = vector.load %arg3[%c0_33, %c0_34] : memref<1x512xf32, #tpu.memory_space<vmem>>, vector<1x512xf32>
    %42 = vector.broadcast %41 : vector<1x512xf32> to vector<8x512xf32>
    %43 = arith.addf %40, %42 : vector<8x512xf32>
    %44 = arith.negf %43 : vector<8x512xf32>
    %45 = math.exp %44 : vector<8x512xf32>
    %cst_35 = arith.constant 1.000000e+00 : f32
    %46 = vector.broadcast %cst_35 : f32 to vector<8x512xf32>
    %47 = arith.addf %46, %45 : vector<8x512xf32>
    %48 = arith.divf %46, %47 : vector<8x512xf32>
    %c0_36 = arith.constant 0 : index
    %c0_37 = arith.constant 0 : index
    %49 = vector.load %arg4[%c0_36, %c0_37] : memref<8x512xf32, #tpu.memory_space<vmem>>, vector<8x512xf32>
    tpu.vector_store %arg4[%c0_36, %c0_37], %48 {strides = array<i32>} : memref<8x512xf32, #tpu.memory_space<vmem>>, vector<8x512xf32>,
    return
  }
  func.func @transform_0(%arg0: i32) -> (i32, i32, i32) {
    %c0_i32 = arith.constant 0 : i32
    %c0_i32_0 = arith.constant 0 : i32
    %c0_i32_1 = arith.constant 0 : i32
    %c0_i32_2 = arith.constant 0 : i32
    return %c0_i32, %c0_i32_0, %c0_i32_1 : i32, i32, i32
  }
  func.func @transform_1(%arg0: i32) -> (i32, i32) {
    %c0_i32 = arith.constant 0 : i32
    %c0_i32_0 = arith.constant 0 : i32
    return %c0_i32, %arg0 : i32, i32
  }
  func.func @transform_2(%arg0: i32) -> (i32, i32) {
    %c0_i32 = arith.constant 0 : i32
    %c0_i32_0 = arith.constant 0 : i32
    return %c0_i32, %arg0 : i32, i32
  }
  func.func @transform_3(%arg0: i32) -> (i32, i32) {
    %c0_i32 = arith.constant 0 : i32
    %c0_i32_0 = arith.constant 0 : i32
    return %c0_i32, %arg0 : i32, i32
  }
}

</mosaic_0001>

<llo_original>
// kernel: siamese_forward.2
$region0: #{siamese_forward.2}
  #allocation0 [shape = 'u32[]', space=smem, size = 0x4, offset = 0x4, fixed_abs, tag = 'smem constant byte address 0x4 - core index']
  #allocation1 [shape = 'u32[144,128]{1,0:T(1,128)}', space=vmem, size = 0x12000, scoped, tag = 'internal scratch']
  %s0 = inlined_call_operand.vmem [shape: f32[8,36], index: 0, kind: input, shape index: {}]
  %s1 = inlined_call_operand.vmem [shape: f32[36,1664], index: 1, kind: input, shape index: {}]
  %s2 = inlined_call_operand.vmem [shape: f32[8,1], index: 2, kind: input, shape index: {}]
  %s3 = inlined_call_operand.vmem [shape: bf16[8,1664], index: 3, kind: output, shape index: {}]
  %s4 = sld [smem:[#allocation0]]
  $region22: #{siamese_forward.2} parent=0
    _
  %s6 = ssub.s32 1, %s4
  %s7 = scalar_select 0, %s6, %s4
  // Predicated region
  $region2: #{siamese_forward.2} parent=0 // pred_check
    _
  $region3: #{siamese_forward.2} parent=0 // pred_check_branch
    %9 = sbr.rel (0) target = $region5
  $region4: #{siamese_forward.2} parent=0 // pred_region
    _
  $region5: #{siamese_forward.2} parent=0 // pred_fallthru
    _
  // Predicated region
  $region6: #{siamese_forward.2} parent=0 // pred_check
    _
  $region7: #{siamese_forward.2} parent=0 // pred_check_branch
    %11 = sbr.rel (0) target = $region9
  $region8: #{siamese_forward.2} parent=0 // pred_region
    _
  $region9: #{siamese_forward.2} parent=0 // pred_fallthru
    _
  // Predicated region
  $region10: #{siamese_forward.2} parent=0 // pred_check
    _
  $region11: #{siamese_forward.2} parent=0 // pred_check_branch
    %13 = sbr.rel (0) target = $region13
  $region12: #{siamese_forward.2} parent=0 // pred_region
    _
  $region13: #{siamese_forward.2} parent=0 // pred_fallthru
    _
  %v14 = vld [vmem:[%s0] sm:$0xff]
  %v15 = vld [vmem:[%s1] sm:$0xff]
  %v16 = vld [vmem:[%s1 + $0x8] sm:$0xff]
  %v17 = vld [vmem:[%s1 + $0x10] sm:$0xff]
  %v18 = vld [vmem:[%s1 + $0x18] sm:$0xff]
  %v19 = vld [vmem:[%s1 + $0x20] sm:$0xff]
  %v20 = vld [vmem:[%s1 + $0x28] sm:$0xff]
  %v21 = vld [vmem:[%s1 + $0x30] sm:$0xff]
  %v22 = vld [vmem:[%s1 + $0x38] sm:$0xff]
  %v23 = vld [vmem:[%s1 + $0x40] sm:$0xff]
  %v24 = vld [vmem:[%s1 + $0x48] sm:$0xff]
  %v25 = vld [vmem:[%s1 + $0x50] sm:$0xff]
  %v26 = vld [vmem:[%s1 + $0x58] sm:$0xff]
  %v27 = vld [vmem:[%s1 + $0x60] sm:$0xff]
  %v28 = vld [vmem:[%s1 + $0x68] sm:$0xff]
  %v29 = vld [vmem:[%s1 + $0x70] sm:$0xff]
  %v30 = vld [vmem:[%s1 + $0x78] sm:$0xff]
  %v31 = vld [vmem:[%s1 + $0x80] sm:$0xff]
  %v32 = vld [vmem:[%s1 + $0x88] sm:$0xff]
  %v33 = vld [vmem:[%s1 + $0x90] sm:$0xff]
  %v34 = vld [vmem:[%s1 + $0x98] sm:$0xff]
  %v35 = vld [vmem:[%s1 + $0xa0] sm:$0xff]
  %v36 = vld [vmem:[%s1 + $0xa8] sm:$0xff]
  %v37 = vld [vmem:[%s1 + $0xb0] sm:$0xff]
  %v38 = vld [vmem:[%s1 + $0xb8] sm:$0xff]
  %v39 = vld [vmem:[%s1 + $0xc0] sm:$0xff]
  %v40 = vld [vmem:[%s1 + $0xc8] sm:$0xff]
  %v41 = vld [vmem:[%s1 + $0xd0] sm:$0xff]
  %v42 = vld [vmem:[%s1 + $0xd8] sm:$0xff]
  %v43 = vld [vmem:[%s1 + $0xe0] sm:$0xff]
  %v44 = vld [vmem:[%s1 + $0xe8] sm:$0xff]
  %v45 = vld [vmem:[%s1 + $0xf0] sm:$0xff]
  %v46 = vld [vmem:[%s1 + $0xf8] sm:$0xff]
  %v47 = vld [vmem:[%s1 + $0x100] sm:$0xff]
  %v48 = vld [vmem:[%s1 + $0x108] sm:$0xff]
  %v49 = vld [vmem:[%s1 + $0x110] sm:$0xff]
  %v50 = vld [vmem:[%s1 + $0x118] sm:$0xff]
  %v51 = vld [vmem:[%s1 + $0x120] sm:$0xff]
  %v52 = vld [vmem:[%s1 + $0x128] sm:$0xff]
  %v53 = vld [vmem:[%s1 + $0x130] sm:$0xff]
  %v54 = vld [vmem:[%s1 + $0x138] sm:$0xff]
  %v55 = vld [vmem:[%s1 + $0x140] sm:$0xff]
  %v56 = vld [vmem:[%s1 + $0x148] sm:$0xff]
  %v57 = vld [vmem:[%s1 + $0x150] sm:$0xff]
  %v58 = vld [vmem:[%s1 + $0x158] sm:$0xff]
  %v59 = vld [vmem:[%s1 + $0x160] sm:$0xff]
  %v60 = vld [vmem:[%s1 + $0x168] sm:$0xff]
  %v61 = vld [vmem:[%s1 + $0x170] sm:$0xff]
  %v62 = vld [vmem:[%s1 + $0x178] sm:$0xff]
  %v63 = vld [vmem:[%s1 + $0x180] sm:$0xff]
  %v64 = vld [vmem:[%s1 + $0x188] sm:$0xff]
  %v65 = vld [vmem:[%s1 + $0x190] sm:$0xff]
  %v66 = vld [vmem:[%s1 + $0x198] sm:$0xff]
  %v67 = vld [vmem:[%s1 + $0x1a0] sm:$0xf]
  %v68 = vld [vmem:[%s1 + $0x1a8] sm:$0xf]
  %v69 = vld [vmem:[%s1 + $0x1b0] sm:$0xf]
  %v70 = vld [vmem:[%s1 + $0x1b8] sm:$0xf]
  %v71 = vld [vmem:[%s1 + $0x1c0] sm:$0xf]
  %v72 = vld [vmem:[%s1 + $0x1c8] sm:$0xf]
  %v73 = vld [vmem:[%s1 + $0x1d0] sm:$0xf]
  %v74 = vld [vmem:[%s1 + $0x1d8] sm:$0xf]
  %v75 = vld [vmem:[%s1 + $0x1e0] sm:$0xf]
  %v76 = vld [vmem:[%s1 + $0x1e8] sm:$0xf]
  %v77 = vld [vmem:[%s1 + $0x1f0] sm:$0xf]
  %v78 = vld [vmem:[%s1 + $0x1f8] sm:$0xf]
  %v79 = vld [vmem:[%s1 + $0x200] sm:$0xf]
  %v80 = vld [vmem:[%s2] sm:$0xff]
  %82 = vset.pattern.permute.xlu0 0
  %83 = vperm.xlu0 %82, %v80
  %v84 = vpop.permute.xlu0 %83
  %vm86 = vcmask 293888
  %v88 = vsel %vm86, %v14, 0
  %vm90 = vcmask 1043456
  %v92 = vsel %vm90, %v67, 0
  %v95 = vsel %vm90, %v68, 0
  %v98 = vsel %vm90, %v69, 0
  %v101 = vsel %vm90, %v70, 0
  %v104 = vsel %vm90, %v71, 0
  %v107 = vsel %vm90, %v72, 0
  %v110 = vsel %vm90, %v73, 0
  %v113 = vsel %vm90, %v74, 0
  %v116 = vsel %vm90, %v75, 0
  %v119 = vsel %vm90, %v76, 0
  %v122 = vsel %vm90, %v77, 0
  %v125 = vsel %vm90, %v78, 0
  %v128 = vsel %vm90, %v79, 0
  %130 = vmatprep.subr.mxu0 %v16
  %131 = vmatpush1.msra.mxu0 %v15
  %132 = vmatprep.subr.mxu0 %v29
  %133 = vmatpush1.msra.mxu0 %v28
  %134 = vmatprep.subr.mxu0 %v42
  %135 = vmatpush1.msra.mxu0 %v41
  %136 = vmatprep.subr.mxu0 %v55
  %137 = vmatpush1.msra.mxu0 %v54
  %138 = vmatprep.subr.mxu0 %v95
  %139 = vmatpush1.msra.mxu0 %v92
  %140 = vmatprep.subr.mxu0 0.0
  %141 = vmatpush1.msra.mxu0 0.0
  %142 = vmatprep.subr.mxu0 0.0
  %143 = vmatpush1.msra.mxu0 0.0
  %144 = vmatprep.subr.mxu0 0.0
  %145 = vmatpush1.msra.mxu0 0.0
  %146 = vmatprep.subr.mxu0 0.0
  %147 = vmatpush1.msra.mxu0 0.0
  %148 = vmatprep.subr.mxu0 0.0
  %149 = vmatpush1.msra.mxu0 0.0
  %150 = vmatprep.subr.mxu0 0.0
  %151 = vmatpush1.msra.mxu0 0.0
  %152 = vmatprep.subr.mxu0 0.0
  %153 = vmatpush1.msra.mxu0 0.0
  %154 = vmatprep.subr.mxu0 0.0
  %155 = vmatpush1.msra.mxu0 0.0
  %156 = vmatprep.subr.mxu0 0.0
  %157 = vmatpush1.msra.mxu0 0.0
  %158 = vmatprep.subr.mxu0 0.0
  %159 = vmatpush1.msra.mxu0 0.0
  %160 = vmatprep.subr.mxu0 0.0
  %161 = vmatpush1.msra.mxu0 0.0
  %162 = vmatprep.subr.mxu0 0.0
  %163 = vmatpush1.msra.mxu0 0.0
  %164 = vmatprep.subr.mxu0 0.0
  %165 = vmatpush1.msra.mxu0 0.0
  %166 = vmatprep.subr.mxu0 0.0
  %167 = vmatpush1.msra.mxu0 0.0
  %168 = vmatprep.subr.mxu0 0.0
  %169 = vmatpush1.msra.mxu0 0.0
  %170 = vmatprep.subr.mxu0 0.0
  %171 = vmatpush1.msra.mxu0 0.0
  %172 = vmatprep.subr.mxu0 0.0
  %173 = vmatpush1.msra.mxu0 0.0
  %174 = vmatprep.subr.mxu0 0.0
  %175 = vmatpush1.msra.mxu0 0.0
  %176 = vmatprep.subr.mxu0 0.0
  %177 = vmatpush1.msra.mxu0 0.0
  %178 = vmatprep.subr.mxu0 0.0
  %179 = vmatpush1.msra.mxu0 0.0
  %180 = vmatprep.subr.mxu0 0.0
  %181 = vmatpush1.msra.mxu0 0.0
  %182 = vmatprep.subr.mxu0 0.0
  %183 = vmatpush1.msra.mxu0 0.0
  %184 = vmatprep.subr.mxu0 0.0
  %185 = vmatpush1.msra.mxu0 0.0
  %186 = vmatprep.subr.mxu0 0.0
  %187 = vmatpush1.msra.mxu0 0.0
  %188 = vmatprep.subr.mxu0 0.0
  %189 = vmatpush1.msra.mxu0 0.0
  %190 = vmatprep.subr.mxu0 0.0
  %191 = vmatpush1.msra.mxu0 0.0
  %192 = vmatprep.subr.mxu0 0.0
  %193 = vmatpush1.msra.mxu0 0.0
  %194 = vmatprep.mubr.f32.mxu0 0.0
  %195 = vmatmul.mubr.f32.gmra.mrb[0].mxu0 %v88
  %v196 = vpop.f32.mrb[0].mxu0
  %v197 = vadd.f32 %v84, %v196
  %v198 = vpop.f32.mrb[0].mxu0
  %v199 = vadd.f32 %v84, %v198
  %200 = vdwg.mxu0
  %201 = vmatprep.subr.mxu0 %v18
  %202 = vmatpush1.msra.mxu0 %v17
  %203 = vmatprep.subr.mxu0 %v31
  %204 = vmatpush1.msra.mxu0 %v30
  %205 = vmatprep.subr.mxu0 %v44
  %206 = vmatpush1.msra.mxu0 %v43
  %207 = vmatprep.subr.mxu0 %v57
  %208 = vmatpush1.msra.mxu0 %v56
  %209 = vmatprep.subr.mxu0 %v101
  %210 = vmatpush1.msra.mxu0 %v98
  %211 = vmatprep.subr.mxu0 0.0
  %212 = vmatpush1.msra.mxu0 0.0
  %213 = vmatprep.subr.mxu0 0.0
  %214 = vmatpush1.msra.mxu0 0.0
  %215 = vmatprep.subr.mxu0 0.0
  %216 = vmatpush1.msra.mxu0 0.0
  %217 = vmatprep.subr.mxu0 0.0
  %218 = vmatpush1.msra.mxu0 0.0
  %219 = vmatprep.subr.mxu0 0.0
  %220 = vmatpush1.msra.mxu0 0.0
  %221 = vmatprep.subr.mxu0 0.0
  %222 = vmatpush1.msra.mxu0 0.0
  %223 = vmatprep.subr.mxu0 0.0
  %224 = vmatpush1.msra.mxu0 0.0
  %225 = vmatprep.subr.mxu0 0.0
  %226 = vmatpush1.msra.mxu0 0.0
  %227 = vmatprep.subr.mxu0 0.0
  %228 = vmatpush1.msra.mxu0 0.0
  %229 = vmatprep.subr.mxu0 0.0
  %230 = vmatpush1.msra.mxu0 0.0
  %231 = vmatprep.subr.mxu0 0.0
  %232 = vmatpush1.msra.mxu0 0.0
  %233 = vmatprep.subr.mxu0 0.0
  %234 = vmatpush1.msra.mxu0 0.0
  %235 = vmatprep.subr.mxu0 0.0
  %236 = vmatpush1.msra.mxu0 0.0
  %237 = vmatprep.subr.mxu0 0.0
  %238 = vmatpush1.msra.mxu0 0.0
  %239 = vmatprep.subr.mxu0 0.0
  %240 = vmatpush1.msra.mxu0 0.0
  %241 = vmatprep.subr.mxu0 0.0
  %242 = vmatpush1.msra.mxu0 0.0
  %243 = vmatprep.subr.mxu0 0.0
  %244 = vmatpush1.msra.mxu0 0.0
  %245 = vmatprep.subr.mxu0 0.0
  %246 = vmatpush1.msra.mxu0 0.0
  %247 = vmatprep.subr.mxu0 0.0
  %248 = vmatpush1.msra.mxu0 0.0
  %249 = vmatprep.subr.mxu0 0.0
  %250 = vmatpush1.msra.mxu0 0.0
  %251 = vmatprep.subr.mxu0 0.0
  %252 = vmatpush1.msra.mxu0 0.0
  %253 = vmatprep.subr.mxu0 0.0
  %254 = vmatpush1.msra.mxu0 0.0
  %255 = vmatprep.subr.mxu0 0.0
  %256 = vmatpush1.msra.mxu0 0.0
  %257 = vmatprep.subr.mxu0 0.0
  %258 = vmatpush1.msra.mxu0 0.0
  %259 = vmatprep.subr.mxu0 0.0
  %260 = vmatpush1.msra.mxu0 0.0
  %261 = vmatprep.subr.mxu0 0.0
  %262 = vmatpush1.msra.mxu0 0.0
  %263 = vmatprep.subr.mxu0 0.0
  %264 = vmatpush1.msra.mxu0 0.0
  %265 = vmatprep.mubr.f32.mxu0 0.0
  %266 = vmatmul.mubr.f32.gmra.mrb[0].mxu0 %v88
  %v267 = vpop.f32.mrb[0].mxu0
  %v268 = vadd.f32 %v84, %v267
  %v269 = vpop.f32.mrb[0].mxu0
  %v270 = vadd.f32 %v84, %v269
  %271 = vdwg.mxu0
  %272 = vmatprep.subr.mxu0 %v20
  %273 = vmatpush1.msra.mxu0 %v19
  %274 = vmatprep.subr.mxu0 %v33
  %275 = vmatpush1.msra.mxu0 %v32
  %276 = vmatprep.subr.mxu0 %v46
  %277 = vmatpush1.msra.mxu0 %v45
  %278 = vmatprep.subr.mxu0 %v59
  %279 = vmatpush1.msra.mxu0 %v58
  %280 = vmatprep.subr.mxu0 %v107
  %281 = vmatpush1.msra.mxu0 %v104
  %282 = vmatprep.subr.mxu0 0.0
  %283 = vmatpush1.msra.mxu0 0.0
  %284 = vmatprep.subr.mxu0 0.0
  %285 = vmatpush1.msra.mxu0 0.0
  %286 = vmatprep.subr.mxu0 0.0
  %287 = vmatpush1.msra.mxu0 0.0
  %288 = vmatprep.subr.mxu0 0.0
  %289 = vmatpush1.msra.mxu0 0.0
  %290 = vmatprep.subr.mxu0 0.0
  %291 = vmatpush1.msra.mxu0 0.0
  %292 = vmatprep.subr.mxu0 0.0
  %293 = vmatpush1.msra.mxu0 0.0
  %294 = vmatprep.subr.mxu0 0.0
  %295 = vmatpush1.msra.mxu0 0.0
  %296 = vmatprep.subr.mxu0 0.0
  %297 = vmatpush1.msra.mxu0 0.0
  %298 = vmatprep.subr.mxu0 0.0
  %299 = vmatpush1.msra.mxu0 0.0
  %300 = vmatprep.subr.mxu0 0.0
  %301 = vmatpush1.msra.mxu0 0.0
  %302 = vmatprep.subr.mxu0 0.0
  %303 = vmatpush1.msra.mxu0 0.0
  %304 = vmatprep.subr.mxu0 0.0
  %305 = vmatpush1.msra.mxu0 0.0
  %306 = vmatprep.subr.mxu0 0.0
  %307 = vmatpush1.msra.mxu0 0.0
  %308 = vmatprep.subr.mxu0 0.0
  %309 = vmatpush1.msra.mxu0 0.0
  %310 = vmatprep.subr.mxu0 0.0
  %311 = vmatpush1.msra.mxu0 0.0
  %312 = vmatprep.subr.mxu0 0.0
  %313 = vmatpush1.msra.mxu0 0.0
  %314 = vmatprep.subr.mxu0 0.0
  %315 = vmatpush1.msra.mxu0 0.0
  %316 = vmatprep.subr.mxu0 0.0
  %317 = vmatpush1.msra.mxu0 0.0
  %318 = vmatprep.subr.mxu0 0.0
  %319 = vmatpush1.msra.mxu0 0.0
  %320 = vmatprep.subr.mxu0 0.0
  %321 = vmatpush1.msra.mxu0 0.0
  %322 = vmatprep.subr.mxu0 0.0
  %323 = vmatpush1.msra.mxu0 0.0
  %324 = vmatprep.subr.mxu0 0.0
  %325 = vmatpush1.msra.mxu0 0.0
  %326 = vmatprep.subr.mxu0 0.0
  %327 = vmatpush1.msra.mxu0 0.0
  %328 = vmatprep.subr.mxu0 0.0
  %329 = vmatpush1.msra.mxu0 0.0
  %330 = vmatprep.subr.mxu0 0.0
  %331 = vmatpush1.msra.mxu0 0.0
  %332 = vmatprep.subr.mxu0 0.0
  %333 = vmatpush1.msra.mxu0 0.0
  %334 = vmatprep.subr.mxu0 0.0
  %335 = vmatpush1.msra.mxu0 0.0
  %336 = vmatprep.mubr.f32.mxu0 0.0
  %337 = vmatmul.mubr.f32.gmra.mrb[0].mxu0 %v88
  %v338 = vpop.f32.mrb[0].mxu0
  %v339 = vadd.f32 %v84, %v338
  %v340 = vpop.f32.mrb[0].mxu0
  %v341 = vadd.f32 %v84, %v340
  %342 = vdwg.mxu0
  %343 = vmatprep.subr.mxu0 %v22
  %344 = vmatpush1.msra.mxu0 %v21
  %345 = vmatprep.subr.mxu0 %v35
  %346 = vmatpush1.msra.mxu0 %v34
  %347 = vmatprep.subr.mxu0 %v48
  %348 = vmatpush1.msra.mxu0 %v47
  %349 = vmatprep.subr.mxu0 %v61
  %350 = vmatpush1.msra.mxu0 %v60
  %351 = vmatprep.subr.mxu0 %v113
  %352 = vmatpush1.msra.mxu0 %v110
  %353 = vmatprep.subr.mxu0 0.0
  %354 = vmatpush1.msra.mxu0 0.0
  %355 = vmatprep.subr.mxu0 0.0
  %356 = vmatpush1.msra.mxu0 0.0
  %357 = vmatprep.subr.mxu0 0.0
  %358 = vmatpush1.msra.mxu0 0.0
  %359 = vmatprep.subr.mxu0 0.0
  %360 = vmatpush1.msra.mxu0 0.0
  %361 = vmatprep.subr.mxu0 0.0
  %362 = vmatpush1.msra.mxu0 0.0
  %363 = vmatprep.subr.mxu0 0.0
  %364 = vmatpush1.msra.mxu0 0.0
  %365 = vmatprep.subr.mxu0 0.0
  %366 = vmatpush1.msra.mxu0 0.0
  %367 = vmatprep.subr.mxu0 0.0
  %368 = vmatpush1.msra.mxu0 0.0
  %369 = vmatprep.subr.mxu0 0.0
  %370 = vmatpush1.msra.mxu0 0.0
  %371 = vmatprep.subr.mxu0 0.0
  %372 = vmatpush1.msra.mxu0 0.0
  %373 = vmatprep.subr.mxu0 0.0
  %374 = vmatpush1.msra.mxu0 0.0
  %375 = vmatprep.subr.mxu0 0.0
  %376 = vmatpush1.msra.mxu0 0.0
  %377 = vmatprep.subr.mxu0 0.0
  %378 = vmatpush1.msra.mxu0 0.0
  %379 = vmatprep.subr.mxu0 0.0
  %380 = vmatpush1.msra.mxu0 0.0
  %381 = vmatprep.subr.mxu0 0.0
  %382 = vmatpush1.msra.mxu0 0.0
  %383 = vmatprep.subr.mxu0 0.0
  %384 = vmatpush1.msra.mxu0 0.0
  %385 = vmatprep.subr.mxu0 0.0
  %386 = vmatpush1.msra.mxu0 0.0
  %387 = vmatprep.subr.mxu0 0.0
  %388 = vmatpush1.msra.mxu0 0.0
  %389 = vmatprep.subr.mxu0 0.0
  %390 = vmatpush1.msra.mxu0 0.0
  %391 = vmatprep.subr.mxu0 0.0
  %392 = vmatpush1.msra.mxu0 0.0
  %393 = vmatprep.subr.mxu0 0.0
  %394 = vmatpush1.msra.mxu0 0.0
  %395 = vmatprep.subr.mxu0 0.0
  %396 = vmatpush1.msra.mxu0 0.0
  %397 = vmatprep.subr.mxu0 0.0
  %398 = vmatpush1.msra.mxu0 0.0
  %399 = vmatprep.subr.mxu0 0.0
  %400 = vmatpush1.msra.mxu0 0.0
  %401 = vmatprep.subr.mxu0 0.0
  %402 = vmatpush1.msra.mxu0 0.0
  %403 = vmatprep.subr.mxu0 0.0
  %404 = vmatpush1.msra.mxu0 0.0
  %405 = vmatprep.subr.mxu0 0.0
  %406 = vmatpush1.msra.mxu0 0.0
  %407 = vmatprep.mubr.f32.mxu0 0.0
  %408 = vmatmul.mubr.f32.gmra.mrb[0].mxu0 %v88
  %v409 = vpop.f32.mrb[0].mxu0
  %v410 = vadd.f32 %v84, %v409
  %v411 = vpop.f32.mrb[0].mxu0
  %v412 = vadd.f32 %v84, %v411
  %413 = vdwg.mxu0
  %414 = vmatprep.subr.mxu0 %v24
  %415 = vmatpush1.msra.mxu0 %v23
  %416 = vmatprep.subr.mxu0 %v37
  %417 = vmatpush1.msra.mxu0 %v36
  %418 = vmatprep.subr.mxu0 %v50
  %419 = vmatpush1.msra.mxu0 %v49
  %420 = vmatprep.subr.mxu0 %v63
  %421 = vmatpush1.msra.mxu0 %v62
  %422 = vmatprep.subr.mxu0 %v119
  %423 = vmatpush1.msra.mxu0 %v116
  %424 = vmatprep.subr.mxu0 0.0
  %425 = vmatpush1.msra.mxu0 0.0
  %426 = vmatprep.subr.mxu0 0.0
  %427 = vmatpush1.msra.mxu0 0.0
  %428 = vmatprep.subr.mxu0 0.0
  %429 = vmatpush1.msra.mxu0 0.0
  %430 = vmatprep.subr.mxu0 0.0
  %431 = vmatpush1.msra.mxu0 0.0
  %432 = vmatprep.subr.mxu0 0.0
  %433 = vmatpush1.msra.mxu0 0.0
  %434 = vmatprep.subr.mxu0 0.0
  %435 = vmatpush1.msra.mxu0 0.0
  %436 = vmatprep.subr.mxu0 0.0
  %437 = vmatpush1.msra.mxu0 0.0
  %438 = vmatprep.subr.mxu0 0.0
  %439 = vmatpush1.msra.mxu0 0.0
  %440 = vmatprep.subr.mxu0 0.0
  %441 = vmatpush1.msra.mxu0 0.0
  %442 = vmatprep.subr.mxu0 0.0
  %443 = vmatpush1.msra.mxu0 0.0
  %444 = vmatprep.subr.mxu0 0.0
  %445 = vmatpush1.msra.mxu0 0.0
  %446 = vmatprep.subr.mxu0 0.0
  %447 = vmatpush1.msra.mxu0 0.0
  %448 = vmatprep.subr.mxu0 0.0
  %449 = vmatpush1.msra.mxu0 0.0
  %450 = vmatprep.subr.mxu0 0.0
  %451 = vmatpush1.msra.mxu0 0.0
  %452 = vmatprep.subr.mxu0 0.0
  %453 = vmatpush1.msra.mxu0 0.0
  %454 = vmatprep.subr.mxu0 0.0
  %455 = vmatpush1.msra.mxu0 0.0
  %456 = vmatprep.subr.mxu0 0.0
  %457 = vmatpush1.msra.mxu0 0.0
  %458 = vmatprep.subr.mxu0 0.0
  %459 = vmatpush1.msra.mxu0 0.0
  %460 = vmatprep.subr.mxu0 0.0
  %461 = vmatpush1.msra.mxu0 0.0
  %462 = vmatprep.subr.mxu0 0.0
  %463 = vmatpush1.msra.mxu0 0.0
  %464 = vmatprep.subr.mxu0 0.0
  %465 = vmatpush1.msra.mxu0 0.0
  %466 = vmatprep.subr.mxu0 0.0
  %467 = vmatpush1.msra.mxu0 0.0
  %468 = vmatprep.subr.mxu0 0.0
  %469 = vmatpush1.msra.mxu0 0.0
  %470 = vmatprep.subr.mxu0 0.0
  %471 = vmatpush1.msra.mxu0 0.0
  %472 = vmatprep.subr.mxu0 0.0
  %473 = vmatpush1.msra.mxu0 0.0
  %474 = vmatprep.subr.mxu0 0.0
  %475 = vmatpush1.msra.mxu0 0.0
  %476 = vmatprep.subr.mxu0 0.0
  %477 = vmatpush1.msra.mxu0 0.0
  %478 = vmatprep.mubr.f32.mxu0 0.0
  %479 = vmatmul.mubr.f32.gmra.mrb[0].mxu0 %v88
  %v480 = vpop.f32.mrb[0].mxu0
  %v481 = vadd.f32 %v84, %v480
  %v482 = vpop.f32.mrb[0].mxu0
  %v483 = vadd.f32 %v84, %v482
  %484 = vdwg.mxu0
  %485 = vmatprep.subr.mxu0 %v26
  %486 = vmatpush1.msra.mxu0 %v25
  %487 = vmatprep.subr.mxu0 %v39
  %488 = vmatpush1.msra.mxu0 %v38
  %489 = vmatprep.subr.mxu0 %v52
  %490 = vmatpush1.msra.mxu0 %v51
  %491 = vmatprep.subr.mxu0 %v65
  %492 = vmatpush1.msra.mxu0 %v64
  %493 = vmatprep.subr.mxu0 %v125
  %494 = vmatpush1.msra.mxu0 %v122
  %495 = vmatprep.subr.mxu0 0.0
  %496 = vmatpush1.msra.mxu0 0.0
  %497 = vmatprep.subr.mxu0 0.0
  %498 = vmatpush1.msra.mxu0 0.0
  %499 = vmatprep.subr.mxu0 0.0
  %500 = vmatpush1.msra.mxu0 0.0
  %501 = vmatprep.subr.mxu0 0.0
  %502 = vmatpush1.msra.mxu0 0.0
  %503 = vmatprep.subr.mxu0 0.0
  %504 = vmatpush1.msra.mxu0 0.0
  %505 = vmatprep.subr.mxu0 0.0
  %506 = vmatpush1.msra.mxu0 0.0
  %507 = vmatprep.subr.mxu0 0.0
  %508 = vmatpush1.msra.mxu0 0.0
  %509 = vmatprep.subr.mxu0 0.0
  %510 = vmatpush1.msra.mxu0 0.0
  %511 = vmatprep.subr.mxu0 0.0
  %512 = vmatpush1.msra.mxu0 0.0
  %513 = vmatprep.subr.mxu0 0.0
  %514 = vmatpush1.msra.mxu0 0.0
  %515 = vmatprep.subr.mxu0 0.0
  %516 = vmatpush1.msra.mxu0 0.0
  %517 = vmatprep.subr.mxu0 0.0
  %518 = vmatpush1.msra.mxu0 0.0
  %519 = vmatprep.subr.mxu0 0.0
  %520 = vmatpush1.msra.mxu0 0.0
  %521 = vmatprep.subr.mxu0 0.0
  %522 = vmatpush1.msra.mxu0 0.0
  %523 = vmatprep.subr.mxu0 0.0
  %524 = vmatpush1.msra.mxu0 0.0
  %525 = vmatprep.subr.mxu0 0.0
  %526 = vmatpush1.msra.mxu0 0.0
  %527 = vmatprep.subr.mxu0 0.0
  %528 = vmatpush1.msra.mxu0 0.0
  %529 = vmatprep.subr.mxu0 0.0
  %530 = vmatpush1.msra.mxu0 0.0
  %531 = vmatprep.subr.mxu0 0.0
  %532 = vmatpush1.msra.mxu0 0.0
  %533 = vmatprep.subr.mxu0 0.0
  %534 = vmatpush1.msra.mxu0 0.0
  %535 = vmatprep.subr.mxu0 0.0
  %536 = vmatpush1.msra.mxu0 0.0
  %537 = vmatprep.subr.mxu0 0.0
  %538 = vmatpush1.msra.mxu0 0.0
  %539 = vmatprep.subr.mxu0 0.0
  %540 = vmatpush1.msra.mxu0 0.0
  %541 = vmatprep.subr.mxu0 0.0
  %542 = vmatpush1.msra.mxu0 0.0
  %543 = vmatprep.subr.mxu0 0.0
  %544 = vmatpush1.msra.mxu0 0.0
  %545 = vmatprep.subr.mxu0 0.0
  %546 = vmatpush1.msra.mxu0 0.0
  %547 = vmatprep.subr.mxu0 0.0
  %548 = vmatpush1.msra.mxu0 0.0
  %549 = vmatprep.mubr.f32.mxu0 0.0
  %550 = vmatmul.mubr.f32.gmra.mrb[0].mxu0 %v88
  %v551 = vpop.f32.mrb[0].mxu0
  %v552 = vadd.f32 %v84, %v551
  %v553 = vpop.f32.mrb[0].mxu0
  %v554 = vadd.f32 %v84, %v553
  %555 = vdwg.mxu0
  %556 = vmatprep.subr.mxu0 0.0
  %557 = vmatpush1.msra.mxu0 %v27
  %558 = vmatprep.subr.mxu0 0.0
  %559 = vmatpush1.msra.mxu0 %v40
  %560 = vmatprep.subr.mxu0 0.0
  %561 = vmatpush1.msra.mxu0 %v53
  %562 = vmatprep.subr.mxu0 0.0
  %563 = vmatpush1.msra.mxu0 %v66
  %564 = vmatprep.subr.mxu0 0.0
  %565 = vmatpush1.msra.mxu0 %v128
  %566 = vmatprep.subr.mxu0 0.0
  %567 = vmatpush1.msra.mxu0 0.0
  %568 = vmatprep.subr.mxu0 0.0
  %569 = vmatpush1.msra.mxu0 0.0
  %570 = vmatprep.subr.mxu0 0.0
  %571 = vmatpush1.msra.mxu0 0.0
  %572 = vmatprep.subr.mxu0 0.0
  %573 = vmatpush1.msra.mxu0 0.0
  %574 = vmatprep.subr.mxu0 0.0
  %575 = vmatpush1.msra.mxu0 0.0
  %576 = vmatprep.subr.mxu0 0.0
  %577 = vmatpush1.msra.mxu0 0.0
  %578 = vmatprep.subr.mxu0 0.0
  %579 = vmatpush1.msra.mxu0 0.0
  %580 = vmatprep.subr.mxu0 0.0
  %581 = vmatpush1.msra.mxu0 0.0
  %582 = vmatprep.subr.mxu0 0.0
  %583 = vmatpush1.msra.mxu0 0.0
  %584 = vmatprep.subr.mxu0 0.0
  %585 = vmatpush1.msra.mxu0 0.0
  %586 = vmatprep.subr.mxu0 0.0
  %587 = vmatpush1.msra.mxu0 0.0
  %588 = vmatprep.subr.mxu0 0.0
  %589 = vmatpush1.msra.mxu0 0.0
  %590 = vmatprep.subr.mxu0 0.0
  %591 = vmatpush1.msra.mxu0 0.0
  %592 = vmatprep.subr.mxu0 0.0
  %593 = vmatpush1.msra.mxu0 0.0
  %594 = vmatprep.subr.mxu0 0.0
  %595 = vmatpush1.msra.mxu0 0.0
  %596 = vmatprep.subr.mxu0 0.0
  %597 = vmatpush1.msra.mxu0 0.0
  %598 = vmatprep.subr.mxu0 0.0
  %599 = vmatpush1.msra.mxu0 0.0
  %600 = vmatprep.subr.mxu0 0.0
  %601 = vmatpush1.msra.mxu0 0.0
  %602 = vmatprep.subr.mxu0 0.0
  %603 = vmatpush1.msra.mxu0 0.0
  %604 = vmatprep.subr.mxu0 0.0
  %605 = vmatpush1.msra.mxu0 0.0
  %606 = vmatprep.subr.mxu0 0.0
  %607 = vmatpush1.msra.mxu0 0.0
  %608 = vmatprep.subr.mxu0 0.0
  %609 = vmatpush1.msra.mxu0 0.0
  %610 = vmatprep.subr.mxu0 0.0
  %611 = vmatpush1.msra.mxu0 0.0
  %612 = vmatprep.subr.mxu0 0.0
  %613 = vmatpush1.msra.mxu0 0.0
  %614 = vmatprep.subr.mxu0 0.0
  %615 = vmatpush1.msra.mxu0 0.0
  %616 = vmatprep.subr.mxu0 0.0
  %617 = vmatpush1.msra.mxu0 0.0
  %618 = vmatprep.subr.mxu0 0.0
  %619 = vmatpush1.msra.mxu0 0.0
  %620 = vmatprep.mubr.f32.mxu0 0.0
  %621 = vmatmul.mubr.f32.gmra.mrb[0].mxu0 %v88
  %v622 = vpop.f32.mrb[0].mxu0
  %v623 = vadd.f32 %v84, %v622
  %v624 = vpop.f32.mrb[0].mxu0
  %625 = vdwg.mxu0
  %v626 = vmax.f32 %v197, 0.0
  %v627 = vmax.f32 %v199, 0.0
  %v628 = vmax.f32 %v268, 0.0
  %v629 = vmax.f32 %v270, 0.0
  %v630 = vmax.f32 %v339, 0.0
  %v631 = vmax.f32 %v341, 0.0
  %v632 = vmax.f32 %v410, 0.0
  %v633 = vmax.f32 %v412, 0.0
  %v634 = vmax.f32 %v481, 0.0
  %v635 = vmax.f32 %v483, 0.0
  %v636 = vmax.f32 %v552, 0.0
  %v637 = vmax.f32 %v554, 0.0
  %v638 = vmax.f32 %v623, 0.0
  %v639 = vpack.c.bf16 %v626, %v626
  %v640 = vpack.c.bf16 %v627, %v627
  %v641 = vpack.c.bf16 %v628, %v628
  %v642 = vpack.c.bf16 %v629, %v629
  %v643 = vpack.c.bf16 %v630, %v630
  %v644 = vpack.c.bf16 %v631, %v631
  %v645 = vpack.c.bf16 %v632, %v632
  %v646 = vpack.c.bf16 %v633, %v633
  %v647 = vpack.c.bf16 %v634, %v634
  %v648 = vpack.c.bf16 %v635, %v635
  %v649 = vpack.c.bf16 %v636, %v636
  %v650 = vpack.c.bf16 %v637, %v637
  %v651 = vpack.c.bf16 %v638, %v638
  %v665 = vunpack.c.l.b16 %v639
  %v666 = vunpack.c.l.b16 %v640
  %v667 = vunpack.c.l.b16 %v641
  %v668 = vunpack.c.l.b16 %v642
  %v669 = vunpack.c.l.b16 %v643
  %v670 = vunpack.c.l.b16 %v644
  %v671 = vunpack.c.l.b16 %v645
  %v672 = vunpack.c.l.b16 %v646
  %v673 = vunpack.c.l.b16 %v647
  %v674 = vunpack.c.l.b16 %v648
  %v675 = vunpack.c.l.b16 %v649
  %v676 = vunpack.c.l.b16 %v650
  %v677 = vunpack.c.l.b16 %v651
  %v678 = vpack.c.b16 %v666, %v665
  %v679 = vpack.c.b16 %v668, %v667
  %v680 = vpack.c.b16 %v670, %v669
  %v681 = vpack.c.b16 %v672, %v671
  %v682 = vpack.c.b16 %v674, %v673
  %v683 = vpack.c.b16 %v676, %v675
  %v684 = vpack.c.b16 %v677, %v677
  %692 = vst [vmem:[%s3] sm:$0xff] %v678
  %693 = vst [vmem:[%s3 + $0x8] sm:$0xff] %v679
  %694 = vst [vmem:[%s3 + $0x10] sm:$0xff] %v680
  %695 = vst [vmem:[%s3 + $0x18] sm:$0xff] %v681
  %696 = vst [vmem:[%s3 + $0x20] sm:$0xff] %v682
  %697 = vst [vmem:[%s3 + $0x28] sm:$0xff] %v683
  %698 = vst [vmem:[%s3 + $0x30] sm:$0xf] %v684
  // Predicated region
  $region14: #{siamese_forward.2} parent=0 // pred_check
    _
  $region15: #{siamese_forward.2} parent=0 // pred_check_branch
    %700 = sbr.rel (0) target = $region17
  $region16: #{siamese_forward.2} parent=0 // pred_region
    _
  $region17: #{siamese_forward.2} parent=0 // pred_fallthru
    _
  // Predicated region
  $region18: #{siamese_forward.2} parent=0 // pred_check
    _
  $region19: #{siamese_forward.2} parent=0 // pred_check_branch
    %702 = sbr.rel (0) target = $region21
  $region20: #{siamese_forward.2} parent=0 // pred_region
    _
  $region21: #{siamese_forward.2} parent=0 // pred_fallthru
    _

// kernel: siamese_forward.3
$region0: #{siamese_forward.3}
  #allocation0 [shape = 'u32[]', space=smem, size = 0x4, offset = 0x4, fixed_abs, tag = 'smem constant byte address 0x4 - core index']
  #allocation1 [shape = 'u32[144,128]{1,0:T(1,128)}', space=vmem, size = 0x12000, scoped, tag = 'internal scratch']
  %s0 = inlined_call_operand.vmem [shape: bf16[8,8,208], index: 0, kind: input, shape index: {}]
  %s1 = inlined_call_operand.vmem [shape: bf16[1664,2048], index: 1, kind: input, shape index: {}]
  %s2 = inlined_call_operand.vmem [shape: f32[1,2048], index: 2, kind: input, shape index: {}]
  %s3 = inlined_call_operand.vmem [shape: f32[8,2048], index: 3, kind: output, shape index: {}]
  %s4 = sld [smem:[#allocation0]]
  $region68: #{siamese_forward.3} parent=0
    _
  %s6 = ssub.s32 1, %s4
  %s7 = scalar_select 0, %s6, %s4
  $region1: #{siamese_forward.3} parent=0
    #allocation2 [shape = 'u8[3407872]{0}', space=vmem, size = 0x340000, scoped, tag = 'input window, operand 1']
    loop: start=0, step=1, limit=6
    $region2: #{siamese_forward.3} parent=1 // loop_pre_header
      _
    $region3: #{siamese_forward.3} parent=1 // loop_header
      %s9 = sphi 0, %s13
      %p10 = scmp.ge.s32.totalorder %s9, 6
      %s17 = sphi 0, %s17
      %s19 = sphi 0, %s17
      %s20 = sphi 0, %s19
      %s34 = sphi 0, %s20
      %s40 = sphi 0, %s42
      %s43 = sphi 0, %s40
      %s44 = sphi 0, %s43
      %s60 = sphi 0, %s44
      %s66 = sphi 0, %s68
      %s69 = sphi 0, %s66
      %s70 = sphi 0, %s69
      %s86 = sphi 0, %s70
      %s92 = sphi 0, %s94
      %s95 = sphi 0, %s92
      %s96 = sphi 0, %s95
      %s112 = sphi 0, %s96
    $region4: #{siamese_forward.3} parent=1 // loop_header_branch
      %12 = sbr.rel (%p10) target = $region8
    $region5: #{siamese_forward.3} parent=1 // loop_body
      %s14 = ssub.s32 %s9, 1
      %s15 = ssub.s32 %s9, 2
      %s16 = sadd.s32 %s9, 1
      %s18 = sadd.s32 %s17, 1
      %p21 = scmp.eq.s32.totalorder %s9, 3
      %p22 = scmp.ne.s32.totalorder %s17, %s19
      %p23 = scmp.eq.s32.totalorder %s9, 0
      %p24 = por %p22, %p23
      %p25 = scmp.ne.s32.totalorder %s17, %s19
      %p26 = scmp.eq.s32.totalorder %s14, 3
      %p27 = por %p25, %p26
      %p28 = scmp.ne.s32.totalorder %s19, %s20
      %p29 = scmp.eq.s32.totalorder %s14, 0
      %p30 = por %p28, %p29
      %p31 = scmp.ne.s32.totalorder %s19, %s20
      %p32 = scmp.eq.s32.totalorder %s15, 3
      %p33 = por %p31, %p32
      %p35 = scmp.ne.s32.totalorder %s20, %s34
      %p36 = scmp.eq.s32.totalorder %s15, 0
      %p37 = por %p35, %p36
      %s38 = ssub.s32 %s9, %s16
      %p39 = scmp.eq.s32.totalorder %s38, 0
      %s41 = sadd.s32 %s40, 1
      %s42 = scalar_select %p39, %s40, %s41
      %p45 = pneg %p39
      %p46 = scmp.eq.s32.totalorder %s9, 3
      %p47 = por %p45, %p46
      %p48 = scmp.ne.s32.totalorder %s40, %s43
      %p49 = scmp.eq.s32.totalorder %s9, 0
      %p50 = por %p48, %p49
      %p51 = scmp.ne.s32.totalorder %s40, %s43
      %p52 = scmp.eq.s32.totalorder %s14, 3
      %p53 = por %p51, %p52
      %p54 = scmp.ne.s32.totalorder %s43, %s44
      %p55 = scmp.eq.s32.totalorder %s14, 0
      %p56 = por %p54, %p55
      %p57 = scmp.ne.s32.totalorder %s43, %s44
      %p58 = scmp.eq.s32.totalorder %s15, 3
      %p59 = por %p57, %p58
      %p61 = scmp.ne.s32.totalorder %s44, %s60
      %p62 = scmp.eq.s32.totalorder %s15, 0
      %p63 = por %p61, %p62
      %s64 = ssub.s32 %s9, %s16
      %p65 = scmp.eq.s32.totalorder %s64, 0
      %s67 = sadd.s32 %s66, 1
      %s68 = scalar_select %p65, %s66, %s67
      %p71 = pneg %p65
      %p72 = scmp.eq.s32.totalorder %s9, 3
      %p73 = por %p71, %p72
      %p74 = scmp.ne.s32.totalorder %s66, %s69
      %p75 = scmp.eq.s32.totalorder %s9, 0
      %p76 = por %p74, %p75
      %p77 = scmp.ne.s32.totalorder %s66, %s69
      %p78 = scmp.eq.s32.totalorder %s14, 3
      %p79 = por %p77, %p78
      %p80 = scmp.ne.s32.totalorder %s69, %s70
      %p81 = scmp.eq.s32.totalorder %s14, 0
      %p82 = por %p80, %p81
      %p83 = scmp.ne.s32.totalorder %s69, %s70
      %p84 = scmp.eq.s32.totalorder %s15, 3
      %p85 = por %p83, %p84
      %p87 = scmp.ne.s32.totalorder %s70, %s86
      %p88 = scmp.eq.s32.totalorder %s15, 0
      %p89 = por %p87, %p88
      %s90 = ssub.s32 %s9, %s16
      %p91 = scmp.eq.s32.totalorder %s90, 0
      %s93 = sadd.s32 %s92, 1
      %s94 = scalar_select %p91, %s92, %s93
      %p97 = pneg %p91
      %p98 = scmp.eq.s32.totalorder %s9, 3
      %p99 = por %p97, %p98
      %p100 = scmp.ne.s32.totalorder %s92, %s95
      %p101 = scmp.eq.s32.totalorder %s9, 0
      %p102 = por %p100, %p101
      %p103 = scmp.ne.s32.totalorder %s92, %s95
      %p104 = scmp.eq.s32.totalorder %s14, 3
      %p105 = por %p103, %p104
      %p106 = scmp.ne.s32.totalorder %s95, %s96
      %p107 = scmp.eq.s32.totalorder %s14, 0
      %p108 = por %p106, %p107
      %p109 = scmp.ne.s32.totalorder %s95, %s96
      %p110 = scmp.eq.s32.totalorder %s15, 3
      %p111 = por %p109, %p110
      %p113 = scmp.ne.s32.totalorder %s96, %s112
      %p114 = scmp.eq.s32.totalorder %s15, 0
      %p115 = por %p113, %p114
      %p116 = scmp.le.s32.totalorder 1, %s9
      %p117 = scmp.lt.s32.totalorder %s9, 5
      %p118 = pnand %p116, %p117
      %p119 = pneg %p118
      // Predicated region
      $region9: #{siamese_forward.3} parent=5 // pred_check
        _
      $region10: #{siamese_forward.3} parent=5 // pred_check_branch
        %121 = sbr.rel (%p118) target = $region12
      $region11: #{siamese_forward.3} parent=5 // pred_region
        %s122 = ssub.s32 %s9, 1
        // Predicated region
        $region13: #{siamese_forward.3} parent=11 // pred_check
          %p123 = pneg %p30
        $region14: #{siamese_forward.3} parent=11 // pred_check_branch
          %125 = sbr.rel (%p123) target = $region16
        $region15: #{siamese_forward.3} parent=11 // pred_region
          _
        $region16: #{siamese_forward.3} parent=11 // pred_fallthru
          _
      $region12: #{siamese_forward.3} parent=5 // pred_fallthru
        _
      %p126 = scmp.lt.s32.totalorder %s9, 4
      // Predicated region
      $region17: #{siamese_forward.3} parent=5 // pred_check
        %p127 = pneg %p126
      $region18: #{siamese_forward.3} parent=5 // pred_check_branch
        %129 = sbr.rel (%p127) target = $region20
      $region19: #{siamese_forward.3} parent=5 // pred_region
        // Predicated region
        $region21: #{siamese_forward.3} parent=19 // pred_check
          %p130 = pneg %p50
        $region22: #{siamese_forward.3} parent=19 // pred_check_branch
          %132 = sbr.rel (%p130) target = $region24
        $region23: #{siamese_forward.3} parent=19 // pred_region
          %s133 = sand.u32 %s40, 1
          %s134 = sand.u32 %s40, 1
          %s135 = smul.addr %s134, 3328
          %s136 = scalar_lea.vmem [#allocation2], %s135
          %s137 = smul.u32 4, %s9
          %s138 = smul.addr %s137, 4
          %s139 = scalar_lea.vmem %s1, %s138
          // Predicated region
          $region25: #{siamese_forward.3} parent=23 // pred_check
            _
          $region26: #{siamese_forward.3} parent=23 // pred_check_branch
            %141 = sbr.rel (0) target = $region28
          $region27: #{siamese_forward.3} parent=23 // pred_region
            // Predicated region
            $region29: #{siamese_forward.3} parent=27 // pred_check
              _
            $region30: #{siamese_forward.3} parent=27 // pred_check_branch
              %143 = sbr.rel (0) target = $region32
            $region31: #{siamese_forward.3} parent=27 // pred_region
              loop: start=0, step=1, limit=1
              $region33: #{siamese_forward.3} parent=31 // loop_pre_header
                _
              $region34: #{siamese_forward.3} parent=31 // loop_header
                %s145 = sphi 0, %s149
                %p146 = scmp.ge.s32.totalorder %s145, 1
                %s150 = sphi %s139, %s139
                %s151 = sphi %s136, %s136
              $region35: #{siamese_forward.3} parent=31 // loop_header_branch
                %148 = sbr.rel (%p146) target = $region39
              $region36: #{siamese_forward.3} parent=31 // loop_body
                %v152 = vld [vmem:[%s150] sm:$0xff]
                %153 = vst [vmem:[%s151] sm:$0xff] %v152
                %v154 = vld [vmem:[%s150 + $0x8] sm:$0xff]
                %155 = vst [vmem:[%s151 + $0x8] sm:$0xff] %v154
                %v156 = vld [vmem:[%s150 + $0x40] sm:$0xff]
                %157 = vst [vmem:[%s151 + $0x10] sm:$0xff] %v156
                %v158 = vld [vmem:[%s150 + $0x48] sm:$0xff]
                %159 = vst [vmem:[%s151 + $0x18] sm:$0xff] %v158
                %v160 = vld [vmem:[%s150 + $0x80] sm:$0xff]
                %161 = vst [vmem:[%s151 + $0x20] sm:$0xff] %v160
                %v162 = vld [vmem:[%s150 + $0x88] sm:$0xff]
                %163 = vst [vmem:[%s151 + $0x28] sm:$0xff] %v162
                %v164 = vld [vmem:[%s150 + $0xc0] sm:$0xff]
                %165 = vst [vmem:[%s151 + $0x30] sm:$0xff] %v164
                %v166 = vld [vmem:[%s150 + $0xc8] sm:$0xff]
                %167 = vst [vmem:[%s151 + $0x38] sm:$0xff] %v166
                %v168 = vld [vmem:[%s150 + $0x100] sm:$0xff]
                %169 = vst [vmem:[%s151 + $0x40] sm:$0xff] %v168
                %v170 = vld [vmem:[%s150 + $0x108] sm:$0xff]
                %171 = vst [vmem:[%s151 + $0x48] sm:$0xff] %v170
                %v172 = vld [vmem:[%s150 + $0x140] sm:$0xff]
                %173 = vst [vmem:[%s151 + $0x50] sm:$0xff] %v172
                %v174 = vld [vmem:[%s150 + $0x148] sm:$0xff]
                %175 = vst [vmem:[%s151 + $0x58] sm:$0xff] %v174
                %v176 = vld [vmem:[%s150 + $0x180] sm:$0xff]
                %177 = vst [vmem:[%s151 + $0x60] sm:$0xff] %v176
                %v178 = vld [vmem:[%s150 + $0x188] sm:$0xff]
                %179 = vst [vmem:[%s151 + $0x68] sm:$0xff] %v178
                %v180 = vld [vmem:[%s150 + $0x1c0] sm:$0xff]
                %181 = vst [vmem:[%s151 + $0x70] sm:$0xff] %v180
                %v182 = vld [vmem:[%s150 + $0x1c8] sm:$0xff]
                %183 = vst [vmem:[%s151 + $0x78] sm:$0xff] %v182
                %v184 = vld [vmem:[%s150 + $0x200] sm:$0xff]
                %185 = vst [vmem:[%s151 + $0x80] sm:$0xff] %v184
                %v186 = vld [vmem:[%s150 + $0x208] sm:$0xff]
                %187 = vst [vmem:[%s151 + $0x88] sm:$0xff] %v186
                %v188 = vld [vmem:[%s150 + $0x240] sm:$0xff]
                %189 = vst [vmem:[%s151 + $0x90] sm:$0xff] %v188
                %v190 = vld [vmem:[%s150 + $0x248] sm:$0xff]
                %191 = vst [vmem:[%s151 + $0x98] sm:$0xff] %v190
                %v192 = vld [vmem:[%s150 + $0x280] sm:$0xff]
                %193 = vst [vmem:[%s151 + $0xa0] sm:$0xff] %v192
                %v194 = vld [vmem:[%s150 + $0x288] sm:$0xff]
                %195 = vst [vmem:[%s151 + $0xa8] sm:$0xff] %v194
                %v196 = vld [vmem:[%s150 + $0x2c0] sm:$0xff]
                %197 = vst [vmem:[%s151 + $0xb0] sm:$0xff] %v196
                %v198 = vld [vmem:[%s150 + $0x2c8] sm:$0xff]
                %199 = vst [vmem:[%s151 + $0xb8] sm:$0xff] %v198
                %v200 = vld [vmem:[%s150 + $0x300] sm:$0xff]
                %201 = vst [vmem:[%s151 + $0xc0] sm:$0xff] %v200
                %v202 = vld [vmem:[%s150 + $0x308] sm:$0xff]
                %203 = vst [vmem:[%s151 + $0xc8] sm:$0xff] %v202
                %v204 = vld [vmem:[%s150 + $0x340] sm:$0xff]
                %205 = vst [vmem:[%s151 + $0xd0] sm:$0xff] %v204
                %v206 = vld [vmem:[%s150 + $0x348] sm:$0xff]
                %207 = vst [vmem:[%s151 + $0xd8] sm:$0xff] %v206
                %v208 = vld [vmem:[%s150 + $0x380] sm:$0xff]
                %209 = vst [vmem:[%s151 + $0xe0] sm:$0xff] %v208
                %v210 = vld [vmem:[%s150 + $0x388] sm:$0xff]
                %211 = vst [vmem:[%s151 + $0xe8] sm:$0xff] %v210
                %v212 = vld [vmem:[%s150 + $0x3c0] sm:$0xff]
                %213 = vst [vmem:[%s151 + $0xf0] sm:$0xff] %v212
                %v214 = vld [vmem:[%s150 + $0x3c8] sm:$0xff]
                %215 = vst [vmem:[%s151 + $0xf8] sm:$0xff] %v214
                %v216 = vld [vmem:[%s150 + $0x400] sm:$0xff]
                %217 = vst [vmem:[%s151 + $0x100] sm:$0xff] %v216
                %v218 = vld [vmem:[%s150 + $0x408] sm:$0xff]
                %219 = vst [vmem:[%s151 + $0x108] sm:$0xff] %v218
                %v220 = vld [vmem:[%s150 + $0x440] sm:$0xff]
                %221 = vst [vmem:[%s151 + $0x110] sm:$0xff] %v220
                %v222 = vld [vmem:[%s150 + $0x448] sm:$0xff]
                %223 = vst [vmem:[%s151 + $0x118] sm:$0xff] %v222
                %v224 = vld [vmem:[%s150 + $0x480] sm:$0xff]
                %225 = vst [vmem:[%s151 + $0x120] sm:$0xff] %v224
                %v226 = vld [vmem:[%s150 + $0x488] sm:$0xff]
                %227 = vst [vmem:[%s151 + $0x128] sm:$0xff] %v226
                %v228 = vld [vmem:[%s150 + $0x4c0] sm:$0xff]
                %229 = vst [vmem:[%s151 + $0x130] sm:$0xff] %v228
                %v230 = vld [vmem:[%s150 + $0x4c8] sm:$0xff]
                %231 = vst [vmem:[%s151 + $0x138] sm:$0xff] %v230
                %v232 = vld [vmem:[%s150 + $0x500] sm:$0xff]
                %233 = vst [vmem:[%s151 + $0x140] sm:$0xff] %v232
                %v234 = vld [vmem:[%s150 + $0x508] sm:$0xff]
                %235 = vst [vmem:[%s151 + $0x148] sm:$0xff] %v234
                %v236 = vld [vmem:[%s150 + $0x540] sm:$0xff]
                %237 = vst [vmem:[%s151 + $0x150] sm:$0xff] %v236
                %v238 = vld [vmem:[%s150 + $0x548] sm:$0xff]
                %239 = vst [vmem:[%s151 + $0x158] sm:$0xff] %v238
                %v240 = vld [vmem:[%s150 + $0x580] sm:$0xff]
                %241 = vst [vmem:[%s151 + $0x160] sm:$0xff] %v240
                %v242 = vld [vmem:[%s150 + $0x588] sm:$0xff]
                %243 = vst [vmem:[%s151 + $0x168] sm:$0xff] %v242
                %v244 = vld [vmem:[%s150 + $0x5c0] sm:$0xff]
                %245 = vst [vmem:[%s151 + $0x170] sm:$0xff] %v244
                %v246 = vld [vmem:[%s150 + $0x5c8] sm:$0xff]
                %247 = vst [vmem:[%s151 + $0x178] sm:$0xff] %v246
                %v248 = vld [vmem:[%s150 + $0x600] sm:$0xff]
                %249 = vst [vmem:[%s151 + $0x180] sm:$0xff] %v248
                %v250 = vld [vmem:[%s150 + $0x608] sm:$0xff]
                %251 = vst [vmem:[%s151 + $0x188] sm:$0xff] %v250
                %v252 = vld [vmem:[%s150 + $0x640] sm:$0xff]
                %253 = vst [vmem:[%s151 + $0x190] sm:$0xff] %v252
                %v254 = vld [vmem:[%s150 + $0x648] sm:$0xff]
                %255 = vst [vmem:[%s151 + $0x198] sm:$0xff] %v254
                %v256 = vld [vmem:[%s150 + $0x680] sm:$0xff]
                %257 = vst [vmem:[%s151 + $0x1a0] sm:$0xff] %v256
                %v258 = vld [vmem:[%s150 + $0x688] sm:$0xff]
                %259 = vst [vmem:[%s151 + $0x1a8] sm:$0xff] %v258
                %v260 = vld [vmem:[%s150 + $0x6c0] sm:$0xff]
                %261 = vst [vmem:[%s151 + $0x1b0] sm:$0xff] %v260
                %v262 = vld [vmem:[%s150 + $0x6c8] sm:$0xff]
                %263 = vst [vmem:[%s151 + $0x1b8] sm:$0xff] %v262
                %v264 = vld [vmem:[%s150 + $0x700] sm:$0xff]
                %265 = vst [vmem:[%s151 + $0x1c0] sm:$0xff] %v264
                %v266 = vld [vmem:[%s150 + $0x708] sm:$0xff]
                %267 = vst [vmem:[%s151 + $0x1c8] sm:$0xff] %v266
                %v268 = vld [vmem:[%s150 + $0x740] sm:$0xff]
                %269 = vst [vmem:[%s151 + $0x1d0] sm:$0xff] %v268
                %v270 = vld [vmem:[%s150 + $0x748] sm:$0xff]
                %271 = vst [vmem:[%s151 + $0x1d8] sm:$0xff] %v270
                %v272 = vld [vmem:[%s150 + $0x780] sm:$0xff]
                %273 = vst [vmem:[%s151 + $0x1e0] sm:$0xff] %v272
                %v274 = vld [vmem:[%s150 + $0x788] sm:$0xff]
                %275 = vst [vmem:[%s151 + $0x1e8] sm:$0xff] %v274
                %v276 = vld [vmem:[%s150 + $0x7c0] sm:$0xff]
                %277 = vst [vmem:[%s151 + $0x1f0] sm:$0xff] %v276
                %v278 = vld [vmem:[%s150 + $0x7c8] sm:$0xff]
                %279 = vst [vmem:[%s151 + $0x1f8] sm:$0xff] %v278
                %v280 = vld [vmem:[%s150 + $0x800] sm:$0xff]
                %281 = vst [vmem:[%s151 + $0x200] sm:$0xff] %v280
                %v282 = vld [vmem:[%s150 + $0x808] sm:$0xff]
                %283 = vst [vmem:[%s151 + $0x208] sm:$0xff] %v282
                %v284 = vld [vmem:[%s150 + $0x840] sm:$0xff]
                %285 = vst [vmem:[%s151 + $0x210] sm:$0xff] %v284
                %v286 = vld [vmem:[%s150 + $0x848] sm:$0xff]
                %287 = vst [vmem:[%s151 + $0x218] sm:$0xff] %v286
                %v288 = vld [vmem:[%s150 + $0x880] sm:$0xff]
                %289 = vst [vmem:[%s151 + $0x220] sm:$0xff] %v288
                %v290 = vld [vmem:[%s150 + $0x888] sm:$0xff]
                %291 = vst [vmem:[%s151 + $0x228] sm:$0xff] %v290
                %v292 = vld [vmem:[%s150 + $0x8c0] sm:$0xff]
                %293 = vst [vmem:[%s151 + $0x230] sm:$0xff] %v292
                %v294 = vld [vmem:[%s150 + $0x8c8] sm:$0xff]
                %295 = vst [vmem:[%s151 + $0x238] sm:$0xff] %v294
                %v296 = vld [vmem:[%s150 + $0x900] sm:$0xff]
                %297 = vst [vmem:[%s151 + $0x240] sm:$0xff] %v296
                %v298 = vld [vmem:[%s150 + $0x908] sm:$0xff]
                %299 = vst [vmem:[%s151 + $0x248] sm:$0xff] %v298
                %v300 = vld [vmem:[%s150 + $0x940] sm:$0xff]
                %301 = vst [vmem:[%s151 + $0x250] sm:$0xff] %v300
                %v302 = vld [vmem:[%s150 + $0x948] sm:$0xff]
                %303 = vst [vmem:[%s151 + $0x258] sm:$0xff] %v302
                %v304 = vld [vmem:[%s150 + $0x980] sm:$0xff]
                %305 = vst [vmem:[%s151 + $0x260] sm:$0xff] %v304
                %v306 = vld [vmem:[%s150 + $0x988] sm:$0xff]
                %307 = vst [vmem:[%s151 + $0x268] sm:$0xff] %v306
                %v308 = vld [vmem:[%s150 + $0x9c0] sm:$0xff]
                %309 = vst [vmem:[%s151 + $0x270] sm:$0xff] %v308
                %v310 = vld [vmem:[%s150 + $0x9c8] sm:$0xff]
                %311 = vst [vmem:[%s151 + $0x278] sm:$0xff] %v310
                %v312 = vld [vmem:[%s150 + $0xa00] sm:$0xff]
                %313 = vst [vmem:[%s151 + $0x280] sm:$0xff] %v312
                %v314 = vld [vmem:[%s150 + $0xa08] sm:$0xff]
                %315 = vst [vmem:[%s151 + $0x288] sm:$0xff] %v314
                %v316 = vld [vmem:[%s150 + $0xa40] sm:$0xff]
                %317 = vst [vmem:[%s151 + $0x290] sm:$0xff] %v316
                %v318 = vld [vmem:[%s150 + $0xa48] sm:$0xff]
                %319 = vst [vmem:[%s151 + $0x298] sm:$0xff] %v318
                %v320 = vld [vmem:[%s150 + $0xa80] sm:$0xff]
                %321 = vst [vmem:[%s151 + $0x2a0] sm:$0xff] %v320
                %v322 = vld [vmem:[%s150 + $0xa88] sm:$0xff]
                %323 = vst [vmem:[%s151 + $0x2a8] sm:$0xff] %v322
                %v324 = vld [vmem:[%s150 + $0xac0] sm:$0xff]
                %325 = vst [vmem:[%s151 + $0x2b0] sm:$0xff] %v324
                %v326 = vld [vmem:[%s150 + $0xac8] sm:$0xff]
                %327 = vst [vmem:[%s151 + $0x2b8] sm:$0xff] %v326
                %v328 = vld [vmem:[%s150 + $0xb00] sm:$0xff]
                %329 = vst [vmem:[%s151 + $0x2c0] sm:$0xff] %v328
                %v330 = vld [vmem:[%s150 + $0xb08] sm:$0xff]
                %331 = vst [vmem:[%s151 + $0x2c8] sm:$0xff] %v330
                %v332 = vld [vmem:[%s150 + $0xb40] sm:$0xff]
                %333 = vst [vmem:[%s151 + $0x2d0] sm:$0xff] %v332
                %v334 = vld [vmem:[%s150 + $0xb48] sm:$0xff]
                %335 = vst [vmem:[%s151 + $0x2d8] sm:$0xff] %v334
                %v336 = vld [vmem:[%s150 + $0xb80] sm:$0xff]
                %337 = vst [vmem:[%s151 + $0x2e0] sm:$0xff] %v336
                %v338 = vld [vmem:[%s150 + $0xb88] sm:$0xff]
                %339 = vst [vmem:[%s151 + $0x2e8] sm:$0xff] %v338
                %v340 = vld [vmem:[%s150 + $0xbc0] sm:$0xff]
                %341 = vst [vmem:[%s151 + $0x2f0] sm:$0xff] %v340
                %v342 = vld [vmem:[%s150 + $0xbc8] sm:$0xff]
                %343 = vst [vmem:[%s151 + $0x2f8] sm:$0xff] %v342
                %v344 = vld [vmem:[%s150 + $0xc00] sm:$0xff]
                %345 = vst [vmem:[%s151 + $0x300] sm:$0xff] %v344
                %v346 = vld [vmem:[%s150 + $0xc08] sm:$0xff]
                %347 = vst [vmem:[%s151 + $0x308] sm:$0xff] %v346
                %v348 = vld [vmem:[%s150 + $0xc40] sm:$0xff]
                %349 = vst [vmem:[%s151 + $0x310] sm:$0xff] %v348
                %v350 = vld [vmem:[%s150 + $0xc48] sm:$0xff]
                %351 = vst [vmem:[%s151 + $0x318] sm:$0xff] %v350
                %v352 = vld [vmem:[%s150 + $0xc80] sm:$0xff]
                %353 = vst [vmem:[%s151 + $0x320] sm:$0xff] %v352
                %v354 = vld [vmem:[%s150 + $0xc88] sm:$0xff]
                %355 = vst [vmem:[%s151 + $0x328] sm:$0xff] %v354
                %v356 = vld [vmem:[%s150 + $0xcc0] sm:$0xff]
                %357 = vst [vmem:[%s151 + $0x330] sm:$0xff] %v356
                %v358 = vld [vmem:[%s150 + $0xcc8] sm:$0xff]
                %359 = vst [vmem:[%s151 + $0x338] sm:$0xff] %v358
                %v360 = vld [vmem:[%s150 + $0xd00] sm:$0xff]
                %361 = vst [vmem:[%s151 + $0x340] sm:$0xff] %v360
                %v362 = vld [vmem:[%s150 + $0xd08] sm:$0xff]
                %363 = vst [vmem:[%s151 + $0x348] sm:$0xff] %v362
                %v364 = vld [vmem:[%s150 + $0xd40] sm:$0xff]
                %365 = vst [vmem:[%s151 + $0x350] sm:$0xff] %v364
                %v366 = vld [vmem:[%s150 + $0xd48] sm:$0xff]
                %367 = vst [vmem:[%s151 + $0x358] sm:$0xff] %v366
                %v368 = vld [vmem:[%s150 + $0xd80] sm:$0xff]
                %369 = vst [vmem:[%s151 + $0x360] sm:$0xff] %v368
                %v370 = vld [vmem:[%s150 + $0xd88] sm:$0xff]
                %371 = vst [vmem:[%s151 + $0x368] sm:$0xff] %v370
                %v372 = vld [vmem:[%s150 + $0xdc0] sm:$0xff]
                %373 = vst [vmem:[%s151 + $0x370] sm:$0xff] %v372
                %v374 = vld [vmem:[%s150 + $0xdc8] sm:$0xff]
                %375 = vst [vmem:[%s151 + $0x378] sm:$0xff] %v374
                %v376 = vld [vmem:[%s150 + $0xe00] sm:$0xff]
                %377 = vst [vmem:[%s151 + $0x380] sm:$0xff] %v376
                %v378 = vld [vmem:[%s150 + $0xe08] sm:$0xff]
                %379 = vst [vmem:[%s151 + $0x388] sm:$0xff] %v378
                %v380 = vld [vmem:[%s150 + $0xe40] sm:$0xff]
                %381 = vst [vmem:[%s151 + $0x390] sm:$0xff] %v380
                %v382 = vld [vmem:[%s150 + $0xe48] sm:$0xff]
                %383 = vst [vmem:[%s151 + $0x398] sm:$0xff] %v382
                %v384 = vld [vmem:[%s150 + $0xe80] sm:$0xff]
                %385 = vst [vmem:[%s151 + $0x3a0] sm:$0xff] %v384
                %v386 = vld [vmem:[%s150 + $0xe88] sm:$0xff]
                %387 = vst [vmem:[%s151 + $0x3a8] sm:$0xff] %v386
                %v388 = vld [vmem:[%s150 + $0xec0] sm:$0xff]
                %389 = vst [vmem:[%s151 + $0x3b0] sm:$0xff] %v388
                %v390 = vld [vmem:[%s150 + $0xec8] sm:$0xff]
                %391 = vst [vmem:[%s151 + $0x3b8] sm:$0xff] %v390
                %v392 = vld [vmem:[%s150 + $0xf00] sm:$0xff]
                %393 = vst [vmem:[%s151 + $0x3c0] sm:$0xff] %v392
                %v394 = vld [vmem:[%s150 + $0xf08] sm:$0xff]
                %395 = vst [vmem:[%s151 + $0x3c8] sm:$0xff] %v394
                %v396 = vld [vmem:[%s150 + $0xf40] sm:$0xff]
                %397 = vst [vmem:[%s151 + $0x3d0] sm:$0xff] %v396
                %v398 = vld [vmem:[%s150 + $0xf48] sm:$0xff]
                %399 = vst [vmem:[%s151 + $0x3d8] sm:$0xff] %v398
                %v400 = vld [vmem:[%s150 + $0xf80] sm:$0xff]
                %401 = vst [vmem:[%s151 + $0x3e0] sm:$0xff] %v400
                %v402 = vld [vmem:[%s150 + $0xf88] sm:$0xff]
                %403 = vst [vmem:[%s151 + $0x3e8] sm:$0xff] %v402
                %v404 = vld [vmem:[%s150 + $0xfc0] sm:$0xff]
                %405 = vst [vmem:[%s151 + $0x3f0] sm:$0xff] %v404
                %v406 = vld [vmem:[%s150 + $0xfc8] sm:$0xff]
                %407 = vst [vmem:[%s151 + $0x3f8] sm:$0xff] %v406
                %v408 = vld [vmem:[%s150 + $0x1000] sm:$0xff]
                %409 = vst [vmem:[%s151 + $0x400] sm:$0xff] %v408
                %v410 = vld [vmem:[%s150 + $0x1008] sm:$0xff]
                %411 = vst [vmem:[%s151 + $0x408] sm:$0xff] %v410
                %v412 = vld [vmem:[%s150 + $0x1040] sm:$0xff]
                %413 = vst [vmem:[%s151 + $0x410] sm:$0xff] %v412
                %v414 = vld [vmem:[%s150 + $0x1048] sm:$0xff]
                %415 = vst [vmem:[%s151 + $0x418] sm:$0xff] %v414
                %v416 = vld [vmem:[%s150 + $0x1080] sm:$0xff]
                %417 = vst [vmem:[%s151 + $0x420] sm:$0xff] %v416
                %v418 = vld [vmem:[%s150 + $0x1088] sm:$0xff]
                %419 = vst [vmem:[%s151 + $0x428] sm:$0xff] %v418
                %v420 = vld [vmem:[%s150 + $0x10c0] sm:$0xff]
                %421 = vst [vmem:[%s151 + $0x430] sm:$0xff] %v420
                %v422 = vld [vmem:[%s150 + $0x10c8] sm:$0xff]
                %423 = vst [vmem:[%s151 + $0x438] sm:$0xff] %v422
                %v424 = vld [vmem:[%s150 + $0x1100] sm:$0xff]
                %425 = vst [vmem:[%s151 + $0x440] sm:$0xff] %v424
                %v426 = vld [vmem:[%s150 + $0x1108] sm:$0xff]
                %427 = vst [vmem:[%s151 + $0x448] sm:$0xff] %v426
                %v428 = vld [vmem:[%s150 + $0x1140] sm:$0xff]
                %429 = vst [vmem:[%s151 + $0x450] sm:$0xff] %v428
                %v430 = vld [vmem:[%s150 + $0x1148] sm:$0xff]
                %431 = vst [vmem:[%s151 + $0x458] sm:$0xff] %v430
                %v432 = vld [vmem:[%s150 + $0x1180] sm:$0xff]
                %433 = vst [vmem:[%s151 + $0x460] sm:$0xff] %v432
                %v434 = vld [vmem:[%s150 + $0x1188] sm:$0xff]
                %435 = vst [vmem:[%s151 + $0x468] sm:$0xff] %v434
                %v436 = vld [vmem:[%s150 + $0x11c0] sm:$0xff]
                %437 = vst [vmem:[%s151 + $0x470] sm:$0xff] %v436
                %v438 = vld [vmem:[%s150 + $0x11c8] sm:$0xff]
                %439 = vst [vmem:[%s151 + $0x478] sm:$0xff] %v438
                %v440 = vld [vmem:[%s150 + $0x1200] sm:$0xff]
                %441 = vst [vmem:[%s151 + $0x480] sm:$0xff] %v440
                %v442 = vld [vmem:[%s150 + $0x1208] sm:$0xff]
                %443 = vst [vmem:[%s151 + $0x488] sm:$0xff] %v442
                %v444 = vld [vmem:[%s150 + $0x1240] sm:$0xff]
                %445 = vst [vmem:[%s151 + $0x490] sm:$0xff] %v444
                %v446 = vld [vmem:[%s150 + $0x1248] sm:$0xff]
                %447 = vst [vmem:[%s151 + $0x498] sm:$0xff] %v446
                %v448 = vld [vmem:[%s150 + $0x1280] sm:$0xff]
                %449 = vst [vmem:[%s151 + $0x4a0] sm:$0xff] %v448
                %v450 = vld [vmem:[%s150 + $0x1288] sm:$0xff]
                %451 = vst [vmem:[%s151 + $0x4a8] sm:$0xff] %v450
                %v452 = vld [vmem:[%s150 + $0x12c0] sm:$0xff]
                %453 = vst [vmem:[%s151 + $0x4b0] sm:$0xff] %v452
                %v454 = vld [vmem:[%s150 + $0x12c8] sm:$0xff]
                %455 = vst [vmem:[%s151 + $0x4b8] sm:$0xff] %v454
                %v456 = vld [vmem:[%s150 + $0x1300] sm:$0xff]
                %457 = vst [vmem:[%s151 + $0x4c0] sm:$0xff] %v456
                %v458 = vld [vmem:[%s150 + $0x1308] sm:$0xff]
                %459 = vst [vmem:[%s151 + $0x4c8] sm:$0xff] %v458
                %v460 = vld [vmem:[%s150 + $0x1340] sm:$0xff]
                %461 = vst [vmem:[%s151 + $0x4d0] sm:$0xff] %v460
                %v462 = vld [vmem:[%s150 + $0x1348] sm:$0xff]
                %463 = vst [vmem:[%s151 + $0x4d8] sm:$0xff] %v462
                %v464 = vld [vmem:[%s150 + $0x1380] sm:$0xff]
                %465 = vst [vmem:[%s151 + $0x4e0] sm:$0xff] %v464
                %v466 = vld [vmem:[%s150 + $0x1388] sm:$0xff]
                %467 = vst [vmem:[%s151 + $0x4e8] sm:$0xff] %v466
                %v468 = vld [vmem:[%s150 + $0x13c0] sm:$0xff]
                %469 = vst [vmem:[%s151 + $0x4f0] sm:$0xff] %v468
                %v470 = vld [vmem:[%s150 + $0x13c8] sm:$0xff]
                %471 = vst [vmem:[%s151 + $0x4f8] sm:$0xff] %v470
                %v472 = vld [vmem:[%s150 + $0x1400] sm:$0xff]
                %473 = vst [vmem:[%s151 + $0x500] sm:$0xff] %v472
                %v474 = vld [vmem:[%s150 + $0x1408] sm:$0xff]
                %475 = vst [vmem:[%s151 + $0x508] sm:$0xff] %v474
                %v476 = vld [vmem:[%s150 + $0x1440] sm:$0xff]
                %477 = vst [vmem:[%s151 + $0x510] sm:$0xff] %v476
                %v478 = vld [vmem:[%s150 + $0x1448] sm:$0xff]
                %479 = vst [vmem:[%s151 + $0x518] sm:$0xff] %v478
                %v480 = vld [vmem:[%s150 + $0x1480] sm:$0xff]
                %481 = vst [vmem:[%s151 + $0x520] sm:$0xff] %v480
                %v482 = vld [vmem:[%s150 + $0x1488] sm:$0xff]
                %483 = vst [vmem:[%s151 + $0x528] sm:$0xff] %v482
                %v484 = vld [vmem:[%s150 + $0x14c0] sm:$0xff]
                %485 = vst [vmem:[%s151 + $0x530] sm:$0xff] %v484
                %v486 = vld [vmem:[%s150 + $0x14c8] sm:$0xff]
                %487 = vst [vmem:[%s151 + $0x538] sm:$0xff] %v486
                %v488 = vld [vmem:[%s150 + $0x1500] sm:$0xff]
                %489 = vst [vmem:[%s151 + $0x540] sm:$0xff] %v488
                %v490 = vld [vmem:[%s150 + $0x1508] sm:$0xff]
                %491 = vst [vmem:[%s151 + $0x548] sm:$0xff] %v490
                %v492 = vld [vmem:[%s150 + $0x1540] sm:$0xff]
                %493 = vst [vmem:[%s151 + $0x550] sm:$0xff] %v492
                %v494 = vld [vmem:[%s150 + $0x1548] sm:$0xff]
                %495 = vst [vmem:[%s151 + $0x558] sm:$0xff] %v494
                %v496 = vld [vmem:[%s150 + $0x1580] sm:$0xff]
                %497 = vst [vmem:[%s151 + $0x560] sm:$0xff] %v496
                %v498 = vld [vmem:[%s150 + $0x1588] sm:$0xff]
                %499 = vst [vmem:[%s151 + $0x568] sm:$0xff] %v498
                %v500 = vld [vmem:[%s150 + $0x15c0] sm:$0xff]
                %501 = vst [vmem:[%s151 + $0x570] sm:$0xff] %v500
                %v502 = vld [vmem:[%s150 + $0x15c8] sm:$0xff]
                %503 = vst [vmem:[%s151 + $0x578] sm:$0xff] %v502
                %v504 = vld [vmem:[%s150 + $0x1600] sm:$0xff]
                %505 = vst [vmem:[%s151 + $0x580] sm:$0xff] %v504
                %v506 = vld [vmem:[%s150 + $0x1608] sm:$0xff]
                %507 = vst [vmem:[%s151 + $0x588] sm:$0xff] %v506
                %v508 = vld [vmem:[%s150 + $0x1640] sm:$0xff]
                %509 = vst [vmem:[%s151 + $0x590] sm:$0xff] %v508
                %v510 = vld [vmem:[%s150 + $0x1648] sm:$0xff]
                %511 = vst [vmem:[%s151 + $0x598] sm:$0xff] %v510
                %v512 = vld [vmem:[%s150 + $0x1680] sm:$0xff]
                %513 = vst [vmem:[%s151 + $0x5a0] sm:$0xff] %v512
                %v514 = vld [vmem:[%s150 + $0x1688] sm:$0xff]
                %515 = vst [vmem:[%s151 + $0x5a8] sm:$0xff] %v514
                %v516 = vld [vmem:[%s150 + $0x16c0] sm:$0xff]
                %517 = vst [vmem:[%s151 + $0x5b0] sm:$0xff] %v516
                %v518 = vld [vmem:[%s150 + $0x16c8] sm:$0xff]
                %519 = vst [vmem:[%s151 + $0x5b8] sm:$0xff] %v518
                %v520 = vld [vmem:[%s150 + $0x1700] sm:$0xff]
                %521 = vst [vmem:[%s151 + $0x5c0] sm:$0xff] %v520
                %v522 = vld [vmem:[%s150 + $0x1708] sm:$0xff]
                %523 = vst [vmem:[%s151 + $0x5c8] sm:$0xff] %v522
                %v524 = vld [vmem:[%s150 + $0x1740] sm:$0xff]
                %525 = vst [vmem:[%s151 + $0x5d0] sm:$0xff] %v524
                %v526 = vld [vmem:[%s150 + $0x1748] sm:$0xff]
                %527 = vst [vmem:[%s151 + $0x5d8] sm:$0xff] %v526
                %v528 = vld [vmem:[%s150 + $0x1780] sm:$0xff]
                %529 = vst [vmem:[%s151 + $0x5e0] sm:$0xff] %v528
                %v530 = vld [vmem:[%s150 + $0x1788] sm:$0xff]
                %531 = vst [vmem:[%s151 + $0x5e8] sm:$0xff] %v530
                %v532 = vld [vmem:[%s150 + $0x17c0] sm:$0xff]
                %533 = vst [vmem:[%s151 + $0x5f0] sm:$0xff] %v532
                %v534 = vld [vmem:[%s150 + $0x17c8] sm:$0xff]
                %535 = vst [vmem:[%s151 + $0x5f8] sm:$0xff] %v534
                %v536 = vld [vmem:[%s150 + $0x1800] sm:$0xff]
                %537 = vst [vmem:[%s151 + $0x600] sm:$0xff] %v536
                %v538 = vld [vmem:[%s150 + $0x1808] sm:$0xff]
                %539 = vst [vmem:[%s151 + $0x608] sm:$0xff] %v538
                %v540 = vld [vmem:[%s150 + $0x1840] sm:$0xff]
                %541 = vst [vmem:[%s151 + $0x610] sm:$0xff] %v540
                %v542 = vld [vmem:[%s150 + $0x1848] sm:$0xff]
                %543 = vst [vmem:[%s151 + $0x618] sm:$0xff] %v542
                %v544 = vld [vmem:[%s150 + $0x1880] sm:$0xff]
                %545 = vst [vmem:[%s151 + $0x620] sm:$0xff] %v544
                %v546 = vld [vmem:[%s150 + $0x1888] sm:$0xff]
                %547 = vst [vmem:[%s151 + $0x628] sm:$0xff] %v546
                %v548 = vld [vmem:[%s150 + $0x18c0] sm:$0xff]
                %549 = vst [vmem:[%s151 + $0x630] sm:$0xff] %v548
                %v550 = vld [vmem:[%s150 + $0x18c8] sm:$0xff]
                %551 = vst [vmem:[%s151 + $0x638] sm:$0xff] %v550
                %v552 = vld [vmem:[%s150 + $0x1900] sm:$0xff]
                %553 = vst [vmem:[%s151 + $0x640] sm:$0xff] %v552
                %v554 = vld [vmem:[%s150 + $0x1908] sm:$0xff]
                %555 = vst [vmem:[%s151 + $0x648] sm:$0xff] %v554
                %v556 = vld [vmem:[%s150 + $0x1940] sm:$0xff]
                %557 = vst [vmem:[%s151 + $0x650] sm:$0xff] %v556
                %v558 = vld [vmem:[%s150 + $0x1948] sm:$0xff]
                %559 = vst [vmem:[%s151 + $0x658] sm:$0xff] %v558
                %v560 = vld [vmem:[%s150 + $0x1980] sm:$0xff]
                %561 = vst [vmem:[%s151 + $0x660] sm:$0xff] %v560
                %v562 = vld [vmem:[%s150 + $0x1988] sm:$0xff]
                %563 = vst [vmem:[%s151 + $0x668] sm:$0xff] %v562
                %v564 = vld [vmem:[%s150 + $0x19c0] sm:$0xff]
                %565 = vst [vmem:[%s151 + $0x670] sm:$0xff] %v564
                %v566 = vld [vmem:[%s150 + $0x19c8] sm:$0xff]
                %567 = vst [vmem:[%s151 + $0x678] sm:$0xff] %v566
                %v568 = vld [vmem:[%s150 + $0x1a00] sm:$0xff]
                %569 = vst [vmem:[%s151 + $0x680] sm:$0xff] %v568
                %v570 = vld [vmem:[%s150 + $0x1a08] sm:$0xff]
                %571 = vst [vmem:[%s151 + $0x688] sm:$0xff] %v570
                %v572 = vld [vmem:[%s150 + $0x1a40] sm:$0xff]
                %573 = vst [vmem:[%s151 + $0x690] sm:$0xff] %v572
                %v574 = vld [vmem:[%s150 + $0x1a48] sm:$0xff]
                %575 = vst [vmem:[%s151 + $0x698] sm:$0xff] %v574
                %v576 = vld [vmem:[%s150 + $0x1a80] sm:$0xff]
                %577 = vst [vmem:[%s151 + $0x6a0] sm:$0xff] %v576
                %v578 = vld [vmem:[%s150 + $0x1a88] sm:$0xff]
                %579 = vst [vmem:[%s151 + $0x6a8] sm:$0xff] %v578
                %v580 = vld [vmem:[%s150 + $0x1ac0] sm:$0xff]
                %581 = vst [vmem:[%s151 + $0x6b0] sm:$0xff] %v580
                %v582 = vld [vmem:[%s150 + $0x1ac8] sm:$0xff]
                %583 = vst [vmem:[%s151 + $0x6b8] sm:$0xff] %v582
                %v584 = vld [vmem:[%s150 + $0x1b00] sm:$0xff]
                %585 = vst [vmem:[%s151 + $0x6c0] sm:$0xff] %v584
                %v586 = vld [vmem:[%s150 + $0x1b08] sm:$0xff]
                %587 = vst [vmem:[%s151 + $0x6c8] sm:$0xff] %v586
                %v588 = vld [vmem:[%s150 + $0x1b40] sm:$0xff]
                %589 = vst [vmem:[%s151 + $0x6d0] sm:$0xff] %v588
                %v590 = vld [vmem:[%s150 + $0x1b48] sm:$0xff]
                %591 = vst [vmem:[%s151 + $0x6d8] sm:$0xff] %v590
                %v592 = vld [vmem:[%s150 + $0x1b80] sm:$0xff]
                %593 = vst [vmem:[%s151 + $0x6e0] sm:$0xff] %v592
                %v594 = vld [vmem:[%s150 + $0x1b88] sm:$0xff]
                %595 = vst [vmem:[%s151 + $0x6e8] sm:$0xff] %v594
                %v596 = vld [vmem:[%s150 + $0x1bc0] sm:$0xff]
                %597 = vst [vmem:[%s151 + $0x6f0] sm:$0xff] %v596
                %v598 = vld [vmem:[%s150 + $0x1bc8] sm:$0xff]
                %599 = vst [vmem:[%s151 + $0x6f8] sm:$0xff] %v598
                %v600 = vld [vmem:[%s150 + $0x1c00] sm:$0xff]
                %601 = vst [vmem:[%s151 + $0x700] sm:$0xff] %v600
                %v602 = vld [vmem:[%s150 + $0x1c08] sm:$0xff]
                %603 = vst [vmem:[%s151 + $0x708] sm:$0xff] %v602
                %v604 = vld [vmem:[%s150 + $0x1c40] sm:$0xff]
                %605 = vst [vmem:[%s151 + $0x710] sm:$0xff] %v604
                %v606 = vld [vmem:[%s150 + $0x1c48] sm:$0xff]
                %607 = vst [vmem:[%s151 + $0x718] sm:$0xff] %v606
                %v608 = vld [vmem:[%s150 + $0x1c80] sm:$0xff]
                %609 = vst [vmem:[%s151 + $0x720] sm:$0xff] %v608
                %v610 = vld [vmem:[%s150 + $0x1c88] sm:$0xff]
                %611 = vst [vmem:[%s151 + $0x728] sm:$0xff] %v610
                %v612 = vld [vmem:[%s150 + $0x1cc0] sm:$0xff]
                %613 = vst [vmem:[%s151 + $0x730] sm:$0xff] %v612
                %v614 = vld [vmem:[%s150 + $0x1cc8] sm:$0xff]
                %615 = vst [vmem:[%s151 + $0x738] sm:$0xff] %v614
                %v616 = vld [vmem:[%s150 + $0x1d00] sm:$0xff]
                %617 = vst [vmem:[%s151 + $0x740] sm:$0xff] %v616
                %v618 = vld [vmem:[%s150 + $0x1d08] sm:$0xff]
                %619 = vst [vmem:[%s151 + $0x748] sm:$0xff] %v618
                %v620 = vld [vmem:[%s150 + $0x1d40] sm:$0xff]
                %621 = vst [vmem:[%s151 + $0x750] sm:$0xff] %v620
                %v622 = vld [vmem:[%s150 + $0x1d48] sm:$0xff]
                %623 = vst [vmem:[%s151 + $0x758] sm:$0xff] %v622
                %v624 = vld [vmem:[%s150 + $0x1d80] sm:$0xff]
                %625 = vst [vmem:[%s151 + $0x760] sm:$0xff] %v624
                %v626 = vld [vmem:[%s150 + $0x1d88] sm:$0xff]
                %627 = vst [vmem:[%s151 + $0x768] sm:$0xff] %v626
                %v628 = vld [vmem:[%s150 + $0x1dc0] sm:$0xff]
                %629 = vst [vmem:[%s151 + $0x770] sm:$0xff] %v628
                %v630 = vld [vmem:[%s150 + $0x1dc8] sm:$0xff]
                %631 = vst [vmem:[%s151 + $0x778] sm:$0xff] %v630
                %v632 = vld [vmem:[%s150 + $0x1e00] sm:$0xff]
                %633 = vst [vmem:[%s151 + $0x780] sm:$0xff] %v632
                %v634 = vld [vmem:[%s150 + $0x1e08] sm:$0xff]
                %635 = vst [vmem:[%s151 + $0x788] sm:$0xff] %v634
                %v636 = vld [vmem:[%s150 + $0x1e40] sm:$0xff]
                %637 = vst [vmem:[%s151 + $0x790] sm:$0xff] %v636
                %v638 = vld [vmem:[%s150 + $0x1e48] sm:$0xff]
                %639 = vst [vmem:[%s151 + $0x798] sm:$0xff] %v638
                %v640 = vld [vmem:[%s150 + $0x1e80] sm:$0xff]
                %641 = vst [vmem:[%s151 + $0x7a0] sm:$0xff] %v640
                %v642 = vld [vmem:[%s150 + $0x1e88] sm:$0xff]
                %643 = vst [vmem:[%s151 + $0x7a8] sm:$0xff] %v642
                %v644 = vld [vmem:[%s150 + $0x1ec0] sm:$0xff]
                %645 = vst [vmem:[%s151 + $0x7b0] sm:$0xff] %v644
                %v646 = vld [vmem:[%s150 + $0x1ec8] sm:$0xff]
                %647 = vst [vmem:[%s151 + $0x7b8] sm:$0xff] %v646
                %v648 = vld [vmem:[%s150 + $0x1f00] sm:$0xff]
                %649 = vst [vmem:[%s151 + $0x7c0] sm:$0xff] %v648
                %v650 = vld [vmem:[%s150 + $0x1f08] sm:$0xff]
                %651 = vst [vmem:[%s151 + $0x7c8] sm:$0xff] %v650
                %v652 = vld [vmem:[%s150 + $0x1f40] sm:$0xff]
                %653 = vst [vmem:[%s151 + $0x7d0] sm:$0xff] %v652
                %v654 = vld [vmem:[%s150 + $0x1f48] sm:$0xff]
                %655 = vst [vmem:[%s151 + $0x7d8] sm:$0xff] %v654
                %v656 = vld [vmem:[%s150 + $0x1f80] sm:$0xff]
                %657 = vst [vmem:[%s151 + $0x7e0] sm:$0xff] %v656
                %v658 = vld [vmem:[%s150 + $0x1f88] sm:$0xff]
                %659 = vst [vmem:[%s151 + $0x7e8] sm:$0xff] %v658
                %v660 = vld [vmem:[%s150 + $0x1fc0] sm:$0xff]
                %661 = vst [vmem:[%s151 + $0x7f0] sm:$0xff] %v660
                %v662 = vld [vmem:[%s150 + $0x1fc8] sm:$0xff]
                %663 = vst [vmem:[%s151 + $0x7f8] sm:$0xff] %v662
                %v664 = vld [vmem:[%s150 + $0x2000] sm:$0xff]
                %665 = vst [vmem:[%s151 + $0x800] sm:$0xff] %v664
                %v666 = vld [vmem:[%s150 + $0x2008] sm:$0xff]
                %667 = vst [vmem:[%s151 + $0x808] sm:$0xff] %v666
                %v668 = vld [vmem:[%s150 + $0x2040] sm:$0xff]
                %669 = vst [vmem:[%s151 + $0x810] sm:$0xff] %v668
                %v670 = vld [vmem:[%s150 + $0x2048] sm:$0xff]
                %671 = vst [vmem:[%s151 + $0x818] sm:$0xff] %v670
                %v672 = vld [vmem:[%s150 + $0x2080] sm:$0xff]
                %673 = vst [vmem:[%s151 + $0x820] sm:$0xff] %v672
                %v674 = vld [vmem:[%s150 + $0x2088] sm:$0xff]
                %675 = vst [vmem:[%s151 + $0x828] sm:$0xff] %v674
                %v676 = vld [vmem:[%s150 + $0x20c0] sm:$0xff]
                %677 = vst [vmem:[%s151 + $0x830] sm:$0xff] %v676
                %v678 = vld [vmem:[%s150 + $0x20c8] sm:$0xff]
                %679 = vst [vmem:[%s151 + $0x838] sm:$0xff] %v678
                %v680 = vld [vmem:[%s150 + $0x2100] sm:$0xff]
                %681 = vst [vmem:[%s151 + $0x840] sm:$0xff] %v680
                %v682 = vld [vmem:[%s150 + $0x2108] sm:$0xff]
                %683 = vst [vmem:[%s151 + $0x848] sm:$0xff] %v682
                %v684 = vld [vmem:[%s150 + $0x2140] sm:$0xff]
                %685 = vst [vmem:[%s151 + $0x850] sm:$0xff] %v684
                %v686 = vld [vmem:[%s150 + $0x2148] sm:$0xff]
                %687 = vst [vmem:[%s151 + $0x858] sm:$0xff] %v686
                %v688 = vld [vmem:[%s150 + $0x2180] sm:$0xff]
                %689 = vst [vmem:[%s151 + $0x860] sm:$0xff] %v688
                %v690 = vld [vmem:[%s150 + $0x2188] sm:$0xff]
                %691 = vst [vmem:[%s151 + $0x868] sm:$0xff] %v690
                %v692 = vld [vmem:[%s150 + $0x21c0] sm:$0xff]
                %693 = vst [vmem:[%s151 + $0x870] sm:$0xff] %v692
                %v694 = vld [vmem:[%s150 + $0x21c8] sm:$0xff]
                %695 = vst [vmem:[%s151 + $0x878] sm:$0xff] %v694
                %v696 = vld [vmem:[%s150 + $0x2200] sm:$0xff]
                %697 = vst [vmem:[%s151 + $0x880] sm:$0xff] %v696
                %v698 = vld [vmem:[%s150 + $0x2208] sm:$0xff]
                %699 = vst [vmem:[%s151 + $0x888] sm:$0xff] %v698
                %v700 = vld [vmem:[%s150 + $0x2240] sm:$0xff]
                %701 = vst [vmem:[%s151 + $0x890] sm:$0xff] %v700
                %v702 = vld [vmem:[%s150 + $0x2248] sm:$0xff]
                %703 = vst [vmem:[%s151 + $0x898] sm:$0xff] %v702
                %v704 = vld [vmem:[%s150 + $0x2280] sm:$0xff]
                %705 = vst [vmem:[%s151 + $0x8a0] sm:$0xff] %v704
                %v706 = vld [vmem:[%s150 + $0x2288] sm:$0xff]
                %707 = vst [vmem:[%s151 + $0x8a8] sm:$0xff] %v706
                %v708 = vld [vmem:[%s150 + $0x22c0] sm:$0xff]
                %709 = vst [vmem:[%s151 + $0x8b0] sm:$0xff] %v708
                %v710 = vld [vmem:[%s150 + $0x22c8] sm:$0xff]
                %711 = vst [vmem:[%s151 + $0x8b8] sm:$0xff] %v710
                %v712 = vld [vmem:[%s150 + $0x2300] sm:$0xff]
                %713 = vst [vmem:[%s151 + $0x8c0] sm:$0xff] %v712
                %v714 = vld [vmem:[%s150 + $0x2308] sm:$0xff]
                %715 = vst [vmem:[%s151 + $0x8c8] sm:$0xff] %v714
                %v716 = vld [vmem:[%s150 + $0x2340] sm:$0xff]
                %717 = vst [vmem:[%s151 + $0x8d0] sm:$0xff] %v716
                %v718 = vld [vmem:[%s150 + $0x2348] sm:$0xff]
                %719 = vst [vmem:[%s151 + $0x8d8] sm:$0xff] %v718
                %v720 = vld [vmem:[%s150 + $0x2380] sm:$0xff]
                %721 = vst [vmem:[%s151 + $0x8e0] sm:$0xff] %v720
                %v722 = vld [vmem:[%s150 + $0x2388] sm:$0xff]
                %723 = vst [vmem:[%s151 + $0x8e8] sm:$0xff] %v722
                %v724 = vld [vmem:[%s150 + $0x23c0] sm:$0xff]
                %725 = vst [vmem:[%s151 + $0x8f0] sm:$0xff] %v724
                %v726 = vld [vmem:[%s150 + $0x23c8] sm:$0xff]
                %727 = vst [vmem:[%s151 + $0x8f8] sm:$0xff] %v726
                %v728 = vld [vmem:[%s150 + $0x2400] sm:$0xff]
                %729 = vst [vmem:[%s151 + $0x900] sm:$0xff] %v728
                %v730 = vld [vmem:[%s150 + $0x2408] sm:$0xff]
                %731 = vst [vmem:[%s151 + $0x908] sm:$0xff] %v730
                %v732 = vld [vmem:[%s150 + $0x2440] sm:$0xff]
                %733 = vst [vmem:[%s151 + $0x910] sm:$0xff] %v732
                %v734 = vld [vmem:[%s150 + $0x2448] sm:$0xff]
                %735 = vst [vmem:[%s151 + $0x918] sm:$0xff] %v734
                %v736 = vld [vmem:[%s150 + $0x2480] sm:$0xff]
                %737 = vst [vmem:[%s151 + $0x920] sm:$0xff] %v736
                %v738 = vld [vmem:[%s150 + $0x2488] sm:$0xff]
                %739 = vst [vmem:[%s151 + $0x928] sm:$0xff] %v738
                %v740 = vld [vmem:[%s150 + $0x24c0] sm:$0xff]
                %741 = vst [vmem:[%s151 + $0x930] sm:$0xff] %v740
                %v742 = vld [vmem:[%s150 + $0x24c8] sm:$0xff]
                %743 = vst [vmem:[%s151 + $0x938] sm:$0xff] %v742
                %v744 = vld [vmem:[%s150 + $0x2500] sm:$0xff]
                %745 = vst [vmem:[%s151 + $0x940] sm:$0xff] %v744
                %v746 = vld [vmem:[%s150 + $0x2508] sm:$0xff]
                %747 = vst [vmem:[%s151 + $0x948] sm:$0xff] %v746
                %v748 = vld [vmem:[%s150 + $0x2540] sm:$0xff]
                %749 = vst [vmem:[%s151 + $0x950] sm:$0xff] %v748
                %v750 = vld [vmem:[%s150 + $0x2548] sm:$0xff]
                %751 = vst [vmem:[%s151 + $0x958] sm:$0xff] %v750
                %v752 = vld [vmem:[%s150 + $0x2580] sm:$0xff]
                %753 = vst [vmem:[%s151 + $0x960] sm:$0xff] %v752
                %v754 = vld [vmem:[%s150 + $0x2588] sm:$0xff]
                %755 = vst [vmem:[%s151 + $0x968] sm:$0xff] %v754
                %v756 = vld [vmem:[%s150 + $0x25c0] sm:$0xff]
                %757 = vst [vmem:[%s151 + $0x970] sm:$0xff] %v756
                %v758 = vld [vmem:[%s150 + $0x25c8] sm:$0xff]
                %759 = vst [vmem:[%s151 + $0x978] sm:$0xff] %v758
                %v760 = vld [vmem:[%s150 + $0x2600] sm:$0xff]
                %761 = vst [vmem:[%s151 + $0x980] sm:$0xff] %v760
                %v762 = vld [vmem:[%s150 + $0x2608] sm:$0xff]
                %763 = vst [vmem:[%s151 + $0x988] sm:$0xff] %v762
                %v764 = vld [vmem:[%s150 + $0x2640] sm:$0xff]
                %765 = vst [vmem:[%s151 + $0x990] sm:$0xff] %v764
                %v766 = vld [vmem:[%s150 + $0x2648] sm:$0xff]
                %767 = vst [vmem:[%s151 + $0x998] sm:$0xff] %v766
                %v768 = vld [vmem:[%s150 + $0x2680] sm:$0xff]
                %769 = vst [vmem:[%s151 + $0x9a0] sm:$0xff] %v768
                %v770 = vld [vmem:[%s150 + $0x2688] sm:$0xff]
                %771 = vst [vmem:[%s151 + $0x9a8] sm:$0xff] %v770
                %v772 = vld [vmem:[%s150 + $0x26c0] sm:$0xff]
                %773 = vst [vmem:[%s151 + $0x9b0] sm:$0xff] %v772
                %v774 = vld [vmem:[%s150 + $0x26c8] sm:$0xff]
                %775 = vst [vmem:[%s151 + $0x9b8] sm:$0xff] %v774
                %v776 = vld [vmem:[%s150 + $0x2700] sm:$0xff]
                %777 = vst [vmem:[%s151 + $0x9c0] sm:$0xff] %v776
                %v778 = vld [vmem:[%s150 + $0x2708] sm:$0xff]
                %779 = vst [vmem:[%s151 + $0x9c8] sm:$0xff] %v778
                %v780 = vld [vmem:[%s150 + $0x2740] sm:$0xff]
                %781 = vst [vmem:[%s151 + $0x9d0] sm:$0xff] %v780
                %v782 = vld [vmem:[%s150 + $0x2748] sm:$0xff]
                %783 = vst [vmem:[%s151 + $0x9d8] sm:$0xff] %v782
                %v784 = vld [vmem:[%s150 + $0x2780] sm:$0xff]
                %785 = vst [vmem:[%s151 + $0x9e0] sm:$0xff] %v784
                %v786 = vld [vmem:[%s150 + $0x2788] sm:$0xff]
                %787 = vst [vmem:[%s151 + $0x9e8] sm:$0xff] %v786
                %v788 = vld [vmem:[%s150 + $0x27c0] sm:$0xff]
                %789 = vst [vmem:[%s151 + $0x9f0] sm:$0xff] %v788
                %v790 = vld [vmem:[%s150 + $0x27c8] sm:$0xff]
                %791 = vst [vmem:[%s151 + $0x9f8] sm:$0xff] %v790
                %v792 = vld [vmem:[%s150 + $0x2800] sm:$0xff]
                %793 = vst [vmem:[%s151 + $0xa00] sm:$0xff] %v792
                %v794 = vld [vmem:[%s150 + $0x2808] sm:$0xff]
                %795 = vst [vmem:[%s151 + $0xa08] sm:$0xff] %v794
                %v796 = vld [vmem:[%s150 + $0x2840] sm:$0xff]
                %797 = vst [vmem:[%s151 + $0xa10] sm:$0xff] %v796
                %v798 = vld [vmem:[%s150 + $0x2848] sm:$0xff]
                %799 = vst [vmem:[%s151 + $0xa18] sm:$0xff] %v798
                %v800 = vld [vmem:[%s150 + $0x2880] sm:$0xff]
                %801 = vst [vmem:[%s151 + $0xa20] sm:$0xff] %v800
                %v802 = vld [vmem:[%s150 + $0x2888] sm:$0xff]
                %803 = vst [vmem:[%s151 + $0xa28] sm:$0xff] %v802
                %v804 = vld [vmem:[%s150 + $0x28c0] sm:$0xff]
                %805 = vst [vmem:[%s151 + $0xa30] sm:$0xff] %v804
                %v806 = vld [vmem:[%s150 + $0x28c8] sm:$0xff]
                %807 = vst [vmem:[%s151 + $0xa38] sm:$0xff] %v806
                %v808 = vld [vmem:[%s150 + $0x2900] sm:$0xff]
                %809 = vst [vmem:[%s151 + $0xa40] sm:$0xff] %v808
                %v810 = vld [vmem:[%s150 + $0x2908] sm:$0xff]
                %811 = vst [vmem:[%s151 + $0xa48] sm:$0xff] %v810
                %v812 = vld [vmem:[%s150 + $0x2940] sm:$0xff]
                %813 = vst [vmem:[%s151 + $0xa50] sm:$0xff] %v812
                %v814 = vld [vmem:[%s150 + $0x2948] sm:$0xff]
                %815 = vst [vmem:[%s151 + $0xa58] sm:$0xff] %v814
                %v816 = vld [vmem:[%s150 + $0x2980] sm:$0xff]
                %817 = vst [vmem:[%s151 + $0xa60] sm:$0xff] %v816
                %v818 = vld [vmem:[%s150 + $0x2988] sm:$0xff]
                %819 = vst [vmem:[%s151 + $0xa68] sm:$0xff] %v818
                %v820 = vld [vmem:[%s150 + $0x29c0] sm:$0xff]
                %821 = vst [vmem:[%s151 + $0xa70] sm:$0xff] %v820
                %v822 = vld [vmem:[%s150 + $0x29c8] sm:$0xff]
                %823 = vst [vmem:[%s151 + $0xa78] sm:$0xff] %v822
                %v824 = vld [vmem:[%s150 + $0x2a00] sm:$0xff]
                %825 = vst [vmem:[%s151 + $0xa80] sm:$0xff] %v824
                %v826 = vld [vmem:[%s150 + $0x2a08] sm:$0xff]
                %827 = vst [vmem:[%s151 + $0xa88] sm:$0xff] %v826
                %v828 = vld [vmem:[%s150 + $0x2a40] sm:$0xff]
                %829 = vst [vmem:[%s151 + $0xa90] sm:$0xff] %v828
                %v830 = vld [vmem:[%s150 + $0x2a48] sm:$0xff]
                %831 = vst [vmem:[%s151 + $0xa98] sm:$0xff] %v830
                %v832 = vld [vmem:[%s150 + $0x2a80] sm:$0xff]
                %833 = vst [vmem:[%s151 + $0xaa0] sm:$0xff] %v832
                %v834 = vld [vmem:[%s150 + $0x2a88] sm:$0xff]
                %835 = vst [vmem:[%s151 + $0xaa8] sm:$0xff] %v834
                %v836 = vld [vmem:[%s150 + $0x2ac0] sm:$0xff]
                %837 = vst [vmem:[%s151 + $0xab0] sm:$0xff] %v836
                %v838 = vld [vmem:[%s150 + $0x2ac8] sm:$0xff]
                %839 = vst [vmem:[%s151 + $0xab8] sm:$0xff] %v838
                %v840 = vld [vmem:[%s150 + $0x2b00] sm:$0xff]
                %841 = vst [vmem:[%s151 + $0xac0] sm:$0xff] %v840
                %v842 = vld [vmem:[%s150 + $0x2b08] sm:$0xff]
                %843 = vst [vmem:[%s151 + $0xac8] sm:$0xff] %v842
                %v844 = vld [vmem:[%s150 + $0x2b40] sm:$0xff]
                %845 = vst [vmem:[%s151 + $0xad0] sm:$0xff] %v844
                %v846 = vld [vmem:[%s150 + $0x2b48] sm:$0xff]
                %847 = vst [vmem:[%s151 + $0xad8] sm:$0xff] %v846
                %v848 = vld [vmem:[%s150 + $0x2b80] sm:$0xff]
                %849 = vst [vmem:[%s151 + $0xae0] sm:$0xff] %v848
                %v850 = vld [vmem:[%s150 + $0x2b88] sm:$0xff]
                %851 = vst [vmem:[%s151 + $0xae8] sm:$0xff] %v850
                %v852 = vld [vmem:[%s150 + $0x2bc0] sm:$0xff]
                %853 = vst [vmem:[%s151 + $0xaf0] sm:$0xff] %v852
                %v854 = vld [vmem:[%s150 + $0x2bc8] sm:$0xff]
                %855 = vst [vmem:[%s151 + $0xaf8] sm:$0xff] %v854
                %v856 = vld [vmem:[%s150 + $0x2c00] sm:$0xff]
                %857 = vst [vmem:[%s151 + $0xb00] sm:$0xff] %v856
                %v858 = vld [vmem:[%s150 + $0x2c08] sm:$0xff]
                %859 = vst [vmem:[%s151 + $0xb08] sm:$0xff] %v858
                %v860 = vld [vmem:[%s150 + $0x2c40] sm:$0xff]
                %861 = vst [vmem:[%s151 + $0xb10] sm:$0xff] %v860
                %v862 = vld [vmem:[%s150 + $0x2c48] sm:$0xff]
                %863 = vst [vmem:[%s151 + $0xb18] sm:$0xff] %v862
                %v864 = vld [vmem:[%s150 + $0x2c80] sm:$0xff]
                %865 = vst [vmem:[%s151 + $0xb20] sm:$0xff] %v864
                %v866 = vld [vmem:[%s150 + $0x2c88] sm:$0xff]
                %867 = vst [vmem:[%s151 + $0xb28] sm:$0xff] %v866
                %v868 = vld [vmem:[%s150 + $0x2cc0] sm:$0xff]
                %869 = vst [vmem:[%s151 + $0xb30] sm:$0xff] %v868
                %v870 = vld [vmem:[%s150 + $0x2cc8] sm:$0xff]
                %871 = vst [vmem:[%s151 + $0xb38] sm:$0xff] %v870
                %v872 = vld [vmem:[%s150 + $0x2d00] sm:$0xff]
                %873 = vst [vmem:[%s151 + $0xb40] sm:$0xff] %v872
                %v874 = vld [vmem:[%s150 + $0x2d08] sm:$0xff]
                %875 = vst [vmem:[%s151 + $0xb48] sm:$0xff] %v874
                %v876 = vld [vmem:[%s150 + $0x2d40] sm:$0xff]
                %877 = vst [vmem:[%s151 + $0xb50] sm:$0xff] %v876
                %v878 = vld [vmem:[%s150 + $0x2d48] sm:$0xff]
                %879 = vst [vmem:[%s151 + $0xb58] sm:$0xff] %v878
                %v880 = vld [vmem:[%s150 + $0x2d80] sm:$0xff]
                %881 = vst [vmem:[%s151 + $0xb60] sm:$0xff] %v880
                %v882 = vld [vmem:[%s150 + $0x2d88] sm:$0xff]
                %883 = vst [vmem:[%s151 + $0xb68] sm:$0xff] %v882
                %v884 = vld [vmem:[%s150 + $0x2dc0] sm:$0xff]
                %885 = vst [vmem:[%s151 + $0xb70] sm:$0xff] %v884
                %v886 = vld [vmem:[%s150 + $0x2dc8] sm:$0xff]
                %887 = vst [vmem:[%s151 + $0xb78] sm:$0xff] %v886
                %v888 = vld [vmem:[%s150 + $0x2e00] sm:$0xff]
                %889 = vst [vmem:[%s151 + $0xb80] sm:$0xff] %v888
                %v890 = vld [vmem:[%s150 + $0x2e08] sm:$0xff]
                %891 = vst [vmem:[%s151 + $0xb88] sm:$0xff] %v890
                %v892 = vld [vmem:[%s150 + $0x2e40] sm:$0xff]
                %893 = vst [vmem:[%s151 + $0xb90] sm:$0xff] %v892
                %v894 = vld [vmem:[%s150 + $0x2e48] sm:$0xff]
                %895 = vst [vmem:[%s151 + $0xb98] sm:$0xff] %v894
                %v896 = vld [vmem:[%s150 + $0x2e80] sm:$0xff]
                %897 = vst [vmem:[%s151 + $0xba0] sm:$0xff] %v896
                %v898 = vld [vmem:[%s150 + $0x2e88] sm:$0xff]
                %899 = vst [vmem:[%s151 + $0xba8] sm:$0xff] %v898
                %v900 = vld [vmem:[%s150 + $0x2ec0] sm:$0xff]
                %901 = vst [vmem:[%s151 + $0xbb0] sm:$0xff] %v900
                %v902 = vld [vmem:[%s150 + $0x2ec8] sm:$0xff]
                %903 = vst [vmem:[%s151 + $0xbb8] sm:$0xff] %v902
                %v904 = vld [vmem:[%s150 + $0x2f00] sm:$0xff]
                %905 = vst [vmem:[%s151 + $0xbc0] sm:$0xff] %v904
                %v906 = vld [vmem:[%s150 + $0x2f08] sm:$0xff]
                %907 = vst [vmem:[%s151 + $0xbc8] sm:$0xff] %v906
                %v908 = vld [vmem:[%s150 + $0x2f40] sm:$0xff]
                %909 = vst [vmem:[%s151 + $0xbd0] sm:$0xff] %v908
                %v910 = vld [vmem:[%s150 + $0x2f48] sm:$0xff]
                %911 = vst [vmem:[%s151 + $0xbd8] sm:$0xff] %v910
                %v912 = vld [vmem:[%s150 + $0x2f80] sm:$0xff]
                %913 = vst [vmem:[%s151 + $0xbe0] sm:$0xff] %v912
                %v914 = vld [vmem:[%s150 + $0x2f88] sm:$0xff]
                %915 = vst [vmem:[%s151 + $0xbe8] sm:$0xff] %v914
                %v916 = vld [vmem:[%s150 + $0x2fc0] sm:$0xff]
                %917 = vst [vmem:[%s151 + $0xbf0] sm:$0xff] %v916
                %v918 = vld [vmem:[%s150 + $0x2fc8] sm:$0xff]
                %919 = vst [vmem:[%s151 + $0xbf8] sm:$0xff] %v918
                %v920 = vld [vmem:[%s150 + $0x3000] sm:$0xff]
                %921 = vst [vmem:[%s151 + $0xc00] sm:$0xff] %v920
                %v922 = vld [vmem:[%s150 + $0x3008] sm:$0xff]
                %923 = vst [vmem:[%s151 + $0xc08] sm:$0xff] %v922
                %v924 = vld [vmem:[%s150 + $0x3040] sm:$0xff]
                %925 = vst [vmem:[%s151 + $0xc10] sm:$0xff] %v924
                %v926 = vld [vmem:[%s150 + $0x3048] sm:$0xff]
                %927 = vst [vmem:[%s151 + $0xc18] sm:$0xff] %v926
                %v928 = vld [vmem:[%s150 + $0x3080] sm:$0xff]
                %929 = vst [vmem:[%s151 + $0xc20] sm:$0xff] %v928
                %v930 = vld [vmem:[%s150 + $0x3088] sm:$0xff]
                %931 = vst [vmem:[%s151 + $0xc28] sm:$0xff] %v930
                %v932 = vld [vmem:[%s150 + $0x30c0] sm:$0xff]
                %933 = vst [vmem:[%s151 + $0xc30] sm:$0xff] %v932
                %v934 = vld [vmem:[%s150 + $0x30c8] sm:$0xff]
                %935 = vst [vmem:[%s151 + $0xc38] sm:$0xff] %v934
                %v936 = vld [vmem:[%s150 + $0x3100] sm:$0xff]
                %937 = vst [vmem:[%s151 + $0xc40] sm:$0xff] %v936
                %v938 = vld [vmem:[%s150 + $0x3108] sm:$0xff]
                %939 = vst [vmem:[%s151 + $0xc48] sm:$0xff] %v938
                %v940 = vld [vmem:[%s150 + $0x3140] sm:$0xff]
                %941 = vst [vmem:[%s151 + $0xc50] sm:$0xff] %v940
                %v942 = vld [vmem:[%s150 + $0x3148] sm:$0xff]
                %943 = vst [vmem:[%s151 + $0xc58] sm:$0xff] %v942
                %v944 = vld [vmem:[%s150 + $0x3180] sm:$0xff]
                %945 = vst [vmem:[%s151 + $0xc60] sm:$0xff] %v944
                %v946 = vld [vmem:[%s150 + $0x3188] sm:$0xff]
                %947 = vst [vmem:[%s151 + $0xc68] sm:$0xff] %v946
                %v948 = vld [vmem:[%s150 + $0x31c0] sm:$0xff]
                %949 = vst [vmem:[%s151 + $0xc70] sm:$0xff] %v948
                %v950 = vld [vmem:[%s150 + $0x31c8] sm:$0xff]
                %951 = vst [vmem:[%s151 + $0xc78] sm:$0xff] %v950
                %v952 = vld [vmem:[%s150 + $0x3200] sm:$0xff]
                %953 = vst [vmem:[%s151 + $0xc80] sm:$0xff] %v952
                %v954 = vld [vmem:[%s150 + $0x3208] sm:$0xff]
                %955 = vst [vmem:[%s151 + $0xc88] sm:$0xff] %v954
                %v956 = vld [vmem:[%s150 + $0x3240] sm:$0xff]
                %957 = vst [vmem:[%s151 + $0xc90] sm:$0xff] %v956
                %v958 = vld [vmem:[%s150 + $0x3248] sm:$0xff]
                %959 = vst [vmem:[%s151 + $0xc98] sm:$0xff] %v958
                %v960 = vld [vmem:[%s150 + $0x3280] sm:$0xff]
                %961 = vst [vmem:[%s151 + $0xca0] sm:$0xff] %v960
                %v962 = vld [vmem:[%s150 + $0x3288] sm:$0xff]
                %963 = vst [vmem:[%s151 + $0xca8] sm:$0xff] %v962
                %v964 = vld [vmem:[%s150 + $0x32c0] sm:$0xff]
                %965 = vst [vmem:[%s151 + $0xcb0] sm:$0xff] %v964
                %v966 = vld [vmem:[%s150 + $0x32c8] sm:$0xff]
                %967 = vst [vmem:[%s151 + $0xcb8] sm:$0xff] %v966
                %v968 = vld [vmem:[%s150 + $0x3300] sm:$0xff]
                %969 = vst [vmem:[%s151 + $0xcc0] sm:$0xff] %v968
                %v970 = vld [vmem:[%s150 + $0x3308] sm:$0xff]
                %971 = vst [vmem:[%s151 + $0xcc8] sm:$0xff] %v970
                %v972 = vld [vmem:[%s150 + $0x3340] sm:$0xff]
                %973 = vst [vmem:[%s151 + $0xcd0] sm:$0xff] %v972
                %v974 = vld [vmem:[%s150 + $0x3348] sm:$0xff]
                %975 = vst [vmem:[%s151 + $0xcd8] sm:$0xff] %v974
                %v976 = vld [vmem:[%s150 + $0x3380] sm:$0xff]
                %977 = vst [vmem:[%s151 + $0xce0] sm:$0xff] %v976
                %v978 = vld [vmem:[%s150 + $0x3388] sm:$0xff]
                %979 = vst [vmem:[%s151 + $0xce8] sm:$0xff] %v978
                %v980 = vld [vmem:[%s150 + $0x33c0] sm:$0xff]
                %981 = vst [vmem:[%s151 + $0xcf0] sm:$0xff] %v980
                %v982 = vld [vmem:[%s150 + $0x33c8] sm:$0xff]
                %983 = vst [vmem:[%s151 + $0xcf8] sm:$0xff] %v982
              $region37: #{siamese_forward.3} parent=31 // loop_footer
                %s149 = sadd.s32 1, %s145
              $region38: #{siamese_forward.3} parent=31 // loop_footer_branch
                %144 = sbr.rel target = $region34
              $region39: #{siamese_forward.3} parent=31 // loop_exit
                _
            $region32: #{siamese_forward.3} parent=27 // pred_fallthru
              _
            // Predicated region
            $region40: #{siamese_forward.3} parent=27 // pred_check
              _
            $region41: #{siamese_forward.3} parent=27 // pred_check_branch
              %985 = sbr.rel target = $region43
            $region42: #{siamese_forward.3} parent=27 // pred_region
              _
            $region43: #{siamese_forward.3} parent=27 // pred_fallthru
              _
          $region28: #{siamese_forward.3} parent=23 // pred_fallthru
            _
          %986 = vnop
        $region24: #{siamese_forward.3} parent=19 // pred_fallthru
          _
        // Predicated region
        $region44: #{siamese_forward.3} parent=19 // pred_check
          %p987 = pneg %p76
        $region45: #{siamese_forward.3} parent=19 // pred_check_branch
          %989 = sbr.rel (%p987) target = $region47
        $region46: #{siamese_forward.3} parent=19 // pred_region
          %s990 = smul.u32 4, %s9
          %p991 = scmp.lt.s32.totalorder %s990, 15
          %s992 = scalar_select %p991, %s990, 15
          %s993 = scalar_lea.vmem %s2, %s992
          %s994 = smul.u32 4, %s9
        $region47: #{siamese_forward.3} parent=19 // pred_fallthru
          _
      $region20: #{siamese_forward.3} parent=5 // pred_fallthru
        _
      %p995 = scmp.le.s32.totalorder 1, %s9
      %p996 = scmp.lt.s32.totalorder %s9, 5
      %p997 = pnand %p995, %p996
      %p998 = pneg %p997
      // Predicated region
      $region48: #{siamese_forward.3} parent=5 // pred_check
        _
      $region49: #{siamese_forward.3} parent=5 // pred_check_branch
        %1000 = sbr.rel (%p997) target = $region51
      $region50: #{siamese_forward.3} parent=5 // pred_region
        %s1001 = ssub.s32 %s9, 1
        %s1002 = sand.u32 %s43, 1
        %s1003 = sand.u32 %s43, 1
        %s1004 = smul.addr %s1003, 3328
        %s1005 = scalar_lea.vmem [#allocation2], %s1004
        // Predicated region
        $region52: #{siamese_forward.3} parent=50 // pred_check
          %p1006 = pneg %p56
        $region53: #{siamese_forward.3} parent=50 // pred_check_branch
          %1008 = sbr.rel (%p1006) target = $region55
        $region54: #{siamese_forward.3} parent=50 // pred_region
          _
        $region55: #{siamese_forward.3} parent=50 // pred_fallthru
          _
        %p1009 = pneg %p30
        %p1010 = pneg %p27
        %s1011 = sand.u32 %s43, 1
        %s1012 = sand.u32 %s43, 1
        %s1013 = smul.addr %s1012, 3328
        %s1014 = scalar_lea.vmem [#allocation2], %s1013
        %p1015 = pneg %p56
        %p1016 = pneg %p53
        %s1017 = smul.u32 4, %s14
        %p1018 = scmp.lt.s32.totalorder %s1017, 15
        %s1019 = scalar_select %p1018, %s1017, 15
        %s1020 = scalar_lea.vmem %s2, %s1019
        %p1021 = pneg %p82
        %p1022 = pneg %p79
        %p1023 = pneg %p108
        %p1024 = pneg %p105
        %s1025 = smul.u32 4, %s14
        %p1026 = scmp.lt.s32.totalorder %s1025, 15
        %s1027 = scalar_select %p1026, %s1025, 15
        %s1028 = smul.addr %s1027, 8
        %s1029 = scalar_lea.vmem %s3, %s1028
        %s1030 = smul.u32 4, %s14
        %s1031 = smul.u32 4, %s14
        %p1032 = scmp.lt.s32.totalorder %s1031, 15
        %s1033 = scalar_select %p1032, %s1031, 15
        %s1034 = scalar_lea.vmem %s2, %s1033
        %s1035 = smul.u32 4, %s14
        %s1036 = smul.u32 4, %s14
        %p1037 = scmp.lt.s32.totalorder %s1036, 15
        %s1038 = scalar_select %p1037, %s1036, 15
        %s1039 = smul.addr %s1038, 8
        %s1040 = scalar_lea.vmem %s3, %s1039
        %s1041 = smul.u32 4, %s14
        %v1043 = vld [vmem:[%s0] sm:$0xff]
        %v1044 = vld [vmem:[%s1005] sm:$0xff]
        %v1045 = vld [vmem:[%s1005 + $0x8] sm:$0xff]
        %v1046 = vld [vmem:[%s1005 + $0x10] sm:$0xff]
        %v1047 = vld [vmem:[%s1005 + $0x18] sm:$0xff]
        %v1048 = vld [vmem:[%s1005 + $0x20] sm:$0xff]
        %v1049 = vld [vmem:[%s1005 + $0x28] sm:$0xff]
        %v1050 = vld [vmem:[%s1005 + $0x30] sm:$0xff]
        %v1051 = vld [vmem:[%s1005 + $0x38] sm:$0xff]
        %v1052 = vld [vmem:[%s1005 + $0x40] sm:$0xff]
        %v1053 = vld [vmem:[%s1005 + $0x48] sm:$0xff]
        %v1054 = vld [vmem:[%s1005 + $0x50] sm:$0xff]
        %v1055 = vld [vmem:[%s1005 + $0x58] sm:$0xff]
        %v1056 = vld [vmem:[%s1005 + $0x60] sm:$0xff]
        %v1057 = vld [vmem:[%s1005 + $0x68] sm:$0xff]
        %v1058 = vld [vmem:[%s1005 + $0x70] sm:$0xff]
        %v1059 = vld [vmem:[%s1005 + $0x78] sm:$0xff]
        %v1060 = vld [vmem:[%s1005 + $0x80] sm:$0xff]
        %v1061 = vld [vmem:[%s1005 + $0x88] sm:$0xff]
        %v1062 = vld [vmem:[%s1005 + $0x90] sm:$0xff]
        %v1063 = vld [vmem:[%s1005 + $0x98] sm:$0xff]
        %v1064 = vld [vmem:[%s1005 + $0xa0] sm:$0xff]
        %v1065 = vld [vmem:[%s1005 + $0xa8] sm:$0xff]
        %v1066 = vld [vmem:[%s1005 + $0xb0] sm:$0xff]
        %v1067 = vld [vmem:[%s1005 + $0xb8] sm:$0xff]
        %v1068 = vld [vmem:[%s1005 + $0xc0] sm:$0xff]
        %v1069 = vld [vmem:[%s1005 + $0xc8] sm:$0xff]
        %v1070 = vld [vmem:[%s1005 + $0xd0] sm:$0xff]
        %v1071 = vld [vmem:[%s1005 + $0xd8] sm:$0xff]
        %v1072 = vld [vmem:[%s1005 + $0xe0] sm:$0xff]
        %v1073 = vld [vmem:[%s1005 + $0xe8] sm:$0xff]
        %v1074 = vld [vmem:[%s1005 + $0xf0] sm:$0xff]
        %v1075 = vld [vmem:[%s1005 + $0xf8] sm:$0xff]
        %v1076 = vld [vmem:[%s1005 + $0x100] sm:$0xff]
        %v1077 = vld [vmem:[%s1005 + $0x108] sm:$0xff]
        %v1078 = vld [vmem:[%s1005 + $0x110] sm:$0xff]
        %v1079 = vld [vmem:[%s1005 + $0x118] sm:$0xff]
        %v1080 = vld [vmem:[%s1005 + $0x120] sm:$0xff]
        %v1081 = vld [vmem:[%s1005 + $0x128] sm:$0xff]
        %v1082 = vld [vmem:[%s1005 + $0x130] sm:$0xff]
        %v1083 = vld [vmem:[%s1005 + $0x138] sm:$0xff]
        %v1084 = vld [vmem:[%s1005 + $0x140] sm:$0xff]
        %v1085 = vld [vmem:[%s1005 + $0x148] sm:$0xff]
        %v1086 = vld [vmem:[%s1005 + $0x150] sm:$0xff]
        %v1087 = vld [vmem:[%s1005 + $0x158] sm:$0xff]
        %v1088 = vld [vmem:[%s1005 + $0x160] sm:$0xff]
        %v1089 = vld [vmem:[%s1005 + $0x168] sm:$0xff]
        %v1090 = vld [vmem:[%s1005 + $0x170] sm:$0xff]
        %v1091 = vld [vmem:[%s1005 + $0x178] sm:$0xff]
        %v1092 = vld [vmem:[%s1005 + $0x180] sm:$0xff]
        %v1093 = vld [vmem:[%s1005 + $0x188] sm:$0xff]
        %v1094 = vld [vmem:[%s1005 + $0x190] sm:$0xff]
        %v1095 = vld [vmem:[%s1005 + $0x198] sm:$0xff]
        %s1096 = scalar_lea.vmem %s0, 8
        %v1097 = vld [vmem:[%s1096] sm:$0xff]
        %v1098 = vld [vmem:[%s1005 + $0x1a0] sm:$0xff]
        %v1099 = vld [vmem:[%s1005 + $0x1a8] sm:$0xff]
        %v1100 = vld [vmem:[%s1005 + $0x1b0] sm:$0xff]
        %v1101 = vld [vmem:[%s1005 + $0x1b8] sm:$0xff]
        %v1102 = vld [vmem:[%s1005 + $0x1c0] sm:$0xff]
        %v1103 = vld [vmem:[%s1005 + $0x1c8] sm:$0xff]
        %v1104 = vld [vmem:[%s1005 + $0x1d0] sm:$0xff]
        %v1105 = vld [vmem:[%s1005 + $0x1d8] sm:$0xff]
        %v1106 = vld [vmem:[%s1005 + $0x1e0] sm:$0xff]
        %v1107 = vld [vmem:[%s1005 + $0x1e8] sm:$0xff]
        %v1108 = vld [vmem:[%s1005 + $0x1f0] sm:$0xff]
        %v1109 = vld [vmem:[%s1005 + $0x1f8] sm:$0xff]
        %v1110 = vld [vmem:[%s1005 + $0x200] sm:$0xff]
        %v1111 = vld [vmem:[%s1005 + $0x208] sm:$0xff]
        %v1112 = vld [vmem:[%s1005 + $0x210] sm:$0xff]
        %v1113 = vld [vmem:[%s1005 + $0x218] sm:$0xff]
        %v1114 = vld [vmem:[%s1005 + $0x220] sm:$0xff]
        %v1115 = vld [vmem:[%s1005 + $0x228] sm:$0xff]
        %v1116 = vld [vmem:[%s1005 + $0x230] sm:$0xff]
        %v1117 = vld [vmem:[%s1005 + $0x238] sm:$0xff]
        %v1118 = vld [vmem:[%s1005 + $0x240] sm:$0xff]
        %v1119 = vld [vmem:[%s1005 + $0x248] sm:$0xff]
        %v1120 = vld [vmem:[%s1005 + $0x250] sm:$0xff]
        %v1121 = vld [vmem:[%s1005 + $0x258] sm:$0xff]
        %v1122 = vld [vmem:[%s1005 + $0x260] sm:$0xff]
        %v1123 = vld [vmem:[%s1005 + $0x268] sm:$0xff]
        %v1124 = vld [vmem:[%s1005 + $0x270] sm:$0xff]
        %v1125 = vld [vmem:[%s1005 + $0x278] sm:$0xff]
        %v1126 = vld [vmem:[%s1005 + $0x280] sm:$0xff]
        %v1127 = vld [vmem:[%s1005 + $0x288] sm:$0xff]
        %v1128 = vld [vmem:[%s1005 + $0x290] sm:$0xff]
        %v1129 = vld [vmem:[%s1005 + $0x298] sm:$0xff]
        %v1130 = vld [vmem:[%s1005 + $0x2a0] sm:$0xff]
        %v1131 = vld [vmem:[%s1005 + $0x2a8] sm:$0xff]
        %v1132 = vld [vmem:[%s1005 + $0x2b0] sm:$0xff]
        %v1133 = vld [vmem:[%s1005 + $0x2b8] sm:$0xff]
        %v1134 = vld [vmem:[%s1005 + $0x2c0] sm:$0xff]
        %v1135 = vld [vmem:[%s1005 + $0x2c8] sm:$0xff]
        %v1136 = vld [vmem:[%s1005 + $0x2d0] sm:$0xff]
        %v1137 = vld [vmem:[%s1005 + $0x2d8] sm:$0xff]
        %v1138 = vld [vmem:[%s1005 + $0x2e0] sm:$0xff]
        %v1139 = vld [vmem:[%s1005 + $0x2e8] sm:$0xff]
        %v1140 = vld [vmem:[%s1005 + $0x2f0] sm:$0xff]
        %v1141 = vld [vmem:[%s1005 + $0x2f8] sm:$0xff]
        %v1142 = vld [vmem:[%s1005 + $0x300] sm:$0xff]
        %v1143 = vld [vmem:[%s1005 + $0x308] sm:$0xff]
        %v1144 = vld [vmem:[%s1005 + $0x310] sm:$0xff]
        %v1145 = vld [vmem:[%s1005 + $0x318] sm:$0xff]
        %v1146 = vld [vmem:[%s1005 + $0x320] sm:$0xff]
        %v1147 = vld [vmem:[%s1005 + $0x328] sm:$0xff]
        %v1148 = vld [vmem:[%s1005 + $0x330] sm:$0xff]
        %v1149 = vld [vmem:[%s1005 + $0x338] sm:$0xff]
        %v1151 = vunpack.c.l.b16 %v1097
        %v1152 = vunpack.c.h.b16 %v1097
        %v1153 = vpack.c.b16 %v1151, %v1151
        %v1154 = vpack.c.b16 %v1152, %v1152
        %v1208 = vunpack.c.l.b16 %v1098
        %v1209 = vunpack.c.h.b16 %v1098
        %v1210 = vunpack.c.l.b16 %v1099
        %v1211 = vunpack.c.h.b16 %v1099
        %v1212 = vunpack.c.l.b16 %v1100
        %v1213 = vunpack.c.h.b16 %v1100
        %v1214 = vunpack.c.l.b16 %v1101
        %v1215 = vunpack.c.h.b16 %v1101
        %v1216 = vunpack.c.l.b16 %v1102
        %v1217 = vunpack.c.h.b16 %v1102
        %v1218 = vunpack.c.l.b16 %v1103
        %v1219 = vunpack.c.h.b16 %v1103
        %v1220 = vunpack.c.l.b16 %v1104
        %v1221 = vunpack.c.h.b16 %v1104
        %v1222 = vunpack.c.l.b16 %v1105
        %v1223 = vunpack.c.h.b16 %v1105
        %v1224 = vunpack.c.l.b16 %v1106
        %v1225 = vunpack.c.h.b16 %v1106
        %v1226 = vunpack.c.l.b16 %v1107
        %v1227 = vunpack.c.h.b16 %v1107
        %v1228 = vunpack.c.l.b16 %v1108
        %v1229 = vunpack.c.h.b16 %v1108
        %v1230 = vunpack.c.l.b16 %v1109
        %v1231 = vunpack.c.h.b16 %v1109
        %v1232 = vunpack.c.l.b16 %v1110
        %v1233 = vunpack.c.h.b16 %v1110
        %v1234 = vunpack.c.l.b16 %v1111
        %v1235 = vunpack.c.h.b16 %v1111
        %v1236 = vunpack.c.l.b16 %v1112
        %v1237 = vunpack.c.h.b16 %v1112
        %v1238 = vunpack.c.l.b16 %v1113
        %v1239 = vunpack.c.h.b16 %v1113
        %v1240 = vunpack.c.l.b16 %v1114
        %v1241 = vunpack.c.h.b16 %v1114
        %v1242 = vunpack.c.l.b16 %v1115
        %v1243 = vunpack.c.h.b16 %v1115
        %v1244 = vunpack.c.l.b16 %v1116
        %v1245 = vunpack.c.h.b16 %v1116
        %v1246 = vunpack.c.l.b16 %v1117
        %v1247 = vunpack.c.h.b16 %v1117
        %v1248 = vunpack.c.l.b16 %v1118
        %v1249 = vunpack.c.h.b16 %v1118
        %v1250 = vunpack.c.l.b16 %v1119
        %v1251 = vunpack.c.h.b16 %v1119
        %v1252 = vunpack.c.l.b16 %v1120
        %v1253 = vunpack.c.h.b16 %v1120
        %v1254 = vunpack.c.l.b16 %v1121
        %v1255 = vunpack.c.h.b16 %v1121
        %v1256 = vunpack.c.l.b16 %v1122
        %v1257 = vunpack.c.h.b16 %v1122
        %v1258 = vunpack.c.l.b16 %v1123
        %v1259 = vunpack.c.h.b16 %v1123
        %v1260 = vunpack.c.l.b16 %v1124
        %v1261 = vunpack.c.h.b16 %v1124
        %v1262 = vunpack.c.l.b16 %v1125
        %v1263 = vunpack.c.h.b16 %v1125
        %v1264 = vunpack.c.l.b16 %v1126
        %v1265 = vunpack.c.h.b16 %v1126
        %v1266 = vunpack.c.l.b16 %v1127
        %v1267 = vunpack.c.h.b16 %v1127
        %v1268 = vunpack.c.l.b16 %v1128
        %v1269 = vunpack.c.h.b16 %v1128
        %v1270 = vunpack.c.l.b16 %v1129
        %v1271 = vunpack.c.h.b16 %v1129
        %v1272 = vunpack.c.l.b16 %v1130
        %v1273 = vunpack.c.h.b16 %v1130
        %v1274 = vunpack.c.l.b16 %v1131
        %v1275 = vunpack.c.h.b16 %v1131
        %v1276 = vunpack.c.l.b16 %v1132
        %v1277 = vunpack.c.h.b16 %v1132
        %v1278 = vunpack.c.l.b16 %v1133
        %v1279 = vunpack.c.h.b16 %v1133
        %v1280 = vunpack.c.l.b16 %v1134
        %v1281 = vunpack.c.h.b16 %v1134
        %v1282 = vunpack.c.l.b16 %v1135
        %v1283 = vunpack.c.h.b16 %v1135
        %v1284 = vunpack.c.l.b16 %v1136
        %v1285 = vunpack.c.h.b16 %v1136
        %v1286 = vunpack.c.l.b16 %v1137
        %v1287 = vunpack.c.h.b16 %v1137
        %v1288 = vunpack.c.l.b16 %v1138
        %v1289 = vunpack.c.h.b16 %v1138
        %v1290 = vunpack.c.l.b16 %v1139
        %v1291 = vunpack.c.h.b16 %v1139
        %v1292 = vunpack.c.l.b16 %v1140
        %v1293 = vunpack.c.h.b16 %v1140
        %v1294 = vunpack.c.l.b16 %v1141
        %v1295 = vunpack.c.h.b16 %v1141
        %v1296 = vunpack.c.l.b16 %v1142
        %v1297 = vunpack.c.h.b16 %v1142
        %v1298 = vunpack.c.l.b16 %v1143
        %v1299 = vunpack.c.h.b16 %v1143
        %v1300 = vunpack.c.l.b16 %v1144
        %v1301 = vunpack.c.h.b16 %v1144
        %v1302 = vunpack.c.l.b16 %v1145
        %v1303 = vunpack.c.h.b16 %v1145
        %v1304 = vunpack.c.l.b16 %v1146
        %v1305 = vunpack.c.h.b16 %v1146
        %v1306 = vunpack.c.l.b16 %v1147
        %v1307 = vunpack.c.h.b16 %v1147
        %v1308 = vunpack.c.l.b16 %v1148
        %v1309 = vunpack.c.h.b16 %v1148
        %v1310 = vunpack.c.l.b16 %v1149
        %v1311 = vunpack.c.h.b16 %v1149
        %v1312 = vpack.c.b16 %v1212, %v1208
        %v1313 = vpack.c.b16 %v1213, %v1209
        %v1314 = vpack.c.b16 %v1214, %v1210
        %v1315 = vpack.c.b16 %v1215, %v1211
        %v1316 = vpack.c.b16 %v1220, %v1216
        %v1317 = vpack.c.b16 %v1221, %v1217
        %v1318 = vpack.c.b16 %v1222, %v1218
        %v1319 = vpack.c.b16 %v1223, %v1219
        %v1320 = vpack.c.b16 %v1228, %v1224
        %v1321 = vpack.c.b16 %v1229, %v1225
        %v1322 = vpack.c.b16 %v1230, %v1226
        %v1323 = vpack.c.b16 %v1231, %v1227
        %v1324 = vpack.c.b16 %v1236, %v1232
        %v1325 = vpack.c.b16 %v1237, %v1233
        %v1326 = vpack.c.b16 %v1238, %v1234
        %v1327 = vpack.c.b16 %v1239, %v1235
        %v1328 = vpack.c.b16 %v1244, %v1240
        %v1329 = vpack.c.b16 %v1245, %v1241
        %v1330 = vpack.c.b16 %v1246, %v1242
        %v1331 = vpack.c.b16 %v1247, %v1243
        %v1332 = vpack.c.b16 %v1252, %v1248
        %v1333 = vpack.c.b16 %v1253, %v1249
        %v1334 = vpack.c.b16 %v1254, %v1250
        %v1335 = vpack.c.b16 %v1255, %v1251
        %v1336 = vpack.c.b16 %v1260, %v1256
        %v1337 = vpack.c.b16 %v1261, %v1257
        %v1338 = vpack.c.b16 %v1262, %v1258
        %v1339 = vpack.c.b16 %v1263, %v1259
        %v1340 = vpack.c.b16 %v1268, %v1264
        %v1341 = vpack.c.b16 %v1269, %v1265
        %v1342 = vpack.c.b16 %v1270, %v1266
        %v1343 = vpack.c.b16 %v1271, %v1267
        %v1344 = vpack.c.b16 %v1276, %v1272
        %v1345 = vpack.c.b16 %v1277, %v1273
        %v1346 = vpack.c.b16 %v1278, %v1274
        %v1347 = vpack.c.b16 %v1279, %v1275
        %v1348 = vpack.c.b16 %v1284, %v1280
        %v1349 = vpack.c.b16 %v1285, %v1281
        %v1350 = vpack.c.b16 %v1286, %v1282
        %v1351 = vpack.c.b16 %v1287, %v1283
        %v1352 = vpack.c.b16 %v1292, %v1288
        %v1353 = vpack.c.b16 %v1293, %v1289
        %v1354 = vpack.c.b16 %v1294, %v1290
        %v1355 = vpack.c.b16 %v1295, %v1291
        %v1356 = vpack.c.b16 %v1300, %v1296
        %v1357 = vpack.c.b16 %v1301, %v1297
        %v1358 = vpack.c.b16 %v1302, %v1298
        %v1359 = vpack.c.b16 %v1303, %v1299
        %v1360 = vpack.c.b16 %v1308, %v1304
        %v1361 = vpack.c.b16 %v1309, %v1305
        %v1362 = vpack.c.b16 %v1310, %v1306
        %v1363 = vpack.c.b16 %v1311, %v1307
        %vm1416 = vcmask 654336
        %v1418 = vsel %vm1416, %v1154, 0
        %1420 = vmatprep.subr.bf16.mxu0 %v1313
        %1421 = vmatpush1.bf16.msra.mxu0 %v1312
        %1422 = vmatprep.subr.bf16.mxu0 %v1317
        %1423 = vmatpush1.bf16.msra.mxu0 %v1316
        %1424 = vmatprep.subr.bf16.mxu0 %v1321
        %1425 = vmatpush1.bf16.msra.mxu0 %v1320
        %1426 = vmatprep.subr.bf16.mxu0 %v1325
        %1427 = vmatpush1.bf16.msra.mxu0 %v1324
        %1428 = vmatprep.subr.bf16.mxu0 %v1329
        %1429 = vmatpush1.bf16.msra.mxu0 %v1328
        %1430 = vmatprep.subr.bf16.mxu0 %v1333
        %1431 = vmatpush1.bf16.msra.mxu0 %v1332
        %1432 = vmatprep.subr.bf16.mxu0 %v1337
        %1433 = vmatpush1.bf16.msra.mxu0 %v1336
        %1434 = vmatprep.subr.bf16.mxu0 %v1341
        %1435 = vmatpush1.bf16.msra.mxu0 %v1340
        %1436 = vmatprep.subr.bf16.mxu0 %v1345
        %1437 = vmatpush1.bf16.msra.mxu0 %v1344
        %1438 = vmatprep.subr.bf16.mxu0 %v1349
        %1439 = vmatpush1.bf16.msra.mxu0 %v1348
        %1440 = vmatprep.subr.bf16.mxu0 %v1353
        %1441 = vmatpush1.bf16.msra.mxu0 %v1352
        %1442 = vmatprep.subr.bf16.mxu0 %v1357
        %1443 = vmatpush1.bf16.msra.mxu0 %v1356
        %1444 = vmatprep.subr.bf16.mxu0 %v1361
        %1445 = vmatpush1.bf16.msra.mxu0 %v1360
        %1446 = vmatprep.subr.bf16.mxu0 0
        %1447 = vmatpush1.bf16.msra.mxu0 0
        %1448 = vmatprep.subr.bf16.mxu0 0
        %1449 = vmatpush1.bf16.msra.mxu0 0
        %1450 = vmatprep.subr.bf16.mxu0 0
        %1451 = vmatpush1.bf16.msra.mxu0 0
        %1452 = vmatprep.mubr.bf16.mxu0 %v1418
        %1453 = vmatmul.mubr.bf16.gmra.mrb[0].mxu0 %v1153
        %v1454 = vpop.f32.mrb[0].mxu0
        %v1455 = vadd.f32 0.0, %v1454
        %v1456 = vpop.f32.mrb[0].mxu0
        %v1457 = vadd.f32 0.0, %v1456
        %v1458 = vpop.f32.mrb[0].mxu0
        %v1459 = vpop.f32.mrb[0].mxu0
        %1460 = vdwg.mxu0
        %1461 = vmatprep.subr.bf16.mxu0 %v1315
        %1462 = vmatpush1.bf16.msra.mxu0 %v1314
        %1463 = vmatprep.subr.bf16.mxu0 %v1319
        %1464 = vmatpush1.bf16.msra.mxu0 %v1318
        %1465 = vmatprep.subr.bf16.mxu0 %v1323
        %1466 = vmatpush1.bf16.msra.mxu0 %v1322
        %1467 = vmatprep.subr.bf16.mxu0 %v1327
        %1468 = vmatpush1.bf16.msra.mxu0 %v1326
        %1469 = vmatprep.subr.bf16.mxu0 %v1331
        %1470 = vmatpush1.bf16.msra.mxu0 %v1330
        %1471 = vmatprep.subr.bf16.mxu0 %v1335
        %1472 = vmatpush1.bf16.msra.mxu0 %v1334
        %1473 = vmatprep.subr.bf16.mxu0 %v1339
        %1474 = vmatpush1.bf16.msra.mxu0 %v1338
        %1475 = vmatprep.subr.bf16.mxu0 %v1343
        %1476 = vmatpush1.bf16.msra.mxu0 %v1342
        %1477 = vmatprep.subr.bf16.mxu0 %v1347
        %1478 = vmatpush1.bf16.msra.mxu0 %v1346
        %1479 = vmatprep.subr.bf16.mxu0 %v1351
        %1480 = vmatpush1.bf16.msra.mxu0 %v1350
        %1481 = vmatprep.subr.bf16.mxu0 %v1355
        %1482 = vmatpush1.bf16.msra.mxu0 %v1354
        %1483 = vmatprep.subr.bf16.mxu0 %v1359
        %1484 = vmatpush1.bf16.msra.mxu0 %v1358
        %1485 = vmatprep.subr.bf16.mxu0 %v1363
        %1486 = vmatpush1.bf16.msra.mxu0 %v1362
        %1487 = vmatprep.subr.bf16.mxu0 0
        %1488 = vmatpush1.bf16.msra.mxu0 0
        %1489 = vmatprep.subr.bf16.mxu0 0
        %1490 = vmatpush1.bf16.msra.mxu0 0
        %1491 = vmatprep.subr.bf16.mxu0 0
        %1492 = vmatpush1.bf16.msra.mxu0 0
        %1493 = vmatprep.mubr.bf16.mxu0 %v1418
        %1494 = vmatmul.mubr.bf16.gmra.mrb[0].mxu0 %v1153
        %v1495 = vpop.f32.mrb[0].mxu0
        %v1496 = vadd.f32 0.0, %v1495
        %v1497 = vpop.f32.mrb[0].mxu0
        %v1498 = vadd.f32 0.0, %v1497
        %v1499 = vpop.f32.mrb[0].mxu0
        %v1500 = vpop.f32.mrb[0].mxu0
        %1501 = vdwg.mxu0
        %v1503 = vunpack.c.l.b16 %v1043
        %v1504 = vunpack.c.h.b16 %v1043
        %v1505 = vpack.c.b16 %v1503, %v1503
        %v1506 = vpack.c.b16 %v1504, %v1504
        %v1560 = vunpack.c.l.b16 %v1044
        %v1561 = vunpack.c.h.b16 %v1044
        %v1562 = vunpack.c.l.b16 %v1045
        %v1563 = vunpack.c.h.b16 %v1045
        %v1564 = vunpack.c.l.b16 %v1046
        %v1565 = vunpack.c.h.b16 %v1046
        %v1566 = vunpack.c.l.b16 %v1047
        %v1567 = vunpack.c.h.b16 %v1047
        %v1568 = vunpack.c.l.b16 %v1048
        %v1569 = vunpack.c.h.b16 %v1048
        %v1570 = vunpack.c.l.b16 %v1049
        %v1571 = vunpack.c.h.b16 %v1049
        %v1572 = vunpack.c.l.b16 %v1050
        %v1573 = vunpack.c.h.b16 %v1050
        %v1574 = vunpack.c.l.b16 %v1051
        %v1575 = vunpack.c.h.b16 %v1051
        %v1576 = vunpack.c.l.b16 %v1052
        %v1577 = vunpack.c.h.b16 %v1052
        %v1578 = vunpack.c.l.b16 %v1053
        %v1579 = vunpack.c.h.b16 %v1053
        %v1580 = vunpack.c.l.b16 %v1054
        %v1581 = vunpack.c.h.b16 %v1054
        %v1582 = vunpack.c.l.b16 %v1055
        %v1583 = vunpack.c.h.b16 %v1055
        %v1584 = vunpack.c.l.b16 %v1056
        %v1585 = vunpack.c.h.b16 %v1056
        %v1586 = vunpack.c.l.b16 %v1057
        %v1587 = vunpack.c.h.b16 %v1057
        %v1588 = vunpack.c.l.b16 %v1058
        %v1589 = vunpack.c.h.b16 %v1058
        %v1590 = vunpack.c.l.b16 %v1059
        %v1591 = vunpack.c.h.b16 %v1059
        %v1592 = vunpack.c.l.b16 %v1060
        %v1593 = vunpack.c.h.b16 %v1060
        %v1594 = vunpack.c.l.b16 %v1061
        %v1595 = vunpack.c.h.b16 %v1061
        %v1596 = vunpack.c.l.b16 %v1062
        %v1597 = vunpack.c.h.b16 %v1062
        %v1598 = vunpack.c.l.b16 %v1063
        %v1599 = vunpack.c.h.b16 %v1063
        %v1600 = vunpack.c.l.b16 %v1064
        %v1601 = vunpack.c.h.b16 %v1064
        %v1602 = vunpack.c.l.b16 %v1065
        %v1603 = vunpack.c.h.b16 %v1065
        %v1604 = vunpack.c.l.b16 %v1066
        %v1605 = vunpack.c.h.b16 %v1066
        %v1606 = vunpack.c.l.b16 %v1067
        %v1607 = vunpack.c.h.b16 %v1067
        %v1608 = vunpack.c.l.b16 %v1068
        %v1609 = vunpack.c.h.b16 %v1068
        %v1610 = vunpack.c.l.b16 %v1069
        %v1611 = vunpack.c.h.b16 %v1069
        %v1612 = vunpack.c.l.b16 %v1070
        %v1613 = vunpack.c.h.b16 %v1070
        %v1614 = vunpack.c.l.b16 %v1071
        %v1615 = vunpack.c.h.b16 %v1071
        %v1616 = vunpack.c.l.b16 %v1072
        %v1617 = vunpack.c.h.b16 %v1072
        %v1618 = vunpack.c.l.b16 %v1073
        %v1619 = vunpack.c.h.b16 %v1073
        %v1620 = vunpack.c.l.b16 %v1074
        %v1621 = vunpack.c.h.b16 %v1074
        %v1622 = vunpack.c.l.b16 %v1075
        %v1623 = vunpack.c.h.b16 %v1075
        %v1624 = vunpack.c.l.b16 %v1076
        %v1625 = vunpack.c.h.b16 %v1076
        %v1626 = vunpack.c.l.b16 %v1077
        %v1627 = vunpack.c.h.b16 %v1077
        %v1628 = vunpack.c.l.b16 %v1078
        %v1629 = vunpack.c.h.b16 %v1078
        %v1630 = vunpack.c.l.b16 %v1079
        %v1631 = vunpack.c.h.b16 %v1079
        %v1632 = vunpack.c.l.b16 %v1080
        %v1633 = vunpack.c.h.b16 %v1080
        %v1634 = vunpack.c.l.b16 %v1081
        %v1635 = vunpack.c.h.b16 %v1081
        %v1636 = vunpack.c.l.b16 %v1082
        %v1637 = vunpack.c.h.b16 %v1082
        %v1638 = vunpack.c.l.b16 %v1083
        %v1639 = vunpack.c.h.b16 %v1083
        %v1640 = vunpack.c.l.b16 %v1084
        %v1641 = vunpack.c.h.b16 %v1084
        %v1642 = vunpack.c.l.b16 %v1085
        %v1643 = vunpack.c.h.b16 %v1085
        %v1644 = vunpack.c.l.b16 %v1086
        %v1645 = vunpack.c.h.b16 %v1086
        %v1646 = vunpack.c.l.b16 %v1087
        %v1647 = vunpack.c.h.b16 %v1087
        %v1648 = vunpack.c.l.b16 %v1088
        %v1649 = vunpack.c.h.b16 %v1088
        %v1650 = vunpack.c.l.b16 %v1089
        %v1651 = vunpack.c.h.b16 %v1089
        %v1652 = vunpack.c.l.b16 %v1090
        %v1653 = vunpack.c.h.b16 %v1090
        %v1654 = vunpack.c.l.b16 %v1091
        %v1655 = vunpack.c.h.b16 %v1091
        %v1656 = vunpack.c.l.b16 %v1092
        %v1657 = vunpack.c.h.b16 %v1092
        %v1658 = vunpack.c.l.b16 %v1093
        %v1659 = vunpack.c.h.b16 %v1093
        %v1660 = vunpack.c.l.b16 %v1094
        %v1661 = vunpack.c.h.b16 %v1094
        %v1662 = vunpack.c.l.b16 %v1095
        %v1663 = vunpack.c.h.b16 %v1095
        %v1664 = vpack.c.b16 %v1564, %v1560
        %v1665 = vpack.c.b16 %v1565, %v1561
        %v1666 = vpack.c.b16 %v1566, %v1562
        %v1667 = vpack.c.b16 %v1567, %v1563
        %v1668 = vpack.c.b16 %v1572, %v1568
        %v1669 = vpack.c.b16 %v1573, %v1569
        %v1670 = vpack.c.b16 %v1574, %v1570
        %v1671 = vpack.c.b16 %v1575, %v1571
        %v1672 = vpack.c.b16 %v1580, %v1576
        %v1673 = vpack.c.b16 %v1581, %v1577
        %v1674 = vpack.c.b16 %v1582, %v1578
        %v1675 = vpack.c.b16 %v1583, %v1579
        %v1676 = vpack.c.b16 %v1588, %v1584
        %v1677 = vpack.c.b16 %v1589, %v1585
        %v1678 = vpack.c.b16 %v1590, %v1586
        %v1679 = vpack.c.b16 %v1591, %v1587
        %v1680 = vpack.c.b16 %v1596, %v1592
        %v1681 = vpack.c.b16 %v1597, %v1593
        %v1682 = vpack.c.b16 %v1598, %v1594
        %v1683 = vpack.c.b16 %v1599, %v1595
        %v1684 = vpack.c.b16 %v1604, %v1600
        %v1685 = vpack.c.b16 %v1605, %v1601
        %v1686 = vpack.c.b16 %v1606, %v1602
        %v1687 = vpack.c.b16 %v1607, %v1603
        %v1688 = vpack.c.b16 %v1612, %v1608
        %v1689 = vpack.c.b16 %v1613, %v1609
        %v1690 = vpack.c.b16 %v1614, %v1610
        %v1691 = vpack.c.b16 %v1615, %v1611
        %v1692 = vpack.c.b16 %v1620, %v1616
        %v1693 = vpack.c.b16 %v1621, %v1617
        %v1694 = vpack.c.b16 %v1622, %v1618
        %v1695 = vpack.c.b16 %v1623, %v1619
        %v1696 = vpack.c.b16 %v1628, %v1624
        %v1697 = vpack.c.b16 %v1629, %v1625
        %v1698 = vpack.c.b16 %v1630, %v1626
        %v1699 = vpack.c.b16 %v1631, %v1627
        %v1700 = vpack.c.b16 %v1636, %v1632
        %v1701 = vpack.c.b16 %v1637, %v1633
        %v1702 = vpack.c.b16 %v1638, %v1634
        %v1703 = vpack.c.b16 %v1639, %v1635
        %v1704 = vpack.c.b16 %v1644, %v1640
        %v1705 = vpack.c.b16 %v1645, %v1641
        %v1706 = vpack.c.b16 %v1646, %v1642
        %v1707 = vpack.c.b16 %v1647, %v1643
        %v1708 = vpack.c.b16 %v1652, %v1648
        %v1709 = vpack.c.b16 %v1653, %v1649
        %v1710 = vpack.c.b16 %v1654, %v1650
        %v1711 = vpack.c.b16 %v1655, %v1651
        %v1712 = vpack.c.b16 %v1660, %v1656
        %v1713 = vpack.c.b16 %v1661, %v1657
        %v1714 = vpack.c.b16 %v1662, %v1658
        %v1715 = vpack.c.b16 %v1663, %v1659
        %v1769 = vsel %vm1416, %v1506, 0
        %1771 = vmatprep.subr.bf16.mxu0 %v1665
        %1772 = vmatpush1.bf16.msra.mxu0 %v1664
        %1773 = vmatprep.subr.bf16.mxu0 %v1669
        %1774 = vmatpush1.bf16.msra.mxu0 %v1668
        %1775 = vmatprep.subr.bf16.mxu0 %v1673
        %1776 = vmatpush1.bf16.msra.mxu0 %v1672
        %1777 = vmatprep.subr.bf16.mxu0 %v1677
        %1778 = vmatpush1.bf16.msra.mxu0 %v1676
        %1779 = vmatprep.subr.bf16.mxu0 %v1681
        %1780 = vmatpush1.bf16.msra.mxu0 %v1680
        %1781 = vmatprep.subr.bf16.mxu0 %v1685
        %1782 = vmatpush1.bf16.msra.mxu0 %v1684
        %1783 = vmatprep.subr.bf16.mxu0 %v1689
        %1784 = vmatpush1.bf16.msra.mxu0 %v1688
        %1785 = vmatprep.subr.bf16.mxu0 %v1693
        %1786 = vmatpush1.bf16.msra.mxu0 %v1692
        %1787 = vmatprep.subr.bf16.mxu0 %v1697
        %1788 = vmatpush1.bf16.msra.mxu0 %v1696
        %1789 = vmatprep.subr.bf16.mxu0 %v1701
        %1790 = vmatpush1.bf16.msra.mxu0 %v1700
        %1791 = vmatprep.subr.bf16.mxu0 %v1705
        %1792 = vmatpush1.bf16.msra.mxu0 %v1704
        %1793 = vmatprep.subr.bf16.mxu0 %v1709
        %1794 = vmatpush1.bf16.msra.mxu0 %v1708
        %1795 = vmatprep.subr.bf16.mxu0 %v1713
        %1796 = vmatpush1.bf16.msra.mxu0 %v1712
        %1797 = vmatprep.subr.bf16.mxu0 0
        %1798 = vmatpush1.bf16.msra.mxu0 0
        %1799 = vmatprep.subr.bf16.mxu0 0
        %1800 = vmatpush1.bf16.msra.mxu0 0
        %1801 = vmatprep.subr.bf16.mxu0 0
        %1802 = vmatpush1.bf16.msra.mxu0 0
        %1803 = vmatprep.mubr.bf16.mxu0 %v1769
        %1804 = vmatmul.mubr.bf16.gmra.mrb[0].mxu0 %v1505
        %v1805 = vpop.f32.mrb[0].mxu0
        %v1806 = vadd.f32 %v1455, %v1805
        %v1807 = vpop.f32.mrb[0].mxu0
        %v1808 = vadd.f32 %v1457, %v1807
        %v1809 = vpop.f32.mrb[0].mxu0
        %v1810 = vpop.f32.mrb[0].mxu0
        %1811 = vdwg.mxu0
        %1812 = vmatprep.subr.bf16.mxu0 %v1667
        %1813 = vmatpush1.bf16.msra.mxu0 %v1666
        %1814 = vmatprep.subr.bf16.mxu0 %v1671
        %1815 = vmatpush1.bf16.msra.mxu0 %v1670
        %1816 = vmatprep.subr.bf16.mxu0 %v1675
        %1817 = vmatpush1.bf16.msra.mxu0 %v1674
        %1818 = vmatprep.subr.bf16.mxu0 %v1679
        %1819 = vmatpush1.bf16.msra.mxu0 %v1678
        %1820 = vmatprep.subr.bf16.mxu0 %v1683
        %1821 = vmatpush1.bf16.msra.mxu0 %v1682
        %1822 = vmatprep.subr.bf16.mxu0 %v1687
        %1823 = vmatpush1.bf16.msra.mxu0 %v1686
        %1824 = vmatprep.subr.bf16.mxu0 %v1691
        %1825 = vmatpush1.bf16.msra.mxu0 %v1690
        %1826 = vmatprep.subr.bf16.mxu0 %v1695
        %1827 = vmatpush1.bf16.msra.mxu0 %v1694
        %1828 = vmatprep.subr.bf16.mxu0 %v1699
        %1829 = vmatpush1.bf16.msra.mxu0 %v1698
        %1830 = vmatprep.subr.bf16.mxu0 %v1703
        %1831 = vmatpush1.bf16.msra.mxu0 %v1702
        %1832 = vmatprep.subr.bf16.mxu0 %v1707
        %1833 = vmatpush1.bf16.msra.mxu0 %v1706
        %1834 = vmatprep.subr.bf16.mxu0 %v1711
        %1835 = vmatpush1.bf16.msra.mxu0 %v1710
        %1836 = vmatprep.subr.bf16.mxu0 %v1715
        %1837 = vmatpush1.bf16.msra.mxu0 %v1714
        %1838 = vmatprep.subr.bf16.mxu0 0
        %1839 = vmatpush1.bf16.msra.mxu0 0
        %1840 = vmatprep.subr.bf16.mxu0 0
        %1841 = vmatpush1.bf16.msra.mxu0 0
        %1842 = vmatprep.subr.bf16.mxu0 0
        %1843 = vmatpush1.bf16.msra.mxu0 0
        %1844 = vmatprep.mubr.bf16.mxu0 %v1769
        %1845 = vmatmul.mubr.bf16.gmra.mrb[0].mxu0 %v1505
        %v1846 = vpop.f32.mrb[0].mxu0
        %v1847 = vadd.f32 %v1496, %v1846
        %v1848 = vpop.f32.mrb[0].mxu0
        %v1849 = vadd.f32 %v1498, %v1848
        %v1850 = vpop.f32.mrb[0].mxu0
        %v1851 = vpop.f32.mrb[0].mxu0
        %1852 = vdwg.mxu0
        %s1853 = scalar_lea.vmem %s0, 16
        %v1854 = vld [vmem:[%s1853] sm:$0xff]
        %v1855 = vld [vmem:[%s1005 + $0x340] sm:$0xff]
        %v1856 = vld [vmem:[%s1005 + $0x348] sm:$0xff]
        %v1857 = vld [vmem:[%s1005 + $0x350] sm:$0xff]
        %v1858 = vld [vmem:[%s1005 + $0x358] sm:$0xff]
        %v1859 = vld [vmem:[%s1005 + $0x360] sm:$0xff]
        %v1860 = vld [vmem:[%s1005 + $0x368] sm:$0xff]
        %v1861 = vld [vmem:[%s1005 + $0x370] sm:$0xff]
        %v1862 = vld [vmem:[%s1005 + $0x378] sm:$0xff]
        %v1863 = vld [vmem:[%s1005 + $0x380] sm:$0xff]
        %v1864 = vld [vmem:[%s1005 + $0x388] sm:$0xff]
        %v1865 = vld [vmem:[%s1005 + $0x390] sm:$0xff]
        %v1866 = vld [vmem:[%s1005 + $0x398] sm:$0xff]
        %v1867 = vld [vmem:[%s1005 + $0x3a0] sm:$0xff]
        %v1868 = vld [vmem:[%s1005 + $0x3a8] sm:$0xff]
        %v1869 = vld [vmem:[%s1005 + $0x3b0] sm:$0xff]
        %v1870 = vld [vmem:[%s1005 + $0x3b8] sm:$0xff]
        %v1871 = vld [vmem:[%s1005 + $0x3c0] sm:$0xff]
        %v1872 = vld [vmem:[%s1005 + $0x3c8] sm:$0xff]
        %v1873 = vld [vmem:[%s1005 + $0x3d0] sm:$0xff]
        %v1874 = vld [vmem:[%s1005 + $0x3d8] sm:$0xff]
        %v1875 = vld [vmem:[%s1005 + $0x3e0] sm:$0xff]
        %v1876 = vld [vmem:[%s1005 + $0x3e8] sm:$0xff]
        %v1877 = vld [vmem:[%s1005 + $0x3f0] sm:$0xff]
        %v1878 = vld [vmem:[%s1005 + $0x3f8] sm:$0xff]
        %v1879 = vld [vmem:[%s1005 + $0x400] sm:$0xff]
        %v1880 = vld [vmem:[%s1005 + $0x408] sm:$0xff]
        %v1881 = vld [vmem:[%s1005 + $0x410] sm:$0xff]
        %v1882 = vld [vmem:[%s1005 + $0x418] sm:$0xff]
        %v1883 = vld [vmem:[%s1005 + $0x420] sm:$0xff]
        %v1884 = vld [vmem:[%s1005 + $0x428] sm:$0xff]
        %v1885 = vld [vmem:[%s1005 + $0x430] sm:$0xff]
        %v1886 = vld [vmem:[%s1005 + $0x438] sm:$0xff]
        %v1887 = vld [vmem:[%s1005 + $0x440] sm:$0xff]
        %v1888 = vld [vmem:[%s1005 + $0x448] sm:$0xff]
        %v1889 = vld [vmem:[%s1005 + $0x450] sm:$0xff]
        %v1890 = vld [vmem:[%s1005 + $0x458] sm:$0xff]
        %v1891 = vld [vmem:[%s1005 + $0x460] sm:$0xff]
        %v1892 = vld [vmem:[%s1005 + $0x468] sm:$0xff]
        %v1893 = vld [vmem:[%s1005 + $0x470] sm:$0xff]
        %v1894 = vld [vmem:[%s1005 + $0x478] sm:$0xff]
        %v1895 = vld [vmem:[%s1005 + $0x480] sm:$0xff]
        %v1896 = vld [vmem:[%s1005 + $0x488] sm:$0xff]
        %v1897 = vld [vmem:[%s1005 + $0x490] sm:$0xff]
        %v1898 = vld [vmem:[%s1005 + $0x498] sm:$0xff]
        %v1899 = vld [vmem:[%s1005 + $0x4a0] sm:$0xff]
        %v1900 = vld [vmem:[%s1005 + $0x4a8] sm:$0xff]
        %v1901 = vld [vmem:[%s1005 + $0x4b0] sm:$0xff]
        %v1902 = vld [vmem:[%s1005 + $0x4b8] sm:$0xff]
        %v1903 = vld [vmem:[%s1005 + $0x4c0] sm:$0xff]
        %v1904 = vld [vmem:[%s1005 + $0x4c8] sm:$0xff]
        %v1905 = vld [vmem:[%s1005 + $0x4d0] sm:$0xff]
        %v1906 = vld [vmem:[%s1005 + $0x4d8] sm:$0xff]
        %v1908 = vunpack.c.l.b16 %v1854
        %v1909 = vunpack.c.h.b16 %v1854
        %v1910 = vpack.c.b16 %v1908, %v1908
        %v1911 = vpack.c.b16 %v1909, %v1909
        %v1965 = vunpack.c.l.b16 %v1855
        %v1966 = vunpack.c.h.b16 %v1855
        %v1967 = vunpack.c.l.b16 %v1856
        %v1968 = vunpack.c.h.b16 %v1856
        %v1969 = vunpack.c.l.b16 %v1857
        %v1970 = vunpack.c.h.b16 %v1857
        %v1971 = vunpack.c.l.b16 %v1858
        %v1972 = vunpack.c.h.b16 %v1858
        %v1973 = vunpack.c.l.b16 %v1859
        %v1974 = vunpack.c.h.b16 %v1859
        %v1975 = vunpack.c.l.b16 %v1860
        %v1976 = vunpack.c.h.b16 %v1860
        %v1977 = vunpack.c.l.b16 %v1861
        %v1978 = vunpack.c.h.b16 %v1861
        %v1979 = vunpack.c.l.b16 %v1862
        %v1980 = vunpack.c.h.b16 %v1862
        %v1981 = vunpack.c.l.b16 %v1863
        %v1982 = vunpack.c.h.b16 %v1863
        %v1983 = vunpack.c.l.b16 %v1864
        %v1984 = vunpack.c.h.b16 %v1864
        %v1985 = vunpack.c.l.b16 %v1865
        %v1986 = vunpack.c.h.b16 %v1865
        %v1987 = vunpack.c.l.b16 %v1866
        %v1988 = vunpack.c.h.b16 %v1866
        %v1989 = vunpack.c.l.b16 %v1867
        %v1990 = vunpack.c.h.b16 %v1867
        %v1991 = vunpack.c.l.b16 %v1868
        %v1992 = vunpack.c.h.b16 %v1868
        %v1993 = vunpack.c.l.b16 %v1869
        %v1994 = vunpack.c.h.b16 %v1869
        %v1995 = vunpack.c.l.b16 %v1870
        %v1996 = vunpack.c.h.b16 %v1870
        %v1997 = vunpack.c.l.b16 %v1871
        %v1998 = vunpack.c.h.b16 %v1871
        %v1999 = vunpack.c.l.b16 %v1872
        %v2000 = vunpack.c.h.b16 %v1872
        %v2001 = vunpack.c.l.b16 %v1873
        %v2002 = vunpack.c.h.b16 %v1873
        %v2003 = vunpack.c.l.b16 %v1874
        %v2004 = vunpack.c.h.b16 %v1874
        %v2005 = vunpack.c.l.b16 %v1875
        %v2006 = vunpack.c.h.b16 %v1875
        %v2007 = vunpack.c.l.b16 %v1876
        %v2008 = vunpack.c.h.b16 %v1876
        %v2009 = vunpack.c.l.b16 %v1877
        %v2010 = vunpack.c.h.b16 %v1877
        %v2011 = vunpack.c.l.b16 %v1878
        %v2012 = vunpack.c.h.b16 %v1878
        %v2013 = vunpack.c.l.b16 %v1879
        %v2014 = vunpack.c.h.b16 %v1879
        %v2015 = vunpack.c.l.b16 %v1880
        %v2016 = vunpack.c.h.b16 %v1880
        %v2017 = vunpack.c.l.b16 %v1881
        %v2018 = vunpack.c.h.b16 %v1881
        %v2019 = vunpack.c.l.b16 %v1882
        %v2020 = vunpack.c.h.b16 %v1882
        %v2021 = vunpack.c.l.b16 %v1883
        %v2022 = vunpack.c.h.b16 %v1883
        %v2023 = vunpack.c.l.b16 %v1884
        %v2024 = vunpack.c.h.b16 %v1884
        %v2025 = vunpack.c.l.b16 %v1885
        %v2026 = vunpack.c.h.b16 %v1885
        %v2027 = vunpack.c.l.b16 %v1886
        %v2028 = vunpack.c.h.b16 %v1886
        %v2029 = vunpack.c.l.b16 %v1887
        %v2030 = vunpack.c.h.b16 %v1887
        %v2031 = vunpack.c.l.b16 %v1888
        %v2032 = vunpack.c.h.b16 %v1888
        %v2033 = vunpack.c.l.b16 %v1889
        %v2034 = vunpack.c.h.b16 %v1889
        %v2035 = vunpack.c.l.b16 %v1890
        %v2036 = vunpack.c.h.b16 %v1890
        %v2037 = vunpack.c.l.b16 %v1891
        %v2038 = vunpack.c.h.b16 %v1891
        %v2039 = vunpack.c.l.b16 %v1892
        %v2040 = vunpack.c.h.b16 %v1892
        %v2041 = vunpack.c.l.b16 %v1893
        %v2042 = vunpack.c.h.b16 %v1893
        %v2043 = vunpack.c.l.b16 %v1894
        %v2044 = vunpack.c.h.b16 %v1894
        %v2045 = vunpack.c.l.b16 %v1895
        %v2046 = vunpack.c.h.b16 %v1895
        %v2047 = vunpack.c.l.b16 %v1896
        %v2048 = vunpack.c.h.b16 %v1896
        %v2049 = vunpack.c.l.b16 %v1897
        %v2050 = vunpack.c.h.b16 %v1897
        %v2051 = vunpack.c.l.b16 %v1898
        %v2052 = vunpack.c.h.b16 %v1898
        %v2053 = vunpack.c.l.b16 %v1899
        %v2054 = vunpack.c.h.b16 %v1899
        %v2055 = vunpack.c.l.b16 %v1900
        %v2056 = vunpack.c.h.b16 %v1900
        %v2057 = vunpack.c.l.b16 %v1901
        %v2058 = vunpack.c.h.b16 %v1901
        %v2059 = vunpack.c.l.b16 %v1902
        %v2060 = vunpack.c.h.b16 %v1902
        %v2061 = vunpack.c.l.b16 %v1903
        %v2062 = vunpack.c.h.b16 %v1903
        %v2063 = vunpack.c.l.b16 %v1904
        %v2064 = vunpack.c.h.b16 %v1904
        %v2065 = vunpack.c.l.b16 %v1905
        %v2066 = vunpack.c.h.b16 %v1905
        %v2067 = vunpack.c.l.b16 %v1906
        %v2068 = vunpack.c.h.b16 %v1906
        %v2069 = vpack.c.b16 %v1969, %v1965
        %v2070 = vpack.c.b16 %v1970, %v1966
        %v2071 = vpack.c.b16 %v1971, %v1967
        %v2072 = vpack.c.b16 %v1972, %v1968
        %v2073 = vpack.c.b16 %v1977, %v1973
        %v2074 = vpack.c.b16 %v1978, %v1974
        %v2075 = vpack.c.b16 %v1979, %v1975
        %v2076 = vpack.c.b16 %v1980, %v1976
        %v2077 = vpack.c.b16 %v1985, %v1981
        %v2078 = vpack.c.b16 %v1986, %v1982
        %v2079 = vpack.c.b16 %v1987, %v1983
        %v2080 = vpack.c.b16 %v1988, %v1984
        %v2081 = vpack.c.b16 %v1993, %v1989
        %v2082 = vpack.c.b16 %v1994, %v1990
        %v2083 = vpack.c.b16 %v1995, %v1991
        %v2084 = vpack.c.b16 %v1996, %v1992
        %v2085 = vpack.c.b16 %v2001, %v1997
        %v2086 = vpack.c.b16 %v2002, %v1998
        %v2087 = vpack.c.b16 %v2003, %v1999
        %v2088 = vpack.c.b16 %v2004, %v2000
        %v2089 = vpack.c.b16 %v2009, %v2005
        %v2090 = vpack.c.b16 %v2010, %v2006
        %v2091 = vpack.c.b16 %v2011, %v2007
        %v2092 = vpack.c.b16 %v2012, %v2008
        %v2093 = vpack.c.b16 %v2017, %v2013
        %v2094 = vpack.c.b16 %v2018, %v2014
        %v2095 = vpack.c.b16 %v2019, %v2015
        %v2096 = vpack.c.b16 %v2020, %v2016
        %v2097 = vpack.c.b16 %v2025, %v2021
        %v2098 = vpack.c.b16 %v2026, %v2022
        %v2099 = vpack.c.b16 %v2027, %v2023
        %v2100 = vpack.c.b16 %v2028, %v2024
        %v2101 = vpack.c.b16 %v2033, %v2029
        %v2102 = vpack.c.b16 %v2034, %v2030
        %v2103 = vpack.c.b16 %v2035, %v2031
        %v2104 = vpack.c.b16 %v2036, %v2032
        %v2105 = vpack.c.b16 %v2041, %v2037
        %v2106 = vpack.c.b16 %v2042, %v2038
        %v2107 = vpack.c.b16 %v2043, %v2039
        %v2108 = vpack.c.b16 %v2044, %v2040
        %v2109 = vpack.c.b16 %v2049, %v2045
        %v2110 = vpack.c.b16 %v2050, %v2046
        %v2111 = vpack.c.b16 %v2051, %v2047
        %v2112 = vpack.c.b16 %v2052, %v2048
        %v2113 = vpack.c.b16 %v2057, %v2053
        %v2114 = vpack.c.b16 %v2058, %v2054
        %v2115 = vpack.c.b16 %v2059, %v2055
        %v2116 = vpack.c.b16 %v2060, %v2056
        %v2117 = vpack.c.b16 %v2065, %v2061
        %v2118 = vpack.c.b16 %v2066, %v2062
        %v2119 = vpack.c.b16 %v2067, %v2063
        %v2120 = vpack.c.b16 %v2068, %v2064
        %v2174 = vsel %vm1416, %v1911, 0
        %2176 = vmatprep.subr.bf16.mxu0 %v2070
        %2177 = vmatpush1.bf16.msra.mxu0 %v2069
        %2178 = vmatprep.subr.bf16.mxu0 %v2074
        %2179 = vmatpush1.bf16.msra.mxu0 %v2073
        %2180 = vmatprep.subr.bf16.mxu0 %v2078
        %2181 = vmatpush1.bf16.msra.mxu0 %v2077
        %2182 = vmatprep.subr.bf16.mxu0 %v2082
        %2183 = vmatpush1.bf16.msra.mxu0 %v2081
        %2184 = vmatprep.subr.bf16.mxu0 %v2086
        %2185 = vmatpush1.bf16.msra.mxu0 %v2085
        %2186 = vmatprep.subr.bf16.mxu0 %v2090
        %2187 = vmatpush1.bf16.msra.mxu0 %v2089
        %2188 = vmatprep.subr.bf16.mxu0 %v2094
        %2189 = vmatpush1.bf16.msra.mxu0 %v2093
        %2190 = vmatprep.subr.bf16.mxu0 %v2098
        %2191 = vmatpush1.bf16.msra.mxu0 %v2097
        %2192 = vmatprep.subr.bf16.mxu0 %v2102
        %2193 = vmatpush1.bf16.msra.mxu0 %v2101
        %2194 = vmatprep.subr.bf16.mxu0 %v2106
        %2195 = vmatpush1.bf16.msra.mxu0 %v2105
        %2196 = vmatprep.subr.bf16.mxu0 %v2110
        %2197 = vmatpush1.bf16.msra.mxu0 %v2109
        %2198 = vmatprep.subr.bf16.mxu0 %v2114
        %2199 = vmatpush1.bf16.msra.mxu0 %v2113
        %2200 = vmatprep.subr.bf16.mxu0 %v2118
        %2201 = vmatpush1.bf16.msra.mxu0 %v2117
        %2202 = vmatprep.subr.bf16.mxu0 0
        %2203 = vmatpush1.bf16.msra.mxu0 0
        %2204 = vmatprep.subr.bf16.mxu0 0
        %2205 = vmatpush1.bf16.msra.mxu0 0
        %2206 = vmatprep.subr.bf16.mxu0 0
        %2207 = vmatpush1.bf16.msra.mxu0 0
        %2208 = vmatprep.mubr.bf16.mxu0 %v2174
        %2209 = vmatmul.mubr.bf16.gmra.mrb[0].mxu0 %v1910
        %v2210 = vpop.f32.mrb[0].mxu0
        %v2211 = vadd.f32 0.0, %v2210
        %v2212 = vpop.f32.mrb[0].mxu0
        %v2213 = vadd.f32 0.0, %v2212
        %v2214 = vpop.f32.mrb[0].mxu0
        %v2215 = vpop.f32.mrb[0].mxu0
        %2216 = vdwg.mxu0
        %2217 = vmatprep.subr.bf16.mxu0 %v2072
        %2218 = vmatpush1.bf16.msra.mxu0 %v2071
        %2219 = vmatprep.subr.bf16.mxu0 %v2076
        %2220 = vmatpush1.bf16.msra.mxu0 %v2075
        %2221 = vmatprep.subr.bf16.mxu0 %v2080
        %2222 = vmatpush1.bf16.msra.mxu0 %v2079
        %2223 = vmatprep.subr.bf16.mxu0 %v2084
        %2224 = vmatpush1.bf16.msra.mxu0 %v2083
        %2225 = vmatprep.subr.bf16.mxu0 %v2088
        %2226 = vmatpush1.bf16.msra.mxu0 %v2087
        %2227 = vmatprep.subr.bf16.mxu0 %v2092
        %2228 = vmatpush1.bf16.msra.mxu0 %v2091
        %2229 = vmatprep.subr.bf16.mxu0 %v2096
        %2230 = vmatpush1.bf16.msra.mxu0 %v2095
        %2231 = vmatprep.subr.bf16.mxu0 %v2100
        %2232 = vmatpush1.bf16.msra.mxu0 %v2099
        %2233 = vmatprep.subr.bf16.mxu0 %v2104
        %2234 = vmatpush1.bf16.msra.mxu0 %v2103
        %2235 = vmatprep.subr.bf16.mxu0 %v2108
        %2236 = vmatpush1.bf16.msra.mxu0 %v2107
        %2237 = vmatprep.subr.bf16.mxu0 %v2112
        %2238 = vmatpush1.bf16.msra.mxu0 %v2111
        %2239 = vmatprep.subr.bf16.mxu0 %v2116
        %2240 = vmatpush1.bf16.msra.mxu0 %v2115
        %2241 = vmatprep.subr.bf16.mxu0 %v2120
        %2242 = vmatpush1.bf16.msra.mxu0 %v2119
        %2243 = vmatprep.subr.bf16.mxu0 0
        %2244 = vmatpush1.bf16.msra.mxu0 0
        %2245 = vmatprep.subr.bf16.mxu0 0
        %2246 = vmatpush1.bf16.msra.mxu0 0
        %2247 = vmatprep.subr.bf16.mxu0 0
        %2248 = vmatpush1.bf16.msra.mxu0 0
        %2249 = vmatprep.mubr.bf16.mxu0 %v2174
        %2250 = vmatmul.mubr.bf16.gmra.mrb[0].mxu0 %v1910
        %v2251 = vpop.f32.mrb[0].mxu0
        %v2252 = vadd.f32 0.0, %v2251
        %v2253 = vpop.f32.mrb[0].mxu0
        %v2254 = vadd.f32 0.0, %v2253
        %v2255 = vpop.f32.mrb[0].mxu0
        %v2256 = vpop.f32.mrb[0].mxu0
        %2257 = vdwg.mxu0
        %v2258 = vadd.f32 %v1806, %v2211
        %v2259 = vadd.f32 %v1808, %v2213
        %v2260 = vadd.f32 %v1847, %v2252
        %v2261 = vadd.f32 %v1849, %v2254
        %s2262 = scalar_lea.vmem %s0, 24
        %v2263 = vld [vmem:[%s2262] sm:$0xff]
        %v2264 = vld [vmem:[%s1005 + $0x4e0] sm:$0xff]
        %v2265 = vld [vmem:[%s1005 + $0x4e8] sm:$0xff]
        %v2266 = vld [vmem:[%s1005 + $0x4f0] sm:$0xff]
        %v2267 = vld [vmem:[%s1005 + $0x4f8] sm:$0xff]
        %v2268 = vld [vmem:[%s1005 + $0x500] sm:$0xff]
        %v2269 = vld [vmem:[%s1005 + $0x508] sm:$0xff]
        %v2270 = vld [vmem:[%s1005 + $0x510] sm:$0xff]
        %v2271 = vld [vmem:[%s1005 + $0x518] sm:$0xff]
        %v2272 = vld [vmem:[%s1005 + $0x520] sm:$0xff]
        %v2273 = vld [vmem:[%s1005 + $0x528] sm:$0xff]
        %v2274 = vld [vmem:[%s1005 + $0x530] sm:$0xff]
        %v2275 = vld [vmem:[%s1005 + $0x538] sm:$0xff]
        %v2276 = vld [vmem:[%s1005 + $0x540] sm:$0xff]
        %v2277 = vld [vmem:[%s1005 + $0x548] sm:$0xff]
        %v2278 = vld [vmem:[%s1005 + $0x550] sm:$0xff]
        %v2279 = vld [vmem:[%s1005 + $0x558] sm:$0xff]
        %v2280 = vld [vmem:[%s1005 + $0x560] sm:$0xff]
        %v2281 = vld [vmem:[%s1005 + $0x568] sm:$0xff]
        %v2282 = vld [vmem:[%s1005 + $0x570] sm:$0xff]
        %v2283 = vld [vmem:[%s1005 + $0x578] sm:$0xff]
        %v2284 = vld [vmem:[%s1005 + $0x580] sm:$0xff]
        %v2285 = vld [vmem:[%s1005 + $0x588] sm:$0xff]
        %v2286 = vld [vmem:[%s1005 + $0x590] sm:$0xff]
        %v2287 = vld [vmem:[%s1005 + $0x598] sm:$0xff]
        %v2288 = vld [vmem:[%s1005 + $0x5a0] sm:$0xff]
        %v2289 = vld [vmem:[%s1005 + $0x5a8] sm:$0xff]
        %v2290 = vld [vmem:[%s1005 + $0x5b0] sm:$0xff]
        %v2291 = vld [vmem:[%s1005 + $0x5b8] sm:$0xff]
        %v2292 = vld [vmem:[%s1005 + $0x5c0] sm:$0xff]
        %v2293 = vld [vmem:[%s1005 + $0x5c8] sm:$0xff]
        %v2294 = vld [vmem:[%s1005 + $0x5d0] sm:$0xff]
        %v2295 = vld [vmem:[%s1005 + $0x5d8] sm:$0xff]
        %v2296 = vld [vmem:[%s1005 + $0x5e0] sm:$0xff]
        %v2297 = vld [vmem:[%s1005 + $0x5e8] sm:$0xff]
        %v2298 = vld [vmem:[%s1005 + $0x5f0] sm:$0xff]
        %v2299 = vld [vmem:[%s1005 + $0x5f8] sm:$0xff]
        %v2300 = vld [vmem:[%s1005 + $0x600] sm:$0xff]
        %v2301 = vld [vmem:[%s1005 + $0x608] sm:$0xff]
        %v2302 = vld [vmem:[%s1005 + $0x610] sm:$0xff]
        %v2303 = vld [vmem:[%s1005 + $0x618] sm:$0xff]
        %v2304 = vld [vmem:[%s1005 + $0x620] sm:$0xff]
        %v2305 = vld [vmem:[%s1005 + $0x628] sm:$0xff]
        %v2306 = vld [vmem:[%s1005 + $0x630] sm:$0xff]
        %v2307 = vld [vmem:[%s1005 + $0x638] sm:$0xff]
        %v2308 = vld [vmem:[%s1005 + $0x640] sm:$0xff]
        %v2309 = vld [vmem:[%s1005 + $0x648] sm:$0xff]
        %v2310 = vld [vmem:[%s1005 + $0x650] sm:$0xff]
        %v2311 = vld [vmem:[%s1005 + $0x658] sm:$0xff]
        %v2312 = vld [vmem:[%s1005 + $0x660] sm:$0xff]
        %v2313 = vld [vmem:[%s1005 + $0x668] sm:$0xff]
        %v2314 = vld [vmem:[%s1005 + $0x670] sm:$0xff]
        %v2315 = vld [vmem:[%s1005 + $0x678] sm:$0xff]
        %v2317 = vunpack.c.l.b16 %v2263
        %v2318 = vunpack.c.h.b16 %v2263
        %v2319 = vpack.c.b16 %v2317, %v2317
        %v2320 = vpack.c.b16 %v2318, %v2318
        %v2374 = vunpack.c.l.b16 %v2264
        %v2375 = vunpack.c.h.b16 %v2264
        %v2376 = vunpack.c.l.b16 %v2265
        %v2377 = vunpack.c.h.b16 %v2265
        %v2378 = vunpack.c.l.b16 %v2266
        %v2379 = vunpack.c.h.b16 %v2266
        %v2380 = vunpack.c.l.b16 %v2267
        %v2381 = vunpack.c.h.b16 %v2267
        %v2382 = vunpack.c.l.b16 %v2268
        %v2383 = vunpack.c.h.b16 %v2268
        %v2384 = vunpack.c.l.b16 %v2269
        %v2385 = vunpack.c.h.b16 %v2269
        %v2386 = vunpack.c.l.b16 %v2270
        %v2387 = vunpack.c.h.b16 %v2270
        %v2388 = vunpack.c.l.b16 %v2271
        %v2389 = vunpack.c.h.b16 %v2271
        %v2390 = vunpack.c.l.b16 %v2272
        %v2391 = vunpack.c.h.b16 %v2272
        %v2392 = vunpack.c.l.b16 %v2273
        %v2393 = vunpack.c.h.b16 %v2273
        %v2394 = vunpack.c.l.b16 %v2274
        %v2395 = vunpack.c.h.b16 %v2274
        %v2396 = vunpack.c.l.b16 %v2275
        %v2397 = vunpack.c.h.b16 %v2275
        %v2398 = vunpack.c.l.b16 %v2276
        %v2399 = vunpack.c.h.b16 %v2276
        %v2400 = vunpack.c.l.b16 %v2277
        %v2401 = vunpack.c.h.b16 %v2277
        %v2402 = vunpack.c.l.b16 %v2278
        %v2403 = vunpack.c.h.b16 %v2278
        %v2404 = vunpack.c.l.b16 %v2279
        %v2405 = vunpack.c.h.b16 %v2279
        %v2406 = vunpack.c.l.b16 %v2280
        %v2407 = vunpack.c.h.b16 %v2280
        %v2408 = vunpack.c.l.b16 %v2281
        %v2409 = vunpack.c.h.b16 %v2281
        %v2410 = vunpack.c.l.b16 %v2282
        %v2411 = vunpack.c.h.b16 %v2282
        %v2412 = vunpack.c.l.b16 %v2283
        %v2413 = vunpack.c.h.b16 %v2283
        %v2414 = vunpack.c.l.b16 %v2284
        %v2415 = vunpack.c.h.b16 %v2284
        %v2416 = vunpack.c.l.b16 %v2285
        %v2417 = vunpack.c.h.b16 %v2285
        %v2418 = vunpack.c.l.b16 %v2286
        %v2419 = vunpack.c.h.b16 %v2286
        %v2420 = vunpack.c.l.b16 %v2287
        %v2421 = vunpack.c.h.b16 %v2287
        %v2422 = vunpack.c.l.b16 %v2288
        %v2423 = vunpack.c.h.b16 %v2288
        %v2424 = vunpack.c.l.b16 %v2289
        %v2425 = vunpack.c.h.b16 %v2289
        %v2426 = vunpack.c.l.b16 %v2290
        %v2427 = vunpack.c.h.b16 %v2290
        %v2428 = vunpack.c.l.b16 %v2291
        %v2429 = vunpack.c.h.b16 %v2291
        %v2430 = vunpack.c.l.b16 %v2292
        %v2431 = vunpack.c.h.b16 %v2292
        %v2432 = vunpack.c.l.b16 %v2293
        %v2433 = vunpack.c.h.b16 %v2293
        %v2434 = vunpack.c.l.b16 %v2294
        %v2435 = vunpack.c.h.b16 %v2294
        %v2436 = vunpack.c.l.b16 %v2295
        %v2437 = vunpack.c.h.b16 %v2295
        %v2438 = vunpack.c.l.b16 %v2296
        %v2439 = vunpack.c.h.b16 %v2296
        %v2440 = vunpack.c.l.b16 %v2297
        %v2441 = vunpack.c.h.b16 %v2297
        %v2442 = vunpack.c.l.b16 %v2298
        %v2443 = vunpack.c.h.b16 %v2298
        %v2444 = vunpack.c.l.b16 %v2299
        %v2445 = vunpack.c.h.b16 %v2299
        %v2446 = vunpack.c.l.b16 %v2300
        %v2447 = vunpack.c.h.b16 %v2300
        %v2448 = vunpack.c.l.b16 %v2301
        %v2449 = vunpack.c.h.b16 %v2301
        %v2450 = vunpack.c.l.b16 %v2302
        %v2451 = vunpack.c.h.b16 %v2302
        %v2452 = vunpack.c.l.b16 %v2303
        %v2453 = vunpack.c.h.b16 %v2303
        %v2454 = vunpack.c.l.b16 %v2304
        %v2455 = vunpack.c.h.b16 %v2304
        %v2456 = vunpack.c.l.b16 %v2305
        %v2457 = vunpack.c.h.b16 %v2305
        %v2458 = vunpack.c.l.b16 %v2306
        %v2459 = vunpack.c.h.b16 %v2306
        %v2460 = vunpack.c.l.b16 %v2307
        %v2461 = vunpack.c.h.b16 %v2307
        %v2462 = vunpack.c.l.b16 %v2308
        %v2463 = vunpack.c.h.b16 %v2308
        %v2464 = vunpack.c.l.b16 %v2309
        %v2465 = vunpack.c.h.b16 %v2309
        %v2466 = vunpack.c.l.b16 %v2310
        %v2467 = vunpack.c.h.b16 %v2310
        %v2468 = vunpack.c.l.b16 %v2311
        %v2469 = vunpack.c.h.b16 %v2311
        %v2470 = vunpack.c.l.b16 %v2312
        %v2471 = vunpack.c.h.b16 %v2312
        %v2472 = vunpack.c.l.b16 %v2313
        %v2473 = vunpack.c.h.b16 %v2313
        %v2474 = vunpack.c.l.b16 %v2314
        %v2475 = vunpack.c.h.b16 %v2314
        %v2476 = vunpack.c.l.b16 %v2315
        %v2477 = vunpack.c.h.b16 %v2315
        %v2478 = vpack.c.b16 %v2378, %v2374
        %v2479 = vpack.c.b16 %v2379, %v2375
        %v2480 = vpack.c.b16 %v2380, %v2376
        %v2481 = vpack.c.b16 %v2381, %v2377
        %v2482 = vpack.c.b16 %v2386, %v2382
        %v2483 = vpack.c.b16 %v2387, %v2383
        %v2484 = vpack.c.b16 %v2388, %v2384
        %v2485 = vpack.c.b16 %v2389, %v2385
        %v2486 = vpack.c.b16 %v2394, %v2390
        %v2487 = vpack.c.b16 %v2395, %v2391
        %v2488 = vpack.c.b16 %v2396, %v2392
        %v2489 = vpack.c.b16 %v2397, %v2393
        %v2490 = vpack.c.b16 %v2402, %v2398
        %v2491 = vpack.c.b16 %v2403, %v2399
        %v2492 = vpack.c.b16 %v2404, %v2400
        %v2493 = vpack.c.b16 %v2405, %v2401
        %v2494 = vpack.c.b16 %v2410, %v2406
        %v2495 = vpack.c.b16 %v2411, %v2407
        %v2496 = vpack.c.b16 %v2412, %v2408
        %v2497 = vpack.c.b16 %v2413, %v2409
        %v2498 = vpack.c.b16 %v2418, %v2414
        %v2499 = vpack.c.b16 %v2419, %v2415
        %v2500 = vpack.c.b16 %v2420, %v2416
        %v2501 = vpack.c.b16 %v2421, %v2417
        %v2502 = vpack.c.b16 %v2426, %v2422
        %v2503 = vpack.c.b16 %v2427, %v2423
        %v2504 = vpack.c.b16 %v2428, %v2424
        %v2505 = vpack.c.b16 %v2429, %v2425
        %v2506 = vpack.c.b16 %v2434, %v2430
        %v2507 = vpack.c.b16 %v2435, %v2431
        %v2508 = vpack.c.b16 %v2436, %v2432
        %v2509 = vpack.c.b16 %v2437, %v2433
        %v2510 = vpack.c.b16 %v2442, %v2438
        %v2511 = vpack.c.b16 %v2443, %v2439
        %v2512 = vpack.c.b16 %v2444, %v2440
        %v2513 = vpack.c.b16 %v2445, %v2441
        %v2514 = vpack.c.b16 %v2450, %v2446
        %v2515 = vpack.c.b16 %v2451, %v2447
        %v2516 = vpack.c.b16 %v2452, %v2448
        %v2517 = vpack.c.b16 %v2453, %v2449
        %v2518 = vpack.c.b16 %v2458, %v2454
        %v2519 = vpack.c.b16 %v2459, %v2455
        %v2520 = vpack.c.b16 %v2460, %v2456
        %v2521 = vpack.c.b16 %v2461, %v2457
        %v2522 = vpack.c.b16 %v2466, %v2462
        %v2523 = vpack.c.b16 %v2467, %v2463
        %v2524 = vpack.c.b16 %v2468, %v2464
        %v2525 = vpack.c.b16 %v2469, %v2465
        %v2526 = vpack.c.b16 %v2474, %v2470
        %v2527 = vpack.c.b16 %v2475, %v2471
        %v2528 = vpack.c.b16 %v2476, %v2472
        %v2529 = vpack.c.b16 %v2477, %v2473
        %v2583 = vsel %vm1416, %v2320, 0
        %2585 = vmatprep.subr.bf16.mxu0 %v2479
        %2586 = vmatpush1.bf16.msra.mxu0 %v2478
        %2587 = vmatprep.subr.bf16.mxu0 %v2483
        %2588 = vmatpush1.bf16.msra.mxu0 %v2482
        %2589 = vmatprep.subr.bf16.mxu0 %v2487
        %2590 = vmatpush1.bf16.msra.mxu0 %v2486
        %2591 = vmatprep.subr.bf16.mxu0 %v2491
        %2592 = vmatpush1.bf16.msra.mxu0 %v2490
        %2593 = vmatprep.subr.bf16.mxu0 %v2495
        %2594 = vmatpush1.bf16.msra.mxu0 %v2494
        %2595 = vmatprep.subr.bf16.mxu0 %v2499
        %2596 = vmatpush1.bf16.msra.mxu0 %v2498
        %2597 = vmatprep.subr.bf16.mxu0 %v2503
        %2598 = vmatpush1.bf16.msra.mxu0 %v2502
        %2599 = vmatprep.subr.bf16.mxu0 %v2507
        %2600 = vmatpush1.bf16.msra.mxu0 %v2506
        %2601 = vmatprep.subr.bf16.mxu0 %v2511
        %2602 = vmatpush1.bf16.msra.mxu0 %v2510
        %2603 = vmatprep.subr.bf16.mxu0 %v2515
        %2604 = vmatpush1.bf16.msra.mxu0 %v2514
        %2605 = vmatprep.subr.bf16.mxu0 %v2519
        %2606 = vmatpush1.bf16.msra.mxu0 %v2518
        %2607 = vmatprep.subr.bf16.mxu0 %v2523
        %2608 = vmatpush1.bf16.msra.mxu0 %v2522
        %2609 = vmatprep.subr.bf16.mxu0 %v2527
        %2610 = vmatpush1.bf16.msra.mxu0 %v2526
        %2611 = vmatprep.subr.bf16.mxu0 0
        %2612 = vmatpush1.bf16.msra.mxu0 0
        %2613 = vmatprep.subr.bf16.mxu0 0
        %2614 = vmatpush1.bf16.msra.mxu0 0
        %2615 = vmatprep.subr.bf16.mxu0 0
        %2616 = vmatpush1.bf16.msra.mxu0 0
        %2617 = vmatprep.mubr.bf16.mxu0 %v2583
        %2618 = vmatmul.mubr.bf16.gmra.mrb[0].mxu0 %v2319
        %v2619 = vpop.f32.mrb[0].mxu0
        %v2620 = vadd.f32 0.0, %v2619
        %v2621 = vpop.f32.mrb[0].mxu0
        %v2622 = vadd.f32 0.0, %v2621
        %v2623 = vpop.f32.mrb[0].mxu0
        %v2624 = vpop.f32.mrb[0].mxu0
        %2625 = vdwg.mxu0
        %2626 = vmatprep.subr.bf16.mxu0 %v2481
        %2627 = vmatpush1.bf16.msra.mxu0 %v2480
        %2628 = vmatprep.subr.bf16.mxu0 %v2485
        %2629 = vmatpush1.bf16.msra.mxu0 %v2484
        %2630 = vmatprep.subr.bf16.mxu0 %v2489
        %2631 = vmatpush1.bf16.msra.mxu0 %v2488
        %2632 = vmatprep.subr.bf16.mxu0 %v2493
        %2633 = vmatpush1.bf16.msra.mxu0 %v2492
        %2634 = vmatprep.subr.bf16.mxu0 %v2497
        %2635 = vmatpush1.bf16.msra.mxu0 %v2496
        %2636 = vmatprep.subr.bf16.mxu0 %v2501
        %2637 = vmatpush1.bf16.msra.mxu0 %v2500
        %2638 = vmatprep.subr.bf16.mxu0 %v2505
        %2639 = vmatpush1.bf16.msra.mxu0 %v2504
        %2640 = vmatprep.subr.bf16.mxu0 %v2509
        %2641 = vmatpush1.bf16.msra.mxu0 %v2508
        %2642 = vmatprep.subr.bf16.mxu0 %v2513
        %2643 = vmatpush1.bf16.msra.mxu0 %v2512
        %2644 = vmatprep.subr.bf16.mxu0 %v2517
        %2645 = vmatpush1.bf16.msra.mxu0 %v2516
        %2646 = vmatprep.subr.bf16.mxu0 %v2521
        %2647 = vmatpush1.bf16.msra.mxu0 %v2520
        %2648 = vmatprep.subr.bf16.mxu0 %v2525
        %2649 = vmatpush1.bf16.msra.mxu0 %v2524
        %2650 = vmatprep.subr.bf16.mxu0 %v2529
        %2651 = vmatpush1.bf16.msra.mxu0 %v2528
        %2652 = vmatprep.subr.bf16.mxu0 0
        %2653 = vmatpush1.bf16.msra.mxu0 0
        %2654 = vmatprep.subr.bf16.mxu0 0
        %2655 = vmatpush1.bf16.msra.mxu0 0
        %2656 = vmatprep.subr.bf16.mxu0 0
        %2657 = vmatpush1.bf16.msra.mxu0 0
        %2658 = vmatprep.mubr.bf16.mxu0 %v2583
        %2659 = vmatmul.mubr.bf16.gmra.mrb[0].mxu0 %v2319
        %v2660 = vpop.f32.mrb[0].mxu0
        %v2661 = vadd.f32 0.0, %v2660
        %v2662 = vpop.f32.mrb[0].mxu0
        %v2663 = vadd.f32 0.0, %v2662
        %v2664 = vpop.f32.mrb[0].mxu0
        %v2665 = vpop.f32.mrb[0].mxu0
        %2666 = vdwg.mxu0
        %v2667 = vadd.f32 %v2258, %v2620
        %v2668 = vadd.f32 %v2259, %v2622
        %v2669 = vadd.f32 %v2260, %v2661
        %v2670 = vadd.f32 %v2261, %v2663
        %s2671 = scalar_lea.vmem %s0, 32
        %v2672 = vld [vmem:[%s2671] sm:$0xff]
        %v2673 = vld [vmem:[%s1005 + $0x680] sm:$0xff]
        %v2674 = vld [vmem:[%s1005 + $0x688] sm:$0xff]
        %v2675 = vld [vmem:[%s1005 + $0x690] sm:$0xff]
        %v2676 = vld [vmem:[%s1005 + $0x698] sm:$0xff]
        %v2677 = vld [vmem:[%s1005 + $0x6a0] sm:$0xff]
        %v2678 = vld [vmem:[%s1005 + $0x6a8] sm:$0xff]
        %v2679 = vld [vmem:[%s1005 + $0x6b0] sm:$0xff]
        %v2680 = vld [vmem:[%s1005 + $0x6b8] sm:$0xff]
        %v2681 = vld [vmem:[%s1005 + $0x6c0] sm:$0xff]
        %v2682 = vld [vmem:[%s1005 + $0x6c8] sm:$0xff]
        %v2683 = vld [vmem:[%s1005 + $0x6d0] sm:$0xff]
        %v2684 = vld [vmem:[%s1005 + $0x6d8] sm:$0xff]
        %v2685 = vld [vmem:[%s1005 + $0x6e0] sm:$0xff]
        %v2686 = vld [vmem:[%s1005 + $0x6e8] sm:$0xff]
        %v2687 = vld [vmem:[%s1005 + $0x6f0] sm:$0xff]
        %v2688 = vld [vmem:[%s1005 + $0x6f8] sm:$0xff]
        %v2689 = vld [vmem:[%s1005 + $0x700] sm:$0xff]
        %v2690 = vld [vmem:[%s1005 + $0x708] sm:$0xff]
        %v2691 = vld [vmem:[%s1005 + $0x710] sm:$0xff]
        %v2692 = vld [vmem:[%s1005 + $0x718] sm:$0xff]
        %v2693 = vld [vmem:[%s1005 + $0x720] sm:$0xff]
        %v2694 = vld [vmem:[%s1005 + $0x728] sm:$0xff]
        %v2695 = vld [vmem:[%s1005 + $0x730] sm:$0xff]
        %v2696 = vld [vmem:[%s1005 + $0x738] sm:$0xff]
        %v2697 = vld [vmem:[%s1005 + $0x740] sm:$0xff]
        %v2698 = vld [vmem:[%s1005 + $0x748] sm:$0xff]
        %v2699 = vld [vmem:[%s1005 + $0x750] sm:$0xff]
        %v2700 = vld [vmem:[%s1005 + $0x758] sm:$0xff]
        %v2701 = vld [vmem:[%s1005 + $0x760] sm:$0xff]
        %v2702 = vld [vmem:[%s1005 + $0x768] sm:$0xff]
        %v2703 = vld [vmem:[%s1005 + $0x770] sm:$0xff]
        %v2704 = vld [vmem:[%s1005 + $0x778] sm:$0xff]
        %v2705 = vld [vmem:[%s1005 + $0x780] sm:$0xff]
        %v2706 = vld [vmem:[%s1005 + $0x788] sm:$0xff]
        %v2707 = vld [vmem:[%s1005 + $0x790] sm:$0xff]
        %v2708 = vld [vmem:[%s1005 + $0x798] sm:$0xff]
        %v2709 = vld [vmem:[%s1005 + $0x7a0] sm:$0xff]
        %v2710 = vld [vmem:[%s1005 + $0x7a8] sm:$0xff]
        %v2711 = vld [vmem:[%s1005 + $0x7b0] sm:$0xff]
        %v2712 = vld [vmem:[%s1005 + $0x7b8] sm:$0xff]
        %v2713 = vld [vmem:[%s1005 + $0x7c0] sm:$0xff]
        %v2714 = vld [vmem:[%s1005 + $0x7c8] sm:$0xff]
        %v2715 = vld [vmem:[%s1005 + $0x7d0] sm:$0xff]
        %v2716 = vld [vmem:[%s1005 + $0x7d8] sm:$0xff]
        %v2717 = vld [vmem:[%s1005 + $0x7e0] sm:$0xff]
        %v2718 = vld [vmem:[%s1005 + $0x7e8] sm:$0xff]
        %v2719 = vld [vmem:[%s1005 + $0x7f0] sm:$0xff]
        %v2720 = vld [vmem:[%s1005 + $0x7f8] sm:$0xff]
        %v2721 = vld [vmem:[%s1005 + $0x800] sm:$0xff]
        %v2722 = vld [vmem:[%s1005 + $0x808] sm:$0xff]
        %v2723 = vld [vmem:[%s1005 + $0x810] sm:$0xff]
        %v2724 = vld [vmem:[%s1005 + $0x818] sm:$0xff]
        %v2726 = vunpack.c.l.b16 %v2672
        %v2727 = vunpack.c.h.b16 %v2672
        %v2728 = vpack.c.b16 %v2726, %v2726
        %v2729 = vpack.c.b16 %v2727, %v2727
        %v2783 = vunpack.c.l.b16 %v2673
        %v2784 = vunpack.c.h.b16 %v2673
        %v2785 = vunpack.c.l.b16 %v2674
        %v2786 = vunpack.c.h.b16 %v2674
        %v2787 = vunpack.c.l.b16 %v2675
        %v2788 = vunpack.c.h.b16 %v2675
        %v2789 = vunpack.c.l.b16 %v2676
        %v2790 = vunpack.c.h.b16 %v2676
        %v2791 = vunpack.c.l.b16 %v2677
        %v2792 = vunpack.c.h.b16 %v2677
        %v2793 = vunpack.c.l.b16 %v2678
        %v2794 = vunpack.c.h.b16 %v2678
        %v2795 = vunpack.c.l.b16 %v2679
        %v2796 = vunpack.c.h.b16 %v2679
        %v2797 = vunpack.c.l.b16 %v2680
        %v2798 = vunpack.c.h.b16 %v2680
        %v2799 = vunpack.c.l.b16 %v2681
        %v2800 = vunpack.c.h.b16 %v2681
        %v2801 = vunpack.c.l.b16 %v2682
        %v2802 = vunpack.c.h.b16 %v2682
        %v2803 = vunpack.c.l.b16 %v2683
        %v2804 = vunpack.c.h.b16 %v2683
        %v2805 = vunpack.c.l.b16 %v2684
        %v2806 = vunpack.c.h.b16 %v2684
        %v2807 = vunpack.c.l.b16 %v2685
        %v2808 = vunpack.c.h.b16 %v2685
        %v2809 = vunpack.c.l.b16 %v2686
        %v2810 = vunpack.c.h.b16 %v2686
        %v2811 = vunpack.c.l.b16 %v2687
        %v2812 = vunpack.c.h.b16 %v2687
        %v2813 = vunpack.c.l.b16 %v2688
        %v2814 = vunpack.c.h.b16 %v2688
        %v2815 = vunpack.c.l.b16 %v2689
        %v2816 = vunpack.c.h.b16 %v2689
        %v2817 = vunpack.c.l.b16 %v2690
        %v2818 = vunpack.c.h.b16 %v2690
        %v2819 = vunpack.c.l.b16 %v2691
        %v2820 = vunpack.c.h.b16 %v2691
        %v2821 = vunpack.c.l.b16 %v2692
        %v2822 = vunpack.c.h.b16 %v2692
        %v2823 = vunpack.c.l.b16 %v2693
        %v2824 = vunpack.c.h.b16 %v2693
        %v2825 = vunpack.c.l.b16 %v2694
        %v2826 = vunpack.c.h.b16 %v2694
        %v2827 = vunpack.c.l.b16 %v2695
        %v2828 = vunpack.c.h.b16 %v2695
        %v2829 = vunpack.c.l.b16 %v2696
        %v2830 = vunpack.c.h.b16 %v2696
        %v2831 = vunpack.c.l.b16 %v2697
        %v2832 = vunpack.c.h.b16 %v2697
        %v2833 = vunpack.c.l.b16 %v2698
        %v2834 = vunpack.c.h.b16 %v2698
        %v2835 = vunpack.c.l.b16 %v2699
        %v2836 = vunpack.c.h.b16 %v2699
        %v2837 = vunpack.c.l.b16 %v2700
        %v2838 = vunpack.c.h.b16 %v2700
        %v2839 = vunpack.c.l.b16 %v2701
        %v2840 = vunpack.c.h.b16 %v2701
        %v2841 = vunpack.c.l.b16 %v2702
        %v2842 = vunpack.c.h.b16 %v2702
        %v2843 = vunpack.c.l.b16 %v2703
        %v2844 = vunpack.c.h.b16 %v2703
        %v2845 = vunpack.c.l.b16 %v2704
        %v2846 = vunpack.c.h.b16 %v2704
        %v2847 = vunpack.c.l.b16 %v2705
        %v2848 = vunpack.c.h.b16 %v2705
        %v2849 = vunpack.c.l.b16 %v2706
        %v2850 = vunpack.c.h.b16 %v2706
        %v2851 = vunpack.c.l.b16 %v2707
        %v2852 = vunpack.c.h.b16 %v2707
        %v2853 = vunpack.c.l.b16 %v2708
        %v2854 = vunpack.c.h.b16 %v2708
        %v2855 = vunpack.c.l.b16 %v2709
        %v2856 = vunpack.c.h.b16 %v2709
        %v2857 = vunpack.c.l.b16 %v2710
        %v2858 = vunpack.c.h.b16 %v2710
        %v2859 = vunpack.c.l.b16 %v2711
        %v2860 = vunpack.c.h.b16 %v2711
        %v2861 = vunpack.c.l.b16 %v2712
        %v2862 = vunpack.c.h.b16 %v2712
        %v2863 = vunpack.c.l.b16 %v2713
        %v2864 = vunpack.c.h.b16 %v2713
        %v2865 = vunpack.c.l.b16 %v2714
        %v2866 = vunpack.c.h.b16 %v2714
        %v2867 = vunpack.c.l.b16 %v2715
        %v2868 = vunpack.c.h.b16 %v2715
        %v2869 = vunpack.c.l.b16 %v2716
        %v2870 = vunpack.c.h.b16 %v2716
        %v2871 = vunpack.c.l.b16 %v2717
        %v2872 = vunpack.c.h.b16 %v2717
        %v2873 = vunpack.c.l.b16 %v2718
        %v2874 = vunpack.c.h.b16 %v2718
        %v2875 = vunpack.c.l.b16 %v2719
        %v2876 = vunpack.c.h.b16 %v2719
        %v2877 = vunpack.c.l.b16 %v2720
        %v2878 = vunpack.c.h.b16 %v2720
        %v2879 = vunpack.c.l.b16 %v2721
        %v2880 = vunpack.c.h.b16 %v2721
        %v2881 = vunpack.c.l.b16 %v2722
        %v2882 = vunpack.c.h.b16 %v2722
        %v2883 = vunpack.c.l.b16 %v2723
        %v2884 = vunpack.c.h.b16 %v2723
        %v2885 = vunpack.c.l.b16 %v2724
        %v2886 = vunpack.c.h.b16 %v2724
        %v2887 = vpack.c.b16 %v2787, %v2783
        %v2888 = vpack.c.b16 %v2788, %v2784
        %v2889 = vpack.c.b16 %v2789, %v2785
        %v2890 = vpack.c.b16 %v2790, %v2786
        %v2891 = vpack.c.b16 %v2795, %v2791
        %v2892 = vpack.c.b16 %v2796, %v2792
        %v2893 = vpack.c.b16 %v2797, %v2793
        %v2894 = vpack.c.b16 %v2798, %v2794
        %v2895 = vpack.c.b16 %v2803, %v2799
        %v2896 = vpack.c.b16 %v2804, %v2800
        %v2897 = vpack.c.b16 %v2805, %v2801
        %v2898 = vpack.c.b16 %v2806, %v2802
        %v2899 = vpack.c.b16 %v2811, %v2807
        %v2900 = vpack.c.b16 %v2812, %v2808
        %v2901 = vpack.c.b16 %v2813, %v2809
        %v2902 = vpack.c.b16 %v2814, %v2810
        %v2903 = vpack.c.b16 %v2819, %v2815
        %v2904 = vpack.c.b16 %v2820, %v2816
        %v2905 = vpack.c.b16 %v2821, %v2817
        %v2906 = vpack.c.b16 %v2822, %v2818
        %v2907 = vpack.c.b16 %v2827, %v2823
        %v2908 = vpack.c.b16 %v2828, %v2824
        %v2909 = vpack.c.b16 %v2829, %v2825
        %v2910 = vpack.c.b16 %v2830, %v2826
        %v2911 = vpack.c.b16 %v2835, %v2831
        %v2912 = vpack.c.b16 %v2836, %v2832
        %v2913 = vpack.c.b16 %v2837, %v2833
        %v2914 = vpack.c.b16 %v2838, %v2834
        %v2915 = vpack.c.b16 %v2843, %v2839
        %v2916 = vpack.c.b16 %v2844, %v2840
        %v2917 = vpack.c.b16 %v2845, %v2841
        %v2918 = vpack.c.b16 %v2846, %v2842
        %v2919 = vpack.c.b16 %v2851, %v2847
        %v2920 = vpack.c.b16 %v2852, %v2848
        %v2921 = vpack.c.b16 %v2853, %v2849
        %v2922 = vpack.c.b16 %v2854, %v2850
        %v2923 = vpack.c.b16 %v2859, %v2855
        %v2924 = vpack.c.b16 %v2860, %v2856
        %v2925 = vpack.c.b16 %v2861, %v2857
        %v2926 = vpack.c.b16 %v2862, %v2858
        %v2927 = vpack.c.b16 %v2867, %v2863
        %v2928 = vpack.c.b16 %v2868, %v2864
        %v2929 = vpack.c.b16 %v2869, %v2865
        %v2930 = vpack.c.b16 %v2870, %v2866
        %v2931 = vpack.c.b16 %v2875, %v2871
        %v2932 = vpack.c.b16 %v2876, %v2872
        %v2933 = vpack.c.b16 %v2877, %v2873
        %v2934 = vpack.c.b16 %v2878, %v2874
        %v2935 = vpack.c.b16 %v2883, %v2879
        %v2936 = vpack.c.b16 %v2884, %v2880
        %v2937 = vpack.c.b16 %v2885, %v2881
        %v2938 = vpack.c.b16 %v2886, %v2882
        %v2992 = vsel %vm1416, %v2729, 0
        %2994 = vmatprep.subr.bf16.mxu0 %v2888
        %2995 = vmatpush1.bf16.msra.mxu0 %v2887
        %2996 = vmatprep.subr.bf16.mxu0 %v2892
        %2997 = vmatpush1.bf16.msra.mxu0 %v2891
        %2998 = vmatprep.subr.bf16.mxu0 %v2896
        %2999 = vmatpush1.bf16.msra.mxu0 %v2895
        %3000 = vmatprep.subr.bf16.mxu0 %v2900
        %3001 = vmatpush1.bf16.msra.mxu0 %v2899
        %3002 = vmatprep.subr.bf16.mxu0 %v2904
        %3003 = vmatpush1.bf16.msra.mxu0 %v2903
        %3004 = vmatprep.subr.bf16.mxu0 %v2908
        %3005 = vmatpush1.bf16.msra.mxu0 %v2907
        %3006 = vmatprep.subr.bf16.mxu0 %v2912
        %3007 = vmatpush1.bf16.msra.mxu0 %v2911
        %3008 = vmatprep.subr.bf16.mxu0 %v2916
        %3009 = vmatpush1.bf16.msra.mxu0 %v2915
        %3010 = vmatprep.subr.bf16.mxu0 %v2920
        %3011 = vmatpush1.bf16.msra.mxu0 %v2919
        %3012 = vmatprep.subr.bf16.mxu0 %v2924
        %3013 = vmatpush1.bf16.msra.mxu0 %v2923
        %3014 = vmatprep.subr.bf16.mxu0 %v2928
        %3015 = vmatpush1.bf16.msra.mxu0 %v2927
        %3016 = vmatprep.subr.bf16.mxu0 %v2932
        %3017 = vmatpush1.bf16.msra.mxu0 %v2931
        %3018 = vmatprep.subr.bf16.mxu0 %v2936
        %3019 = vmatpush1.bf16.msra.mxu0 %v2935
        %3020 = vmatprep.subr.bf16.mxu0 0
        %3021 = vmatpush1.bf16.msra.mxu0 0
        %3022 = vmatprep.subr.bf16.mxu0 0
        %3023 = vmatpush1.bf16.msra.mxu0 0
        %3024 = vmatprep.subr.bf16.mxu0 0
        %3025 = vmatpush1.bf16.msra.mxu0 0
        %3026 = vmatprep.mubr.bf16.mxu0 %v2992
        %3027 = vmatmul.mubr.bf16.gmra.mrb[0].mxu0 %v2728
        %v3028 = vpop.f32.mrb[0].mxu0
        %v3029 = vadd.f32 0.0, %v3028
        %v3030 = vpop.f32.mrb[0].mxu0
        %v3031 = vadd.f32 0.0, %v3030
        %v3032 = vpop.f32.mrb[0].mxu0
        %v3033 = vpop.f32.mrb[0].mxu0
        %3034 = vdwg.mxu0
        %3035 = vmatprep.subr.bf16.mxu0 %v2890
        %3036 = vmatpush1.bf16.msra.mxu0 %v2889
        %3037 = vmatprep.subr.bf16.mxu0 %v2894
        %3038 = vmatpush1.bf16.msra.mxu0 %v2893
        %3039 = vmatprep.subr.bf16.mxu0 %v2898
        %3040 = vmatpush1.bf16.msra.mxu0 %v2897
        %3041 = vmatprep.subr.bf16.mxu0 %v2902
        %3042 = vmatpush1.bf16.msra.mxu0 %v2901
        %3043 = vmatprep.subr.bf16.mxu0 %v2906
        %3044 = vmatpush1.bf16.msra.mxu0 %v2905
        %3045 = vmatprep.subr.bf16.mxu0 %v2910
        %3046 = vmatpush1.bf16.msra.mxu0 %v2909
        %3047 = vmatprep.subr.bf16.mxu0 %v2914
        %3048 = vmatpush1.bf16.msra.mxu0 %v2913
        %3049 = vmatprep.subr.bf16.mxu0 %v2918
        %3050 = vmatpush1.bf16.msra.mxu0 %v2917
        %3051 = vmatprep.subr.bf16.mxu0 %v2922
        %3052 = vmatpush1.bf16.msra.mxu0 %v2921
        %3053 = vmatprep.subr.bf16.mxu0 %v2926
        %3054 = vmatpush1.bf16.msra.mxu0 %v2925
        %3055 = vmatprep.subr.bf16.mxu0 %v2930
        %3056 = vmatpush1.bf16.msra.mxu0 %v2929
        %3057 = vmatprep.subr.bf16.mxu0 %v2934
        %3058 = vmatpush1.bf16.msra.mxu0 %v2933
        %3059 = vmatprep.subr.bf16.mxu0 %v2938
        %3060 = vmatpush1.bf16.msra.mxu0 %v2937
        %3061 = vmatprep.subr.bf16.mxu0 0
        %3062 = vmatpush1.bf16.msra.mxu0 0
        %3063 = vmatprep.subr.bf16.mxu0 0
        %3064 = vmatpush1.bf16.msra.mxu0 0
        %3065 = vmatprep.subr.bf16.mxu0 0
        %3066 = vmatpush1.bf16.msra.mxu0 0
        %3067 = vmatprep.mubr.bf16.mxu0 %v2992
        %3068 = vmatmul.mubr.bf16.gmra.mrb[0].mxu0 %v2728
        %v3069 = vpop.f32.mrb[0].mxu0
        %v3070 = vadd.f32 0.0, %v3069
        %v3071 = vpop.f32.mrb[0].mxu0
        %v3072 = vadd.f32 0.0, %v3071
        %v3073 = vpop.f32.mrb[0].mxu0
        %v3074 = vpop.f32.mrb[0].mxu0
        %3075 = vdwg.mxu0
        %v3076 = vadd.f32 %v2667, %v3029
        %v3077 = vadd.f32 %v2668, %v3031
        %v3078 = vadd.f32 %v2669, %v3070
        %v3079 = vadd.f32 %v2670, %v3072
        %s3080 = scalar_lea.vmem %s0, 40
        %v3081 = vld [vmem:[%s3080] sm:$0xff]
        %v3082 = vld [vmem:[%s1005 + $0x820] sm:$0xff]
        %v3083 = vld [vmem:[%s1005 + $0x828] sm:$0xff]
        %v3084 = vld [vmem:[%s1005 + $0x830] sm:$0xff]
        %v3085 = vld [vmem:[%s1005 + $0x838] sm:$0xff]
        %v3086 = vld [vmem:[%s1005 + $0x840] sm:$0xff]
        %v3087 = vld [vmem:[%s1005 + $0x848] sm:$0xff]
        %v3088 = vld [vmem:[%s1005 + $0x850] sm:$0xff]
        %v3089 = vld [vmem:[%s1005 + $0x858] sm:$0xff]
        %v3090 = vld [vmem:[%s1005 + $0x860] sm:$0xff]
        %v3091 = vld [vmem:[%s1005 + $0x868] sm:$0xff]
        %v3092 = vld [vmem:[%s1005 + $0x870] sm:$0xff]
        %v3093 = vld [vmem:[%s1005 + $0x878] sm:$0xff]
        %v3094 = vld [vmem:[%s1005 + $0x880] sm:$0xff]
        %v3095 = vld [vmem:[%s1005 + $0x888] sm:$0xff]
        %v3096 = vld [vmem:[%s1005 + $0x890] sm:$0xff]
        %v3097 = vld [vmem:[%s1005 + $0x898] sm:$0xff]
        %v3098 = vld [vmem:[%s1005 + $0x8a0] sm:$0xff]
        %v3099 = vld [vmem:[%s1005 + $0x8a8] sm:$0xff]
        %v3100 = vld [vmem:[%s1005 + $0x8b0] sm:$0xff]
        %v3101 = vld [vmem:[%s1005 + $0x8b8] sm:$0xff]
        %v3102 = vld [vmem:[%s1005 + $0x8c0] sm:$0xff]
        %v3103 = vld [vmem:[%s1005 + $0x8c8] sm:$0xff]
        %v3104 = vld [vmem:[%s1005 + $0x8d0] sm:$0xff]
        %v3105 = vld [vmem:[%s1005 + $0x8d8] sm:$0xff]
        %v3106 = vld [vmem:[%s1005 + $0x8e0] sm:$0xff]
        %v3107 = vld [vmem:[%s1005 + $0x8e8] sm:$0xff]
        %v3108 = vld [vmem:[%s1005 + $0x8f0] sm:$0xff]
        %v3109 = vld [vmem:[%s1005 + $0x8f8] sm:$0xff]
        %v3110 = vld [vmem:[%s1005 + $0x900] sm:$0xff]
        %v3111 = vld [vmem:[%s1005 + $0x908] sm:$0xff]
        %v3112 = vld [vmem:[%s1005 + $0x910] sm:$0xff]
        %v3113 = vld [vmem:[%s1005 + $0x918] sm:$0xff]
        %v3114 = vld [vmem:[%s1005 + $0x920] sm:$0xff]
        %v3115 = vld [vmem:[%s1005 + $0x928] sm:$0xff]
        %v3116 = vld [vmem:[%s1005 + $0x930] sm:$0xff]
        %v3117 = vld [vmem:[%s1005 + $0x938] sm:$0xff]
        %v3118 = vld [vmem:[%s1005 + $0x940] sm:$0xff]
        %v3119 = vld [vmem:[%s1005 + $0x948] sm:$0xff]
        %v3120 = vld [vmem:[%s1005 + $0x950] sm:$0xff]
        %v3121 = vld [vmem:[%s1005 + $0x958] sm:$0xff]
        %v3122 = vld [vmem:[%s1005 + $0x960] sm:$0xff]
        %v3123 = vld [vmem:[%s1005 + $0x968] sm:$0xff]
        %v3124 = vld [vmem:[%s1005 + $0x970] sm:$0xff]
        %v3125 = vld [vmem:[%s1005 + $0x978] sm:$0xff]
        %v3126 = vld [vmem:[%s1005 + $0x980] sm:$0xff]
        %v3127 = vld [vmem:[%s1005 + $0x988] sm:$0xff]
        %v3128 = vld [vmem:[%s1005 + $0x990] sm:$0xff]
        %v3129 = vld [vmem:[%s1005 + $0x998] sm:$0xff]
        %v3130 = vld [vmem:[%s1005 + $0x9a0] sm:$0xff]
        %v3131 = vld [vmem:[%s1005 + $0x9a8] sm:$0xff]
        %v3132 = vld [vmem:[%s1005 + $0x9b0] sm:$0xff]
        %v3133 = vld [vmem:[%s1005 + $0x9b8] sm:$0xff]
        %v3135 = vunpack.c.l.b16 %v3081
        %v3136 = vunpack.c.h.b16 %v3081
        %v3137 = vpack.c.b16 %v3135, %v3135
        %v3138 = vpack.c.b16 %v3136, %v3136
        %v3192 = vunpack.c.l.b16 %v3082
        %v3193 = vunpack.c.h.b16 %v3082
        %v3194 = vunpack.c.l.b16 %v3083
        %v3195 = vunpack.c.h.b16 %v3083
        %v3196 = vunpack.c.l.b16 %v3084
        %v3197 = vunpack.c.h.b16 %v3084
        %v3198 = vunpack.c.l.b16 %v3085
        %v3199 = vunpack.c.h.b16 %v3085
        %v3200 = vunpack.c.l.b16 %v3086
        %v3201 = vunpack.c.h.b16 %v3086
        %v3202 = vunpack.c.l.b16 %v3087
        %v3203 = vunpack.c.h.b16 %v3087
        %v3204 = vunpack.c.l.b16 %v3088
        %v3205 = vunpack.c.h.b16 %v3088
        %v3206 = vunpack.c.l.b16 %v3089
        %v3207 = vunpack.c.h.b16 %v3089
        %v3208 = vunpack.c.l.b16 %v3090
        %v3209 = vunpack.c.h.b16 %v3090
        %v3210 = vunpack.c.l.b16 %v3091
        %v3211 = vunpack.c.h.b16 %v3091
        %v3212 = vunpack.c.l.b16 %v3092
        %v3213 = vunpack.c.h.b16 %v3092
        %v3214 = vunpack.c.l.b16 %v3093
        %v3215 = vunpack.c.h.b16 %v3093
        %v3216 = vunpack.c.l.b16 %v3094
        %v3217 = vunpack.c.h.b16 %v3094
        %v3218 = vunpack.c.l.b16 %v3095
        %v3219 = vunpack.c.h.b16 %v3095
        %v3220 = vunpack.c.l.b16 %v3096
        %v3221 = vunpack.c.h.b16 %v3096
        %v3222 = vunpack.c.l.b16 %v3097
        %v3223 = vunpack.c.h.b16 %v3097
        %v3224 = vunpack.c.l.b16 %v3098
        %v3225 = vunpack.c.h.b16 %v3098
        %v3226 = vunpack.c.l.b16 %v3099
        %v3227 = vunpack.c.h.b16 %v3099
        %v3228 = vunpack.c.l.b16 %v3100
        %v3229 = vunpack.c.h.b16 %v3100
        %v3230 = vunpack.c.l.b16 %v3101
        %v3231 = vunpack.c.h.b16 %v3101
        %v3232 = vunpack.c.l.b16 %v3102
        %v3233 = vunpack.c.h.b16 %v3102
        %v3234 = vunpack.c.l.b16 %v3103
        %v3235 = vunpack.c.h.b16 %v3103
        %v3236 = vunpack.c.l.b16 %v3104
        %v3237 = vunpack.c.h.b16 %v3104
        %v3238 = vunpack.c.l.b16 %v3105
        %v3239 = vunpack.c.h.b16 %v3105
        %v3240 = vunpack.c.l.b16 %v3106
        %v3241 = vunpack.c.h.b16 %v3106
        %v3242 = vunpack.c.l.b16 %v3107
        %v3243 = vunpack.c.h.b16 %v3107
        %v3244 = vunpack.c.l.b16 %v3108
        %v3245 = vunpack.c.h.b16 %v3108
        %v3246 = vunpack.c.l.b16 %v3109
        %v3247 = vunpack.c.h.b16 %v3109
        %v3248 = vunpack.c.l.b16 %v3110
        %v3249 = vunpack.c.h.b16 %v3110
        %v3250 = vunpack.c.l.b16 %v3111
        %v3251 = vunpack.c.h.b16 %v3111
        %v3252 = vunpack.c.l.b16 %v3112
        %v3253 = vunpack.c.h.b16 %v3112
        %v3254 = vunpack.c.l.b16 %v3113
        %v3255 = vunpack.c.h.b16 %v3113
        %v3256 = vunpack.c.l.b16 %v3114
        %v3257 = vunpack.c.h.b16 %v3114
        %v3258 = vunpack.c.l.b16 %v3115
        %v3259 = vunpack.c.h.b16 %v3115
        %v3260 = vunpack.c.l.b16 %v3116
        %v3261 = vunpack.c.h.b16 %v3116
        %v3262 = vunpack.c.l.b16 %v3117
        %v3263 = vunpack.c.h.b16 %v3117
        %v3264 = vunpack.c.l.b16 %v3118
        %v3265 = vunpack.c.h.b16 %v3118
        %v3266 = vunpack.c.l.b16 %v3119
        %v3267 = vunpack.c.h.b16 %v3119
        %v3268 = vunpack.c.l.b16 %v3120
        %v3269 = vunpack.c.h.b16 %v3120
        %v3270 = vunpack.c.l.b16 %v3121
        %v3271 = vunpack.c.h.b16 %v3121
        %v3272 = vunpack.c.l.b16 %v3122
        %v3273 = vunpack.c.h.b16 %v3122
        %v3274 = vunpack.c.l.b16 %v3123
        %v3275 = vunpack.c.h.b16 %v3123
        %v3276 = vunpack.c.l.b16 %v3124
        %v3277 = vunpack.c.h.b16 %v3124
        %v3278 = vunpack.c.l.b16 %v3125
        %v3279 = vunpack.c.h.b16 %v3125
        %v3280 = vunpack.c.l.b16 %v3126
        %v3281 = vunpack.c.h.b16 %v3126
        %v3282 = vunpack.c.l.b16 %v3127
        %v3283 = vunpack.c.h.b16 %v3127
        %v3284 = vunpack.c.l.b16 %v3128
        %v3285 = vunpack.c.h.b16 %v3128
        %v3286 = vunpack.c.l.b16 %v3129
        %v3287 = vunpack.c.h.b16 %v3129
        %v3288 = vunpack.c.l.b16 %v3130
        %v3289 = vunpack.c.h.b16 %v3130
        %v3290 = vunpack.c.l.b16 %v3131
        %v3291 = vunpack.c.h.b16 %v3131
        %v3292 = vunpack.c.l.b16 %v3132
        %v3293 = vunpack.c.h.b16 %v3132
        %v3294 = vunpack.c.l.b16 %v3133
        %v3295 = vunpack.c.h.b16 %v3133
        %v3296 = vpack.c.b16 %v3196, %v3192
        %v3297 = vpack.c.b16 %v3197, %v3193
        %v3298 = vpack.c.b16 %v3198, %v3194
        %v3299 = vpack.c.b16 %v3199, %v3195
        %v3300 = vpack.c.b16 %v3204, %v3200
        %v3301 = vpack.c.b16 %v3205, %v3201
        %v3302 = vpack.c.b16 %v3206, %v3202
        %v3303 = vpack.c.b16 %v3207, %v3203
        %v3304 = vpack.c.b16 %v3212, %v3208
        %v3305 = vpack.c.b16 %v3213, %v3209
        %v3306 = vpack.c.b16 %v3214, %v3210
        %v3307 = vpack.c.b16 %v3215, %v3211
        %v3308 = vpack.c.b16 %v3220, %v3216
        %v3309 = vpack.c.b16 %v3221, %v3217
        %v3310 = vpack.c.b16 %v3222, %v3218
        %v3311 = vpack.c.b16 %v3223, %v3219
        %v3312 = vpack.c.b16 %v3228, %v3224
        %v3313 = vpack.c.b16 %v3229, %v3225
        %v3314 = vpack.c.b16 %v3230, %v3226
        %v3315 = vpack.c.b16 %v3231, %v3227
        %v3316 = vpack.c.b16 %v3236, %v3232
        %v3317 = vpack.c.b16 %v3237, %v3233
        %v3318 = vpack.c.b16 %v3238, %v3234
        %v3319 = vpack.c.b16 %v3239, %v3235
        %v3320 = vpack.c.b16 %v3244, %v3240
        %v3321 = vpack.c.b16 %v3245, %v3241
        %v3322 = vpack.c.b16 %v3246, %v3242
        %v3323 = vpack.c.b16 %v3247, %v3243
        %v3324 = vpack.c.b16 %v3252, %v3248
        %v3325 = vpack.c.b16 %v3253, %v3249
        %v3326 = vpack.c.b16 %v3254, %v3250
        %v3327 = vpack.c.b16 %v3255, %v3251
        %v3328 = vpack.c.b16 %v3260, %v3256
        %v3329 = vpack.c.b16 %v3261, %v3257
        %v3330 = vpack.c.b16 %v3262, %v3258
        %v3331 = vpack.c.b16 %v3263, %v3259
        %v3332 = vpack.c.b16 %v3268, %v3264
        %v3333 = vpack.c.b16 %v3269, %v3265
        %v3334 = vpack.c.b16 %v3270, %v3266
        %v3335 = vpack.c.b16 %v3271, %v3267
        %v3336 = vpack.c.b16 %v3276, %v3272
        %v3337 = vpack.c.b16 %v3277, %v3273
        %v3338 = vpack.c.b16 %v3278, %v3274
        %v3339 = vpack.c.b16 %v3279, %v3275
        %v3340 = vpack.c.b16 %v3284, %v3280
        %v3341 = vpack.c.b16 %v3285, %v3281
        %v3342 = vpack.c.b16 %v3286, %v3282
        %v3343 = vpack.c.b16 %v3287, %v3283
        %v3344 = vpack.c.b16 %v3292, %v3288
        %v3345 = vpack.c.b16 %v3293, %v3289
        %v3346 = vpack.c.b16 %v3294, %v3290
        %v3347 = vpack.c.b16 %v3295, %v3291
        %v3401 = vsel %vm1416, %v3138, 0
        %3403 = vmatprep.subr.bf16.mxu0 %v3297
        %3404 = vmatpush1.bf16.msra.mxu0 %v3296
        %3405 = vmatprep.subr.bf16.mxu0 %v3301
        %3406 = vmatpush1.bf16.msra.mxu0 %v3300
        %3407 = vmatprep.subr.bf16.mxu0 %v3305
        %3408 = vmatpush1.bf16.msra.mxu0 %v3304
        %3409 = vmatprep.subr.bf16.mxu0 %v3309
        %3410 = vmatpush1.bf16.msra.mxu0 %v3308
        %3411 = vmatprep.subr.bf16.mxu0 %v3313
        %3412 = vmatpush1.bf16.msra.mxu0 %v3312
        %3413 = vmatprep.subr.bf16.mxu0 %v3317
        %3414 = vmatpush1.bf16.msra.mxu0 %v3316
        %3415 = vmatprep.subr.bf16.mxu0 %v3321
        %3416 = vmatpush1.bf16.msra.mxu0 %v3320
        %3417 = vmatprep.subr.bf16.mxu0 %v3325
        %3418 = vmatpush1.bf16.msra.mxu0 %v3324
        %3419 = vmatprep.subr.bf16.mxu0 %v3329
        %3420 = vmatpush1.bf16.msra.mxu0 %v3328
        %3421 = vmatprep.subr.bf16.mxu0 %v3333
        %3422 = vmatpush1.bf16.msra.mxu0 %v3332
        %3423 = vmatprep.subr.bf16.mxu0 %v3337
        %3424 = vmatpush1.bf16.msra.mxu0 %v3336
        %3425 = vmatprep.subr.bf16.mxu0 %v3341
        %3426 = vmatpush1.bf16.msra.mxu0 %v3340
        %3427 = vmatprep.subr.bf16.mxu0 %v3345
        %3428 = vmatpush1.bf16.msra.mxu0 %v3344
        %3429 = vmatprep.subr.bf16.mxu0 0
        %3430 = vmatpush1.bf16.msra.mxu0 0
        %3431 = vmatprep.subr.bf16.mxu0 0
        %3432 = vmatpush1.bf16.msra.mxu0 0
        %3433 = vmatprep.subr.bf16.mxu0 0
        %3434 = vmatpush1.bf16.msra.mxu0 0
        %3435 = vmatprep.mubr.bf16.mxu0 %v3401
        %3436 = vmatmul.mubr.bf16.gmra.mrb[0].mxu0 %v3137
        %v3437 = vpop.f32.mrb[0].mxu0
        %v3438 = vadd.f32 0.0, %v3437
        %v3439 = vpop.f32.mrb[0].mxu0
        %v3440 = vadd.f32 0.0, %v3439
        %v3441 = vpop.f32.mrb[0].mxu0
        %v3442 = vpop.f32.mrb[0].mxu0
        %3443 = vdwg.mxu0
        %3444 = vmatprep.subr.bf16.mxu0 %v3299
        %3445 = vmatpush1.bf16.msra.mxu0 %v3298
        %3446 = vmatprep.subr.bf16.mxu0 %v3303
        %3447 = vmatpush1.bf16.msra.mxu0 %v3302
        %3448 = vmatprep.subr.bf16.mxu0 %v3307
        %3449 = vmatpush1.bf16.msra.mxu0 %v3306
        %3450 = vmatprep.subr.bf16.mxu0 %v3311
        %3451 = vmatpush1.bf16.msra.mxu0 %v3310
        %3452 = vmatprep.subr.bf16.mxu0 %v3315
        %3453 = vmatpush1.bf16.msra.mxu0 %v3314
        %3454 = vmatprep.subr.bf16.mxu0 %v3319
        %3455 = vmatpush1.bf16.msra.mxu0 %v3318
        %3456 = vmatprep.subr.bf16.mxu0 %v3323
        %3457 = vmatpush1.bf16.msra.mxu0 %v3322
        %3458 = vmatprep.subr.bf16.mxu0 %v3327
        %3459 = vmatpush1.bf16.msra.mxu0 %v3326
        %3460 = vmatprep.subr.bf16.mxu0 %v3331
        %3461 = vmatpush1.bf16.msra.mxu0 %v3330
        %3462 = vmatprep.subr.bf16.mxu0 %v3335
        %3463 = vmatpush1.bf16.msra.mxu0 %v3334
        %3464 = vmatprep.subr.bf16.mxu0 %v3339
        %3465 = vmatpush1.bf16.msra.mxu0 %v3338
        %3466 = vmatprep.subr.bf16.mxu0 %v3343
        %3467 = vmatpush1.bf16.msra.mxu0 %v3342
        %3468 = vmatprep.subr.bf16.mxu0 %v3347
        %3469 = vmatpush1.bf16.msra.mxu0 %v3346
        %3470 = vmatprep.subr.bf16.mxu0 0
        %3471 = vmatpush1.bf16.msra.mxu0 0
        %3472 = vmatprep.subr.bf16.mxu0 0
        %3473 = vmatpush1.bf16.msra.mxu0 0
        %3474 = vmatprep.subr.bf16.mxu0 0
        %3475 = vmatpush1.bf16.msra.mxu0 0
        %3476 = vmatprep.mubr.bf16.mxu0 %v3401
        %3477 = vmatmul.mubr.bf16.gmra.mrb[0].mxu0 %v3137
        %v3478 = vpop.f32.mrb[0].mxu0
        %v3479 = vadd.f32 0.0, %v3478
        %v3480 = vpop.f32.mrb[0].mxu0
        %v3481 = vadd.f32 0.0, %v3480
        %v3482 = vpop.f32.mrb[0].mxu0
        %v3483 = vpop.f32.mrb[0].mxu0
        %3484 = vdwg.mxu0
        %v3485 = vadd.f32 %v3076, %v3438
        %v3486 = vadd.f32 %v3077, %v3440
        %v3487 = vadd.f32 %v3078, %v3479
        %v3488 = vadd.f32 %v3079, %v3481
        %s3489 = scalar_lea.vmem %s0, 48
        %v3490 = vld [vmem:[%s3489] sm:$0xff]
        %v3491 = vld [vmem:[%s1005 + $0x9c0] sm:$0xff]
        %v3492 = vld [vmem:[%s1005 + $0x9c8] sm:$0xff]
        %v3493 = vld [vmem:[%s1005 + $0x9d0] sm:$0xff]
        %v3494 = vld [vmem:[%s1005 + $0x9d8] sm:$0xff]
        %v3495 = vld [vmem:[%s1005 + $0x9e0] sm:$0xff]
        %v3496 = vld [vmem:[%s1005 + $0x9e8] sm:$0xff]
        %v3497 = vld [vmem:[%s1005 + $0x9f0] sm:$0xff]
        %v3498 = vld [vmem:[%s1005 + $0x9f8] sm:$0xff]
        %v3499 = vld [vmem:[%s1005 + $0xa00] sm:$0xff]
        %v3500 = vld [vmem:[%s1005 + $0xa08] sm:$0xff]
        %v3501 = vld [vmem:[%s1005 + $0xa10] sm:$0xff]
        %v3502 = vld [vmem:[%s1005 + $0xa18] sm:$0xff]
        %v3503 = vld [vmem:[%s1005 + $0xa20] sm:$0xff]
        %v3504 = vld [vmem:[%s1005 + $0xa28] sm:$0xff]
        %v3505 = vld [vmem:[%s1005 + $0xa30] sm:$0xff]
        %v3506 = vld [vmem:[%s1005 + $0xa38] sm:$0xff]
        %v3507 = vld [vmem:[%s1005 + $0xa40] sm:$0xff]
        %v3508 = vld [vmem:[%s1005 + $0xa48] sm:$0xff]
        %v3509 = vld [vmem:[%s1005 + $0xa50] sm:$0xff]
        %v3510 = vld [vmem:[%s1005 + $0xa58] sm:$0xff]
        %v3511 = vld [vmem:[%s1005 + $0xa60] sm:$0xff]
        %v3512 = vld [vmem:[%s1005 + $0xa68] sm:$0xff]
        %v3513 = vld [vmem:[%s1005 + $0xa70] sm:$0xff]
        %v3514 = vld [vmem:[%s1005 + $0xa78] sm:$0xff]
        %v3515 = vld [vmem:[%s1005 + $0xa80] sm:$0xff]
        %v3516 = vld [vmem:[%s1005 + $0xa88] sm:$0xff]
        %v3517 = vld [vmem:[%s1005 + $0xa90] sm:$0xff]
        %v3518 = vld [vmem:[%s1005 + $0xa98] sm:$0xff]
        %v3519 = vld [vmem:[%s1005 + $0xaa0] sm:$0xff]
        %v3520 = vld [vmem:[%s1005 + $0xaa8] sm:$0xff]
        %v3521 = vld [vmem:[%s1005 + $0xab0] sm:$0xff]
        %v3522 = vld [vmem:[%s1005 + $0xab8] sm:$0xff]
        %v3523 = vld [vmem:[%s1005 + $0xac0] sm:$0xff]
        %v3524 = vld [vmem:[%s1005 + $0xac8] sm:$0xff]
        %v3525 = vld [vmem:[%s1005 + $0xad0] sm:$0xff]
        %v3526 = vld [vmem:[%s1005 + $0xad8] sm:$0xff]
        %v3527 = vld [vmem:[%s1005 + $0xae0] sm:$0xff]
        %v3528 = vld [vmem:[%s1005 + $0xae8] sm:$0xff]
        %v3529 = vld [vmem:[%s1005 + $0xaf0] sm:$0xff]
        %v3530 = vld [vmem:[%s1005 + $0xaf8] sm:$0xff]
        %v3531 = vld [vmem:[%s1005 + $0xb00] sm:$0xff]
        %v3532 = vld [vmem:[%s1005 + $0xb08] sm:$0xff]
        %v3533 = vld [vmem:[%s1005 + $0xb10] sm:$0xff]
        %v3534 = vld [vmem:[%s1005 + $0xb18] sm:$0xff]
        %v3535 = vld [vmem:[%s1005 + $0xb20] sm:$0xff]
        %v3536 = vld [vmem:[%s1005 + $0xb28] sm:$0xff]
        %v3537 = vld [vmem:[%s1005 + $0xb30] sm:$0xff]
        %v3538 = vld [vmem:[%s1005 + $0xb38] sm:$0xff]
        %v3539 = vld [vmem:[%s1005 + $0xb40] sm:$0xff]
        %v3540 = vld [vmem:[%s1005 + $0xb48] sm:$0xff]
        %v3541 = vld [vmem:[%s1005 + $0xb50] sm:$0xff]
        %v3542 = vld [vmem:[%s1005 + $0xb58] sm:$0xff]
        %v3544 = vunpack.c.l.b16 %v3490
        %v3545 = vunpack.c.h.b16 %v3490
        %v3546 = vpack.c.b16 %v3544, %v3544
        %v3547 = vpack.c.b16 %v3545, %v3545
        %v3601 = vunpack.c.l.b16 %v3491
        %v3602 = vunpack.c.h.b16 %v3491
        %v3603 = vunpack.c.l.b16 %v3492
        %v3604 = vunpack.c.h.b16 %v3492
        %v3605 = vunpack.c.l.b16 %v3493
        %v3606 = vunpack.c.h.b16 %v3493
        %v3607 = vunpack.c.l.b16 %v3494
        %v3608 = vunpack.c.h.b16 %v3494
        %v3609 = vunpack.c.l.b16 %v3495
        %v3610 = vunpack.c.h.b16 %v3495
        %v3611 = vunpack.c.l.b16 %v3496
        %v3612 = vunpack.c.h.b16 %v3496
        %v3613 = vunpack.c.l.b16 %v3497
        %v3614 = vunpack.c.h.b16 %v3497
        %v3615 = vunpack.c.l.b16 %v3498
        %v3616 = vunpack.c.h.b16 %v3498
        %v3617 = vunpack.c.l.b16 %v3499
        %v3618 = vunpack.c.h.b16 %v3499
        %v3619 = vunpack.c.l.b16 %v3500
        %v3620 = vunpack.c.h.b16 %v3500
        %v3621 = vunpack.c.l.b16 %v3501
        %v3622 = vunpack.c.h.b16 %v3501
        %v3623 = vunpack.c.l.b16 %v3502
        %v3624 = vunpack.c.h.b16 %v3502
        %v3625 = vunpack.c.l.b16 %v3503
        %v3626 = vunpack.c.h.b16 %v3503
        %v3627 = vunpack.c.l.b16 %v3504
        %v3628 = vunpack.c.h.b16 %v3504
        %v3629 = vunpack.c.l.b16 %v3505
        %v3630 = vunpack.c.h.b16 %v3505
        %v3631 = vunpack.c.l.b16 %v3506
        %v3632 = vunpack.c.h.b16 %v3506
        %v3633 = vunpack.c.l.b16 %v3507
        %v3634 = vunpack.c.h.b16 %v3507
        %v3635 = vunpack.c.l.b16 %v3508
        %v3636 = vunpack.c.h.b16 %v3508
        %v3637 = vunpack.c.l.b16 %v3509
        %v3638 = vunpack.c.h.b16 %v3509
        %v3639 = vunpack.c.l.b16 %v3510
        %v3640 = vunpack.c.h.b16 %v3510
        %v3641 = vunpack.c.l.b16 %v3511
        %v3642 = vunpack.c.h.b16 %v3511
        %v3643 = vunpack.c.l.b16 %v3512
        %v3644 = vunpack.c.h.b16 %v3512
        %v3645 = vunpack.c.l.b16 %v3513
        %v3646 = vunpack.c.h.b16 %v3513
        %v3647 = vunpack.c.l.b16 %v3514
        %v3648 = vunpack.c.h.b16 %v3514
        %v3649 = vunpack.c.l.b16 %v3515
        %v3650 = vunpack.c.h.b16 %v3515
        %v3651 = vunpack.c.l.b16 %v3516
        %v3652 = vunpack.c.h.b16 %v3516
        %v3653 = vunpack.c.l.b16 %v3517
        %v3654 = vunpack.c.h.b16 %v3517
        %v3655 = vunpack.c.l.b16 %v3518
        %v3656 = vunpack.c.h.b16 %v3518
        %v3657 = vunpack.c.l.b16 %v3519
        %v3658 = vunpack.c.h.b16 %v3519
        %v3659 = vunpack.c.l.b16 %v3520
        %v3660 = vunpack.c.h.b16 %v3520
        %v3661 = vunpack.c.l.b16 %v3521
        %v3662 = vunpack.c.h.b16 %v3521
        %v3663 = vunpack.c.l.b16 %v3522
        %v3664 = vunpack.c.h.b16 %v3522
        %v3665 = vunpack.c.l.b16 %v3523
        %v3666 = vunpack.c.h.b16 %v3523
        %v3667 = vunpack.c.l.b16 %v3524
        %v3668 = vunpack.c.h.b16 %v3524
        %v3669 = vunpack.c.l.b16 %v3525
        %v3670 = vunpack.c.h.b16 %v3525
        %v3671 = vunpack.c.l.b16 %v3526
        %v3672 = vunpack.c.h.b16 %v3526
        %v3673 = vunpack.c.l.b16 %v3527
        %v3674 = vunpack.c.h.b16 %v3527
        %v3675 = vunpack.c.l.b16 %v3528
        %v3676 = vunpack.c.h.b16 %v3528
        %v3677 = vunpack.c.l.b16 %v3529
        %v3678 = vunpack.c.h.b16 %v3529
        %v3679 = vunpack.c.l.b16 %v3530
        %v3680 = vunpack.c.h.b16 %v3530
        %v3681 = vunpack.c.l.b16 %v3531
        %v3682 = vunpack.c.h.b16 %v3531
        %v3683 = vunpack.c.l.b16 %v3532
        %v3684 = vunpack.c.h.b16 %v3532
        %v3685 = vunpack.c.l.b16 %v3533
        %v3686 = vunpack.c.h.b16 %v3533
        %v3687 = vunpack.c.l.b16 %v3534
        %v3688 = vunpack.c.h.b16 %v3534
        %v3689 = vunpack.c.l.b16 %v3535
        %v3690 = vunpack.c.h.b16 %v3535
        %v3691 = vunpack.c.l.b16 %v3536
        %v3692 = vunpack.c.h.b16 %v3536
        %v3693 = vunpack.c.l.b16 %v3537
        %v3694 = vunpack.c.h.b16 %v3537
        %v3695 = vunpack.c.l.b16 %v3538
        %v3696 = vunpack.c.h.b16 %v3538
        %v3697 = vunpack.c.l.b16 %v3539
        %v3698 = vunpack.c.h.b16 %v3539
        %v3699 = vunpack.c.l.b16 %v3540
        %v3700 = vunpack.c.h.b16 %v3540
        %v3701 = vunpack.c.l.b16 %v3541
        %v3702 = vunpack.c.h.b16 %v3541
        %v3703 = vunpack.c.l.b16 %v3542
        %v3704 = vunpack.c.h.b16 %v3542
        %v3705 = vpack.c.b16 %v3605, %v3601
        %v3706 = vpack.c.b16 %v3606, %v3602
        %v3707 = vpack.c.b16 %v3607, %v3603
        %v3708 = vpack.c.b16 %v3608, %v3604
        %v3709 = vpack.c.b16 %v3613, %v3609
        %v3710 = vpack.c.b16 %v3614, %v3610
        %v3711 = vpack.c.b16 %v3615, %v3611
        %v3712 = vpack.c.b16 %v3616, %v3612
        %v3713 = vpack.c.b16 %v3621, %v3617
        %v3714 = vpack.c.b16 %v3622, %v3618
        %v3715 = vpack.c.b16 %v3623, %v3619
        %v3716 = vpack.c.b16 %v3624, %v3620
        %v3717 = vpack.c.b16 %v3629, %v3625
        %v3718 = vpack.c.b16 %v3630, %v3626
        %v3719 = vpack.c.b16 %v3631, %v3627
        %v3720 = vpack.c.b16 %v3632, %v3628
        %v3721 = vpack.c.b16 %v3637, %v3633
        %v3722 = vpack.c.b16 %v3638, %v3634
        %v3723 = vpack.c.b16 %v3639, %v3635
        %v3724 = vpack.c.b16 %v3640, %v3636
        %v3725 = vpack.c.b16 %v3645, %v3641
        %v3726 = vpack.c.b16 %v3646, %v3642
        %v3727 = vpack.c.b16 %v3647, %v3643
        %v3728 = vpack.c.b16 %v3648, %v3644
        %v3729 = vpack.c.b16 %v3653, %v3649
        %v3730 = vpack.c.b16 %v3654, %v3650
        %v3731 = vpack.c.b16 %v3655, %v3651
        %v3732 = vpack.c.b16 %v3656, %v3652
        %v3733 = vpack.c.b16 %v3661, %v3657
        %v3734 = vpack.c.b16 %v3662, %v3658
        %v3735 = vpack.c.b16 %v3663, %v3659
        %v3736 = vpack.c.b16 %v3664, %v3660
        %v3737 = vpack.c.b16 %v3669, %v3665
        %v3738 = vpack.c.b16 %v3670, %v3666
        %v3739 = vpack.c.b16 %v3671, %v3667
        %v3740 = vpack.c.b16 %v3672, %v3668
        %v3741 = vpack.c.b16 %v3677, %v3673
        %v3742 = vpack.c.b16 %v3678, %v3674
        %v3743 = vpack.c.b16 %v3679, %v3675
        %v3744 = vpack.c.b16 %v3680, %v3676
        %v3745 = vpack.c.b16 %v3685, %v3681
        %v3746 = vpack.c.b16 %v3686, %v3682
        %v3747 = vpack.c.b16 %v3687, %v3683
        %v3748 = vpack.c.b16 %v3688, %v3684
        %v3749 = vpack.c.b16 %v3693, %v3689
        %v3750 = vpack.c.b16 %v3694, %v3690
        %v3751 = vpack.c.b16 %v3695, %v3691
        %v3752 = vpack.c.b16 %v3696, %v3692
        %v3753 = vpack.c.b16 %v3701, %v3697
        %v3754 = vpack.c.b16 %v3702, %v3698
        %v3755 = vpack.c.b16 %v3703, %v3699
        %v3756 = vpack.c.b16 %v3704, %v3700
        %v3810 = vsel %vm1416, %v3547, 0
        %3812 = vmatprep.subr.bf16.mxu0 %v3706
        %3813 = vmatpush1.bf16.msra.mxu0 %v3705
        %3814 = vmatprep.subr.bf16.mxu0 %v3710
        %3815 = vmatpush1.bf16.msra.mxu0 %v3709
        %3816 = vmatprep.subr.bf16.mxu0 %v3714
        %3817 = vmatpush1.bf16.msra.mxu0 %v3713
        %3818 = vmatprep.subr.bf16.mxu0 %v3718
        %3819 = vmatpush1.bf16.msra.mxu0 %v3717
        %3820 = vmatprep.subr.bf16.mxu0 %v3722
        %3821 = vmatpush1.bf16.msra.mxu0 %v3721
        %3822 = vmatprep.subr.bf16.mxu0 %v3726
        %3823 = vmatpush1.bf16.msra.mxu0 %v3725
        %3824 = vmatprep.subr.bf16.mxu0 %v3730
        %3825 = vmatpush1.bf16.msra.mxu0 %v3729
        %3826 = vmatprep.subr.bf16.mxu0 %v3734
        %3827 = vmatpush1.bf16.msra.mxu0 %v3733
        %3828 = vmatprep.subr.bf16.mxu0 %v3738
        %3829 = vmatpush1.bf16.msra.mxu0 %v3737
        %3830 = vmatprep.subr.bf16.mxu0 %v3742
        %3831 = vmatpush1.bf16.msra.mxu0 %v3741
        %3832 = vmatprep.subr.bf16.mxu0 %v3746
        %3833 = vmatpush1.bf16.msra.mxu0 %v3745
        %3834 = vmatprep.subr.bf16.mxu0 %v3750
        %3835 = vmatpush1.bf16.msra.mxu0 %v3749
        %3836 = vmatprep.subr.bf16.mxu0 %v3754
        %3837 = vmatpush1.bf16.msra.mxu0 %v3753
        %3838 = vmatprep.subr.bf16.mxu0 0
        %3839 = vmatpush1.bf16.msra.mxu0 0
        %3840 = vmatprep.subr.bf16.mxu0 0
        %3841 = vmatpush1.bf16.msra.mxu0 0
        %3842 = vmatprep.subr.bf16.mxu0 0
        %3843 = vmatpush1.bf16.msra.mxu0 0
        %3844 = vmatprep.mubr.bf16.mxu0 %v3810
        %3845 = vmatmul.mubr.bf16.gmra.mrb[0].mxu0 %v3546
        %v3846 = vpop.f32.mrb[0].mxu0
        %v3847 = vadd.f32 0.0, %v3846
        %v3848 = vpop.f32.mrb[0].mxu0
        %v3849 = vadd.f32 0.0, %v3848
        %v3850 = vpop.f32.mrb[0].mxu0
        %v3851 = vpop.f32.mrb[0].mxu0
        %3852 = vdwg.mxu0
        %3853 = vmatprep.subr.bf16.mxu0 %v3708
        %3854 = vmatpush1.bf16.msra.mxu0 %v3707
        %3855 = vmatprep.subr.bf16.mxu0 %v3712
        %3856 = vmatpush1.bf16.msra.mxu0 %v3711
        %3857 = vmatprep.subr.bf16.mxu0 %v3716
        %3858 = vmatpush1.bf16.msra.mxu0 %v3715
        %3859 = vmatprep.subr.bf16.mxu0 %v3720
        %3860 = vmatpush1.bf16.msra.mxu0 %v3719
        %3861 = vmatprep.subr.bf16.mxu0 %v3724
        %3862 = vmatpush1.bf16.msra.mxu0 %v3723
        %3863 = vmatprep.subr.bf16.mxu0 %v3728
        %3864 = vmatpush1.bf16.msra.mxu0 %v3727
        %3865 = vmatprep.subr.bf16.mxu0 %v3732
        %3866 = vmatpush1.bf16.msra.mxu0 %v3731
        %3867 = vmatprep.subr.bf16.mxu0 %v3736
        %3868 = vmatpush1.bf16.msra.mxu0 %v3735
        %3869 = vmatprep.subr.bf16.mxu0 %v3740
        %3870 = vmatpush1.bf16.msra.mxu0 %v3739
        %3871 = vmatprep.subr.bf16.mxu0 %v3744
        %3872 = vmatpush1.bf16.msra.mxu0 %v3743
        %3873 = vmatprep.subr.bf16.mxu0 %v3748
        %3874 = vmatpush1.bf16.msra.mxu0 %v3747
        %3875 = vmatprep.subr.bf16.mxu0 %v3752
        %3876 = vmatpush1.bf16.msra.mxu0 %v3751
        %3877 = vmatprep.subr.bf16.mxu0 %v3756
        %3878 = vmatpush1.bf16.msra.mxu0 %v3755
        %3879 = vmatprep.subr.bf16.mxu0 0
        %3880 = vmatpush1.bf16.msra.mxu0 0
        %3881 = vmatprep.subr.bf16.mxu0 0
        %3882 = vmatpush1.bf16.msra.mxu0 0
        %3883 = vmatprep.subr.bf16.mxu0 0
        %3884 = vmatpush1.bf16.msra.mxu0 0
        %3885 = vmatprep.mubr.bf16.mxu0 %v3810
        %3886 = vmatmul.mubr.bf16.gmra.mrb[0].mxu0 %v3546
        %v3887 = vpop.f32.mrb[0].mxu0
        %v3888 = vadd.f32 0.0, %v3887
        %v3889 = vpop.f32.mrb[0].mxu0
        %v3890 = vadd.f32 0.0, %v3889
        %v3891 = vpop.f32.mrb[0].mxu0
        %v3892 = vpop.f32.mrb[0].mxu0
        %3893 = vdwg.mxu0
        %v3894 = vadd.f32 %v3485, %v3847
        %v3895 = vadd.f32 %v3486, %v3849
        %v3896 = vadd.f32 %v3487, %v3888
        %v3897 = vadd.f32 %v3488, %v3890
        %s3898 = scalar_lea.vmem %s0, 56
        %v3899 = vld [vmem:[%s3898] sm:$0xff]
        %v3900 = vld [vmem:[%s1005 + $0xb60] sm:$0xff]
        %v3901 = vld [vmem:[%s1005 + $0xb68] sm:$0xff]
        %v3902 = vld [vmem:[%s1005 + $0xb70] sm:$0xff]
        %v3903 = vld [vmem:[%s1005 + $0xb78] sm:$0xff]
        %v3904 = vld [vmem:[%s1005 + $0xb80] sm:$0xff]
        %v3905 = vld [vmem:[%s1005 + $0xb88] sm:$0xff]
        %v3906 = vld [vmem:[%s1005 + $0xb90] sm:$0xff]
        %v3907 = vld [vmem:[%s1005 + $0xb98] sm:$0xff]
        %v3908 = vld [vmem:[%s1005 + $0xba0] sm:$0xff]
        %v3909 = vld [vmem:[%s1005 + $0xba8] sm:$0xff]
        %v3910 = vld [vmem:[%s1005 + $0xbb0] sm:$0xff]
        %v3911 = vld [vmem:[%s1005 + $0xbb8] sm:$0xff]
        %v3912 = vld [vmem:[%s1005 + $0xbc0] sm:$0xff]
        %v3913 = vld [vmem:[%s1005 + $0xbc8] sm:$0xff]
        %v3914 = vld [vmem:[%s1005 + $0xbd0] sm:$0xff]
        %v3915 = vld [vmem:[%s1005 + $0xbd8] sm:$0xff]
        %v3916 = vld [vmem:[%s1005 + $0xbe0] sm:$0xff]
        %v3917 = vld [vmem:[%s1005 + $0xbe8] sm:$0xff]
        %v3918 = vld [vmem:[%s1005 + $0xbf0] sm:$0xff]
        %v3919 = vld [vmem:[%s1005 + $0xbf8] sm:$0xff]
        %v3920 = vld [vmem:[%s1005 + $0xc00] sm:$0xff]
        %v3921 = vld [vmem:[%s1005 + $0xc08] sm:$0xff]
        %v3922 = vld [vmem:[%s1005 + $0xc10] sm:$0xff]
        %v3923 = vld [vmem:[%s1005 + $0xc18] sm:$0xff]
        %v3924 = vld [vmem:[%s1005 + $0xc20] sm:$0xff]
        %v3925 = vld [vmem:[%s1005 + $0xc28] sm:$0xff]
        %v3926 = vld [vmem:[%s1005 + $0xc30] sm:$0xff]
        %v3927 = vld [vmem:[%s1005 + $0xc38] sm:$0xff]
        %v3928 = vld [vmem:[%s1005 + $0xc40] sm:$0xff]
        %v3929 = vld [vmem:[%s1005 + $0xc48] sm:$0xff]
        %v3930 = vld [vmem:[%s1005 + $0xc50] sm:$0xff]
        %v3931 = vld [vmem:[%s1005 + $0xc58] sm:$0xff]
        %v3932 = vld [vmem:[%s1005 + $0xc60] sm:$0xff]
        %v3933 = vld [vmem:[%s1005 + $0xc68] sm:$0xff]
        %v3934 = vld [vmem:[%s1005 + $0xc70] sm:$0xff]
        %v3935 = vld [vmem:[%s1005 + $0xc78] sm:$0xff]
        %v3936 = vld [vmem:[%s1005 + $0xc80] sm:$0xff]
        %v3937 = vld [vmem:[%s1005 + $0xc88] sm:$0xff]
        %v3938 = vld [vmem:[%s1005 + $0xc90] sm:$0xff]
        %v3939 = vld [vmem:[%s1005 + $0xc98] sm:$0xff]
        %v3940 = vld [vmem:[%s1005 + $0xca0] sm:$0xff]
        %v3941 = vld [vmem:[%s1005 + $0xca8] sm:$0xff]
        %v3942 = vld [vmem:[%s1005 + $0xcb0] sm:$0xff]
        %v3943 = vld [vmem:[%s1005 + $0xcb8] sm:$0xff]
        %v3944 = vld [vmem:[%s1005 + $0xcc0] sm:$0xff]
        %v3945 = vld [vmem:[%s1005 + $0xcc8] sm:$0xff]
        %v3946 = vld [vmem:[%s1005 + $0xcd0] sm:$0xff]
        %v3947 = vld [vmem:[%s1005 + $0xcd8] sm:$0xff]
        %v3948 = vld [vmem:[%s1005 + $0xce0] sm:$0xff]
        %v3949 = vld [vmem:[%s1005 + $0xce8] sm:$0xff]
        %v3950 = vld [vmem:[%s1005 + $0xcf0] sm:$0xff]
        %v3951 = vld [vmem:[%s1005 + $0xcf8] sm:$0xff]
        %v3953 = vunpack.c.l.b16 %v3899
        %v3954 = vunpack.c.h.b16 %v3899
        %v3955 = vpack.c.b16 %v3953, %v3953
        %v3956 = vpack.c.b16 %v3954, %v3954
        %v4010 = vunpack.c.l.b16 %v3900
        %v4011 = vunpack.c.h.b16 %v3900
        %v4012 = vunpack.c.l.b16 %v3901
        %v4013 = vunpack.c.h.b16 %v3901
        %v4014 = vunpack.c.l.b16 %v3902
        %v4015 = vunpack.c.h.b16 %v3902
        %v4016 = vunpack.c.l.b16 %v3903
        %v4017 = vunpack.c.h.b16 %v3903
        %v4018 = vunpack.c.l.b16 %v3904
        %v4019 = vunpack.c.h.b16 %v3904
        %v4020 = vunpack.c.l.b16 %v3905
        %v4021 = vunpack.c.h.b16 %v3905
        %v4022 = vunpack.c.l.b16 %v3906
        %v4023 = vunpack.c.h.b16 %v3906
        %v4024 = vunpack.c.l.b16 %v3907
        %v4025 = vunpack.c.h.b16 %v3907
        %v4026 = vunpack.c.l.b16 %v3908
        %v4027 = vunpack.c.h.b16 %v3908
        %v4028 = vunpack.c.l.b16 %v3909
        %v4029 = vunpack.c.h.b16 %v3909
        %v4030 = vunpack.c.l.b16 %v3910
        %v4031 = vunpack.c.h.b16 %v3910
        %v4032 = vunpack.c.l.b16 %v3911
        %v4033 = vunpack.c.h.b16 %v3911
        %v4034 = vunpack.c.l.b16 %v3912
        %v4035 = vunpack.c.h.b16 %v3912
        %v4036 = vunpack.c.l.b16 %v3913
        %v4037 = vunpack.c.h.b16 %v3913
        %v4038 = vunpack.c.l.b16 %v3914
        %v4039 = vunpack.c.h.b16 %v3914
        %v4040 = vunpack.c.l.b16 %v3915
        %v4041 = vunpack.c.h.b16 %v3915
        %v4042 = vunpack.c.l.b16 %v3916
        %v4043 = vunpack.c.h.b16 %v3916
        %v4044 = vunpack.c.l.b16 %v3917
        %v4045 = vunpack.c.h.b16 %v3917
        %v4046 = vunpack.c.l.b16 %v3918
        %v4047 = vunpack.c.h.b16 %v3918
        %v4048 = vunpack.c.l.b16 %v3919
        %v4049 = vunpack.c.h.b16 %v3919
        %v4050 = vunpack.c.l.b16 %v3920
        %v4051 = vunpack.c.h.b16 %v3920
        %v4052 = vunpack.c.l.b16 %v3921
        %v4053 = vunpack.c.h.b16 %v3921
        %v4054 = vunpack.c.l.b16 %v3922
        %v4055 = vunpack.c.h.b16 %v3922
        %v4056 = vunpack.c.l.b16 %v3923
        %v4057 = vunpack.c.h.b16 %v3923
        %v4058 = vunpack.c.l.b16 %v3924
        %v4059 = vunpack.c.h.b16 %v3924
        %v4060 = vunpack.c.l.b16 %v3925
        %v4061 = vunpack.c.h.b16 %v3925
        %v4062 = vunpack.c.l.b16 %v3926
        %v4063 = vunpack.c.h.b16 %v3926
        %v4064 = vunpack.c.l.b16 %v3927
        %v4065 = vunpack.c.h.b16 %v3927
        %v4066 = vunpack.c.l.b16 %v3928
        %v4067 = vunpack.c.h.b16 %v3928
        %v4068 = vunpack.c.l.b16 %v3929
        %v4069 = vunpack.c.h.b16 %v3929
        %v4070 = vunpack.c.l.b16 %v3930
        %v4071 = vunpack.c.h.b16 %v3930
        %v4072 = vunpack.c.l.b16 %v3931
        %v4073 = vunpack.c.h.b16 %v3931
        %v4074 = vunpack.c.l.b16 %v3932
        %v4075 = vunpack.c.h.b16 %v3932
        %v4076 = vunpack.c.l.b16 %v3933
        %v4077 = vunpack.c.h.b16 %v3933
        %v4078 = vunpack.c.l.b16 %v3934
        %v4079 = vunpack.c.h.b16 %v3934
        %v4080 = vunpack.c.l.b16 %v3935
        %v4081 = vunpack.c.h.b16 %v3935
        %v4082 = vunpack.c.l.b16 %v3936
        %v4083 = vunpack.c.h.b16 %v3936
        %v4084 = vunpack.c.l.b16 %v3937
        %v4085 = vunpack.c.h.b16 %v3937
        %v4086 = vunpack.c.l.b16 %v3938
        %v4087 = vunpack.c.h.b16 %v3938
        %v4088 = vunpack.c.l.b16 %v3939
        %v4089 = vunpack.c.h.b16 %v3939
        %v4090 = vunpack.c.l.b16 %v3940
        %v4091 = vunpack.c.h.b16 %v3940
        %v4092 = vunpack.c.l.b16 %v3941
        %v4093 = vunpack.c.h.b16 %v3941
        %v4094 = vunpack.c.l.b16 %v3942
        %v4095 = vunpack.c.h.b16 %v3942
        %v4096 = vunpack.c.l.b16 %v3943
        %v4097 = vunpack.c.h.b16 %v3943
        %v4098 = vunpack.c.l.b16 %v3944
        %v4099 = vunpack.c.h.b16 %v3944
        %v4100 = vunpack.c.l.b16 %v3945
        %v4101 = vunpack.c.h.b16 %v3945
        %v4102 = vunpack.c.l.b16 %v3946
        %v4103 = vunpack.c.h.b16 %v3946
        %v4104 = vunpack.c.l.b16 %v3947
        %v4105 = vunpack.c.h.b16 %v3947
        %v4106 = vunpack.c.l.b16 %v3948
        %v4107 = vunpack.c.h.b16 %v3948
        %v4108 = vunpack.c.l.b16 %v3949
        %v4109 = vunpack.c.h.b16 %v3949
        %v4110 = vunpack.c.l.b16 %v3950
        %v4111 = vunpack.c.h.b16 %v3950
        %v4112 = vunpack.c.l.b16 %v3951
        %v4113 = vunpack.c.h.b16 %v3951
        %v4114 = vpack.c.b16 %v4014, %v4010
        %v4115 = vpack.c.b16 %v4015, %v4011
        %v4116 = vpack.c.b16 %v4016, %v4012
        %v4117 = vpack.c.b16 %v4017, %v4013
        %v4118 = vpack.c.b16 %v4022, %v4018
        %v4119 = vpack.c.b16 %v4023, %v4019
        %v4120 = vpack.c.b16 %v4024, %v4020
        %v4121 = vpack.c.b16 %v4025, %v4021
        %v4122 = vpack.c.b16 %v4030, %v4026
        %v4123 = vpack.c.b16 %v4031, %v4027
        %v4124 = vpack.c.b16 %v4032, %v4028
        %v4125 = vpack.c.b16 %v4033, %v4029
        %v4126 = vpack.c.b16 %v4038, %v4034
        %v4127 = vpack.c.b16 %v4039, %v4035
        %v4128 = vpack.c.b16 %v4040, %v4036
        %v4129 = vpack.c.b16 %v4041, %v4037
        %v4130 = vpack.c.b16 %v4046, %v4042
        %v4131 = vpack.c.b16 %v4047, %v4043
        %v4132 = vpack.c.b16 %v4048, %v4044
        %v4133 = vpack.c.b16 %v4049, %v4045
        %v4134 = vpack.c.b16 %v4054, %v4050
        %v4135 = vpack.c.b16 %v4055, %v4051
        %v4136 = vpack.c.b16 %v4056, %v4052
        %v4137 = vpack.c.b16 %v4057, %v4053
        %v4138 = vpack.c.b16 %v4062, %v4058
        %v4139 = vpack.c.b16 %v4063, %v4059
        %v4140 = vpack.c.b16 %v4064, %v4060
        %v4141 = vpack.c.b16 %v4065, %v4061
        %v4142 = vpack.c.b16 %v4070, %v4066
        %v4143 = vpack.c.b16 %v4071, %v4067
        %v4144 = vpack.c.b16 %v4072, %v4068
        %v4145 = vpack.c.b16 %v4073, %v4069
        %v4146 = vpack.c.b16 %v4078, %v4074
        %v4147 = vpack.c.b16 %v4079, %v4075
        %v4148 = vpack.c.b16 %v4080, %v4076
        %v4149 = vpack.c.b16 %v4081, %v4077
        %v4150 = vpack.c.b16 %v4086, %v4082
        %v4151 = vpack.c.b16 %v4087, %v4083
        %v4152 = vpack.c.b16 %v4088, %v4084
        %v4153 = vpack.c.b16 %v4089, %v4085
        %v4154 = vpack.c.b16 %v4094, %v4090
        %v4155 = vpack.c.b16 %v4095, %v4091
        %v4156 = vpack.c.b16 %v4096, %v4092
        %v4157 = vpack.c.b16 %v4097, %v4093
        %v4158 = vpack.c.b16 %v4102, %v4098
        %v4159 = vpack.c.b16 %v4103, %v4099
        %v4160 = vpack.c.b16 %v4104, %v4100
        %v4161 = vpack.c.b16 %v4105, %v4101
        %v4162 = vpack.c.b16 %v4110, %v4106
        %v4163 = vpack.c.b16 %v4111, %v4107
        %v4164 = vpack.c.b16 %v4112, %v4108
        %v4165 = vpack.c.b16 %v4113, %v4109
        %v4219 = vsel %vm1416, %v3956, 0
        %4221 = vmatprep.subr.bf16.mxu0 %v4115
        %4222 = vmatpush1.bf16.msra.mxu0 %v4114
        %4223 = vmatprep.subr.bf16.mxu0 %v4119
        %4224 = vmatpush1.bf16.msra.mxu0 %v4118
        %4225 = vmatprep.subr.bf16.mxu0 %v4123
        %4226 = vmatpush1.bf16.msra.mxu0 %v4122
        %4227 = vmatprep.subr.bf16.mxu0 %v4127
        %4228 = vmatpush1.bf16.msra.mxu0 %v4126
        %4229 = vmatprep.subr.bf16.mxu0 %v4131
        %4230 = vmatpush1.bf16.msra.mxu0 %v4130
        %4231 = vmatprep.subr.bf16.mxu0 %v4135
        %4232 = vmatpush1.bf16.msra.mxu0 %v4134
        %4233 = vmatprep.subr.bf16.mxu0 %v4139
        %4234 = vmatpush1.bf16.msra.mxu0 %v4138
        %4235 = vmatprep.subr.bf16.mxu0 %v4143
        %4236 = vmatpush1.bf16.msra.mxu0 %v4142
        %4237 = vmatprep.subr.bf16.mxu0 %v4147
        %4238 = vmatpush1.bf16.msra.mxu0 %v4146
        %4239 = vmatprep.subr.bf16.mxu0 %v4151
        %4240 = vmatpush1.bf16.msra.mxu0 %v4150
        %4241 = vmatprep.subr.bf16.mxu0 %v4155
        %4242 = vmatpush1.bf16.msra.mxu0 %v4154
        %4243 = vmatprep.subr.bf16.mxu0 %v4159
        %4244 = vmatpush1.bf16.msra.mxu0 %v4158
        %4245 = vmatprep.subr.bf16.mxu0 %v4163
        %4246 = vmatpush1.bf16.msra.mxu0 %v4162
        %4247 = vmatprep.subr.bf16.mxu0 0
        %4248 = vmatpush1.bf16.msra.mxu0 0
        %4249 = vmatprep.subr.bf16.mxu0 0
        %4250 = vmatpush1.bf16.msra.mxu0 0
        %4251 = vmatprep.subr.bf16.mxu0 0
        %4252 = vmatpush1.bf16.msra.mxu0 0
        %4253 = vmatprep.mubr.bf16.mxu0 %v4219
        %4254 = vmatmul.mubr.bf16.gmra.mrb[0].mxu0 %v3955
        %v4255 = vpop.f32.mrb[0].mxu0
        %v4256 = vadd.f32 0.0, %v4255
        %v4257 = vpop.f32.mrb[0].mxu0
        %v4258 = vadd.f32 0.0, %v4257
        %v4259 = vpop.f32.mrb[0].mxu0
        %v4260 = vpop.f32.mrb[0].mxu0
        %4261 = vdwg.mxu0
        %4262 = vmatprep.subr.bf16.mxu0 %v4117
        %4263 = vmatpush1.bf16.msra.mxu0 %v4116
        %4264 = vmatprep.subr.bf16.mxu0 %v4121
        %4265 = vmatpush1.bf16.msra.mxu0 %v4120
        %4266 = vmatprep.subr.bf16.mxu0 %v4125
        %4267 = vmatpush1.bf16.msra.mxu0 %v4124
        %4268 = vmatprep.subr.bf16.mxu0 %v4129
        %4269 = vmatpush1.bf16.msra.mxu0 %v4128
        %4270 = vmatprep.subr.bf16.mxu0 %v4133
        %4271 = vmatpush1.bf16.msra.mxu0 %v4132
        %4272 = vmatprep.subr.bf16.mxu0 %v4137
        %4273 = vmatpush1.bf16.msra.mxu0 %v4136
        %4274 = vmatprep.subr.bf16.mxu0 %v4141
        %4275 = vmatpush1.bf16.msra.mxu0 %v4140
        %4276 = vmatprep.subr.bf16.mxu0 %v4145
        %4277 = vmatpush1.bf16.msra.mxu0 %v4144
        %4278 = vmatprep.subr.bf16.mxu0 %v4149
        %4279 = vmatpush1.bf16.msra.mxu0 %v4148
        %4280 = vmatprep.subr.bf16.mxu0 %v4153
        %4281 = vmatpush1.bf16.msra.mxu0 %v4152
        %4282 = vmatprep.subr.bf16.mxu0 %v4157
        %4283 = vmatpush1.bf16.msra.mxu0 %v4156
        %4284 = vmatprep.subr.bf16.mxu0 %v4161
        %4285 = vmatpush1.bf16.msra.mxu0 %v4160
        %4286 = vmatprep.subr.bf16.mxu0 %v4165
        %4287 = vmatpush1.bf16.msra.mxu0 %v4164
        %4288 = vmatprep.subr.bf16.mxu0 0
        %4289 = vmatpush1.bf16.msra.mxu0 0
        %4290 = vmatprep.subr.bf16.mxu0 0
        %4291 = vmatpush1.bf16.msra.mxu0 0
        %4292 = vmatprep.subr.bf16.mxu0 0
        %4293 = vmatpush1.bf16.msra.mxu0 0
        %4294 = vmatprep.mubr.bf16.mxu0 %v4219
        %4295 = vmatmul.mubr.bf16.gmra.mrb[0].mxu0 %v3955
        %v4296 = vpop.f32.mrb[0].mxu0
        %v4297 = vadd.f32 0.0, %v4296
        %v4298 = vpop.f32.mrb[0].mxu0
        %v4299 = vadd.f32 0.0, %v4298
        %v4300 = vpop.f32.mrb[0].mxu0
        %v4301 = vpop.f32.mrb[0].mxu0
        %4302 = vdwg.mxu0
        %v4303 = vadd.f32 %v3894, %v4256
        %v4304 = vadd.f32 %v3895, %v4258
        %v4305 = vadd.f32 %v3896, %v4297
        %v4306 = vadd.f32 %v3897, %v4299
        %v4307 = vld [vmem:[%s1034] sm:$0xf]
        %v4309 = vlaneseq
        %v4310 = vshrl.u32 %v4309, 7
        %v4311 = vsub.s32 0, %v4310
        %v4312 = vrot.slane %v4307, %v4311
        %v4313 = vlaneseq
        %v4314 = vshrl.u32 %v4313, 7
        %v4315 = vsub.s32 1, %v4314
        %v4316 = vrot.slane %v4307, %v4315
        %v4317 = vlaneseq
        %v4318 = vshrl.u32 %v4317, 7
        %v4319 = vsub.s32 2, %v4318
        %v4320 = vrot.slane %v4307, %v4319
        %v4321 = vlaneseq
        %v4322 = vshrl.u32 %v4321, 7
        %v4323 = vsub.s32 3, %v4322
        %v4324 = vrot.slane %v4307, %v4323
        %v4329 = vadd.f32 %v4303, %v4312
        %v4330 = vadd.f32 %v4304, %v4316
        %v4331 = vadd.f32 %v4305, %v4320
        %v4332 = vadd.f32 %v4306, %v4324
        %v4333 = vxor.u32 %v4329, 2147483648
        %v4334 = vxor.u32 %v4330, 2147483648
        %v4335 = vxor.u32 %v4331, 2147483648
        %v4336 = vxor.u32 %v4332, 2147483648
        %v4337 = vmul.f32 %v4333, 1.442695
        %v4338 = vpow.pop %v4337
        %v4339 = vmul.f32 %v4334, 1.442695
        %v4340 = vpow.pop %v4339
        %v4341 = vmul.f32 %v4335, 1.442695
        %v4342 = vpow.pop %v4341
        %v4343 = vmul.f32 %v4336, 1.442695
        %v4344 = vpow.pop %v4343
        %v4345 = vadd.f32 %v4338, 1.0
        %v4346 = vadd.f32 %v4340, 1.0
        %v4347 = vadd.f32 %v4342, 1.0
        %v4348 = vadd.f32 %v4344, 1.0
        %v4349 = vrcp.pop %v4345
        %v4350 = vmul.f32 1.0, %v4349
        %v4351 = vrcp.pop %v4346
        %v4352 = vmul.f32 1.0, %v4351
        %v4353 = vrcp.pop %v4347
        %v4354 = vmul.f32 1.0, %v4353
        %v4355 = vrcp.pop %v4348
        %v4356 = vmul.f32 1.0, %v4355
        %4357 = vst [vmem:[%s1040] sm:$0xff] %v4350
        %4358 = vst [vmem:[%s1040 + $0x8] sm:$0xff] %v4352
        %4359 = vst [vmem:[%s1040 + $0x10] sm:$0xff] %v4354
        %4360 = vst [vmem:[%s1040 + $0x18] sm:$0xff] %v4356
        %s4361 = smul.u32 4, %s14
        %p4362 = scmp.lt.s32.totalorder %s4361, 15
        %s4363 = scalar_select %p4362, %s4361, 15
        %s4364 = smul.addr %s4363, 8
        %s4365 = scalar_lea.vmem %s3, %s4364
        // Predicated region
        $region56: #{siamese_forward.3} parent=50 // pred_check
          %p4366 = pneg %p105
        $region57: #{siamese_forward.3} parent=50 // pred_check_branch
          %4368 = sbr.rel (%p4366) target = $region59
        $region58: #{siamese_forward.3} parent=50 // pred_region
          %s4369 = smul.u32 4, %s14
        $region59: #{siamese_forward.3} parent=50 // pred_fallthru
          _
      $region51: #{siamese_forward.3} parent=5 // pred_fallthru
        _
      %p4370 = scmp.le.s32.totalorder 2, %s9
      // Predicated region
      $region60: #{siamese_forward.3} parent=5 // pred_check
        %p4371 = pneg %p4370
      $region61: #{siamese_forward.3} parent=5 // pred_check_branch
        %4373 = sbr.rel (%p4371) target = $region63
      $region62: #{siamese_forward.3} parent=5 // pred_region
        %s4374 = ssub.s32 %s9, 2
        // Predicated region
        $region64: #{siamese_forward.3} parent=62 // pred_check
          %p4375 = pneg %p111
        $region65: #{siamese_forward.3} parent=62 // pred_check_branch
          %4377 = sbr.rel (%p4375) target = $region67
        $region66: #{siamese_forward.3} parent=62 // pred_region
          %s4378 = smul.u32 4, %s15
          %p4379 = scmp.lt.s32.totalorder %s4378, 15
          %s4380 = scalar_select %p4379, %s4378, 15
          %s4381 = smul.addr %s4380, 8
          %s4382 = scalar_lea.vmem %s3, %s4381
        $region67: #{siamese_forward.3} parent=62 // pred_fallthru
          _
      $region63: #{siamese_forward.3} parent=5 // pred_fallthru
        _
    $region6: #{siamese_forward.3} parent=1 // loop_footer
      %s13 = sadd.s32 1, %s9
    $region7: #{siamese_forward.3} parent=1 // loop_footer_branch
      %8 = sbr.rel target = $region3
    $region8: #{siamese_forward.3} parent=1 // loop_exit
      _

</llo_original>
